<compile_context>
chip_gen: v5e
topology: v5e:2x2
jax: 0.10.0
libtpu: 0.0.40
codegen_flags: <defaults>
</compile_context>

<pallas_src>
import numpy as np
import jax
import jax.numpy as jnp
from jax.experimental import pallas as pl
from jax.experimental.pallas import tpu as pltpu

# 3x3 tap offsets; tap index t == (dy+1)*3 + (dx+1) (matches weight reordering).
_TAPS = tuple((dy, dx) for dy in (-1, 0, 1) for dx in (-1, 0, 1))
# Conv-unit order executed by forward(); units 0,1 (self.x1) are reused for
# self.x2 (shared module), units 2,3 are self.x3.
_UNIT_ORDER = (0, 1, 0, 1, 2, 3)


def _make_kernel(C, CP, H, W):
    N = H * W          # flattened spatial axis -> lane axis
    P = C              # MaxPool2d((C, C)) window

    def kernel(x_ref, w_ref, b_ref, sc_ref, sh_ref, mask_ref, sel_ref, o_ref):
        # x_ref   : VMEM (1, CP, N)    one batch element, spatial flattened on lanes
        # w_ref   : VMEM (36, CP, CP)  per-(unit, tap) (Cout, Cin) matrices
        # b_ref   : VMEM (4, CP, 1)    conv biases            [1a,1b,3a,3b]
        # sc_ref  : VMEM (5, CP, 1)    folded BN scales       [1a,1b,3a,3b,4]
        # sh_ref  : VMEM (5, CP, 1)    folded BN shifts
        # mask_ref: VMEM (9, 1, N)     zero-padding masks, one per tap
        # sel_ref : VMEM (N, MP)       one-hot columns selecting pooled lanes
        # o_ref   : VMEM (1, CP, MP)
        x0 = x_ref[0]                                    # (CP, N)
        cur = x0

        # NOTE: loops fully unrolled — fine at small C; for large C move the
        # tap loop into lax.fori_loop(..., unroll=True) with a VMEM accumulator.
        for step, u in enumerate(_UNIT_ORDER):
            acc = None
            for t, (dy, dx) in enumerate(_TAPS):
                s = dy * W + dx                          # flat lane shift of this tap
                shifted = cur if s == 0 else pltpu.roll(cur, shift=(-s) % N, axis=1)
                shifted = shifted * mask_ref[t]          # zero padding at borders
                part = jnp.dot(w_ref[u * 9 + t], shifted,
                               preferred_element_type=jnp.float32)   # MXU
                acc = part if acc is None else acc + part
            z = acc + b_ref[u]                           # + conv bias
            r = jnp.maximum(z, 0.0)                      # ReLU
            cur = sc_ref[u] * r + sh_ref[u]              # BN (folded, inference)
            if step % 2 == 1:                            # end of a residual block:
                cur = cur + x0                           #   ... + x (original input)

        # self.x4: ReLU -> BN -> MaxPool2d((C, C))
        y = sc_ref[4] * jnp.maximum(cur, 0.0) + sh_ref[4]            # (CP, N)
        mw = y                                           # windowed max along W
        for k in range(1, P):
            mw = jnp.maximum(mw, pltpu.roll(y, shift=N - k, axis=1))
        mh = mw                                          # then along H (shift k*W)
        for k in range(1, P):
            mh = jnp.maximum(mh, pltpu.roll(mw, shift=N - k * W, axis=1))
        # Valid pooled values sit at lanes yo*P*W + xo*P; compact them into a
        # dense (CP, MP) block with a one-hot selection matmul (MXU "gather").
        o_ref[0] = jnp.dot(mh, sel_ref[...],
                           preferred_element_type=jnp.float32).astype(o_ref.dtype)

    return kernel


def rescon2d_forward(x, conv_w, conv_b, bn_scale, bn_shift):
    """x: [B, C, H, W] f32.
    conv_w: 4 arrays (C, C, 3, 3)  in order [conv1a, conv1b, conv3a, conv3b]
    conv_b: 4 arrays (C,)
    bn_scale / bn_shift: 5 arrays (C,) in order [bn1a, bn1b, bn3a, bn3b, bn4]
    (inference-mode BN folded to per-channel scale/shift)."""
    B, C, H, W = x.shape
    assert H % C == 0 and W % C == 0, "MaxPool2d((C, C)) needs H, W multiples of C"
    P = C
    OH, OW = H // P, W // P
    N = H * W
    M = OH * OW
    CP = ((C + 7) // 8) * 8          # pad channels to a sublane multiple
    MP = ((M + 127) // 128) * 128    # pad pooled lanes so the output store is dense
    pad_c = CP - C

    kernel = _make_kernel(C, CP, H, W)

    # ---- parameters, rearranged / padded for the kernel --------------------
    # (Cout, Cin, KH, KW) -> (KH*KW, Cout, Cin): one (Cout, Cin) matrix per tap.
    w_all = jnp.stack(
        [jnp.transpose(w.astype(jnp.float32), (2, 3, 0, 1)).reshape(9, C, C)
         for w in conv_w]).reshape(4 * 9, C, C)
    w_all = jnp.pad(w_all, ((0, 0), (0, pad_c), (0, pad_c)))
    b_all = jnp.pad(jnp.stack(conv_b).astype(jnp.float32),
                    ((0, 0), (0, pad_c))).reshape(4, CP, 1)
    sc_all = jnp.pad(jnp.stack(bn_scale).astype(jnp.float32),
                     ((0, 0), (0, pad_c))).reshape(5, CP, 1)
    sh_all = jnp.pad(jnp.stack(bn_shift).astype(jnp.float32),
                     ((0, 0), (0, pad_c))).reshape(5, CP, 1)

    # ---- compile-time constants: padding masks & pooled-lane selector ------
    yy, xx = np.divmod(np.arange(N), W)                  # flat lane -> (y, x)
    masks = np.stack(
        [((yy + dy >= 0) & (yy + dy < H) & (xx + dx >= 0) & (xx + dx < W))
         for dy, dx in _TAPS]).astype(np.float32).reshape(9, 1, N)
    sel = np.zeros((N, MP), np.float32)
    for m in range(M):
        yo, xo = divmod(m, OW)
        sel[yo * P * W + xo * P, m] = 1.0

    # activations: (B, C, H, W) -> (B, CP, H*W); padded channels stay zero.
    x_flat = jnp.pad(x.astype(jnp.float32).reshape(B, C, N),
                     ((0, 0), (0, pad_c), (0, 0)))

    param_bytes = 4 * (w_all.size + b_all.size + sc_all.size + sh_all.size
                       + masks.size + sel.size)

    out = pl.pallas_call(
        kernel,
        out_shape=jax.ShapeDtypeStruct((B, CP, MP), jnp.float32),
        grid=(B,),
        in_specs=[
            pl.BlockSpec((1, CP, N), lambda b: (b, 0, 0)),        # activations
            pl.BlockSpec((4 * 9, CP, CP), lambda b: (0, 0, 0)),   # conv weights (VMEM)
            pl.BlockSpec((4, CP, 1), lambda b: (0, 0, 0)),        # conv biases
            pl.BlockSpec((5, CP, 1), lambda b: (0, 0, 0)),        # BN scales
            pl.BlockSpec((5, CP, 1), lambda b: (0, 0, 0)),        # BN shifts
            pl.BlockSpec((9, 1, N), lambda b: (0, 0, 0)),         # tap masks
            pl.BlockSpec((N, MP), lambda b: (0, 0)),              # pool selector
        ],
        out_specs=pl.BlockSpec((1, CP, MP), lambda b: (b, 0, 0)),
        compiler_params=pltpu.CompilerParams(
            dimension_semantics=("parallel",)),
        cost_estimate=pl.CostEstimate(
            flops=int(B * len(_UNIT_ORDER) * 2 * 9 * C * C * H * W),
            transcendentals=0,
            bytes_accessed=int(4 * (x_flat.size + B * CP * MP) + param_bytes)),
    )(x_flat, w_all, b_all, sc_all, sh_all,
      jnp.asarray(masks), jnp.asarray(sel))

    return out[:, :C, :M].reshape(B, C, OH, OW).astype(x.dtype)


# ----------------------- pure-JAX reference (same semantics) -----------------
def _conv(x, w, b):
    y = jax.lax.conv_general_dilated(
        x, w, window_strides=(1, 1), padding=((1, 1), (1, 1)),
        dimension_numbers=("NCHW", "OIHW", "NCHW"),
        precision=jax.lax.Precision.HIGHEST)
    return y + b[None, :, None, None]


def _affine(x, s, t):
    return x * s[None, :, None, None] + t[None, :, None, None]


def rescon2d_reference(x, conv_w, conv_b, bn_scale, bn_shift):
    def unit(z, i):
        return _affine(jax.nn.relu(_conv(z, conv_w[i], conv_b[i])),
                       bn_scale[i], bn_shift[i])

    def block(z, i):
        return unit(unit(z, i), i + 1)

    x1 = block(x, 0) + x          # self.x1
    x2 = block(x1, 0) + x         # self.x2 shares self.x1's weights
    x3 = block(x2, 2) + x         # self.x3
    y = _affine(jax.nn.relu(x3), bn_scale[4], bn_shift[4])
    B, C, H, W = y.shape
    return y.reshape(B, C, H // C, C, W // C, C).max(axis=(3, 5))


if __name__ == "__main__":
    B, C, H, W = 2, 4, 16, 16
    key = jax.random.PRNGKey(0)
    kx, *pkeys = jax.random.split(key, 10)

    x = jax.random.normal(kx, (B, C, H, W), dtype=jnp.float32)

    # Conv params (PyTorch-like fan-in scaled init).
    bound = 1.0 / (C * 9) ** 0.5
    conv_w, conv_b = [], []
    for i in range(4):
        kw, kb = jax.random.split(pkeys[i])
        conv_w.append(jax.random.uniform(kw, (C, C, 3, 3), jnp.float32, -bound, bound))
        conv_b.append(jax.random.uniform(kb, (C,), jnp.float32, -bound, bound))

    # BN params (inference mode), folded to per-channel scale/shift.
    eps = 1e-5
    bn_scale, bn_shift = [], []
    for i in range(5):
        kg, kb2, km, kv = jax.random.split(pkeys[4 + i], 4)
        gamma = 1.0 + 0.1 * jax.random.normal(kg, (C,), jnp.float32)
        beta = 0.1 * jax.random.normal(kb2, (C,), jnp.float32)
        mean = 0.1 * jax.random.normal(km, (C,), jnp.float32)
        var = jax.random.uniform(kv, (C,), jnp.float32, 0.5, 1.5)
        s = gamma / jnp.sqrt(var + eps)
        bn_scale.append(s)
        bn_shift.append(beta - mean * s)

    out = rescon2d_forward(x, conv_w, conv_b, bn_scale, bn_shift)
    out = jax.block_until_ready(out)

    ref = rescon2d_reference(x, conv_w, conv_b, bn_scale, bn_shift)
    assert out.shape == (B, C, H // C, W // C) and out.dtype == x.dtype
    # Tolerance leaves headroom for MXU f32 matmul rounding (multi-pass f32 on
    # the MXU); any structural error (wrong tap/order/mask) is O(0.1-1).
    assert jnp.allclose(out, ref, atol=1e-2, rtol=1e-2), \
        f"max abs err {jnp.max(jnp.abs(out - ref))}"

    print("KERNEL_OK")
</pallas_src>

<mosaic_0001>
module attributes {stable_mosaic.version = 11 : i64} {
  func.func @kernel(%arg0: i32, %arg1: memref<1x8x256xf32, #tpu.memory_space<vmem>>, %arg2: memref<36x8x8xf32, #tpu.memory_space<vmem>>, %arg3: memref<4x8x1xf32, #tpu.memory_space<vmem>>, %arg4: memref<5x8x1xf32, #tpu.memory_space<vmem>>, %arg5: memref<5x8x1xf32, #tpu.memory_space<vmem>>, %arg6: memref<9x1x256xf32, #tpu.memory_space<vmem>>, %arg7: memref<256x128xf32, #tpu.memory_space<vmem>>, %arg8: memref<1x8x128xf32, #tpu.memory_space<vmem>>) attributes {dimension_semantics = [#tpu.dimension_semantics<parallel>], iteration_bounds = array<i64: 2>, scalar_prefetch = 0 : i64, scratch_operands = 0 : i64, tpu.core_type = #tpu.core_type<tc>, window_params = [{transform_indices = @transform_0, window_bounds = array<i64: 1, 8, 256>}, {pipeline_mode = #tpu.pipeline_mode<synchronous>, transform_indices = @transform_1, window_bounds = array<i64: 36, 8, 8>}, {pipeline_mode = #tpu.pipeline_mode<synchronous>, transform_indices = @transform_2, window_bounds = array<i64: 4, 8, 1>}, {pipeline_mode = #tpu.pipeline_mode<synchronous>, transform_indices = @transform_3, window_bounds = array<i64: 5, 8, 1>}, {pipeline_mode = #tpu.pipeline_mode<synchronous>, transform_indices = @transform_4, window_bounds = array<i64: 5, 8, 1>}, {pipeline_mode = #tpu.pipeline_mode<synchronous>, transform_indices = @transform_5, window_bounds = array<i64: 9, 1, 256>}, {pipeline_mode = #tpu.pipeline_mode<synchronous>, transform_indices = @transform_6, window_bounds = array<i64: 256, 128>}, {transform_indices = @transform_7, window_bounds = array<i64: 1, 8, 128>}]} {
    %c0 = arith.constant 0 : index
    %c0_0 = arith.constant 0 : index
    %c0_1 = arith.constant 0 : index
    %0 = vector.load %arg1[%c0, %c0_0, %c0_1] : memref<1x8x256xf32, #tpu.memory_space<vmem>>, vector<1x8x256xf32>
    %1 = vector.shape_cast %0 : vector<1x8x256xf32> to vector<8x256xf32>
    %c17_i32 = arith.constant 17 : i32
    %2 = tpu.dynamic_rotate %1 by %c17_i32 dim 1 : vector<8x256xf32>, i32 -> vector<8x256xf32>
    %c0_2 = arith.constant 0 : index
    %c0_3 = arith.constant 0 : index
    %c0_4 = arith.constant 0 : index
    %3 = vector.load %arg6[%c0_2, %c0_3, %c0_4] : memref<9x1x256xf32, #tpu.memory_space<vmem>>, vector<1x1x256xf32>
    %4 = vector.shape_cast %3 : vector<1x1x256xf32> to vector<1x256xf32>
    %5 = vector.broadcast %4 : vector<1x256xf32> to vector<8x256xf32>
    %6 = arith.mulf %2, %5 : vector<8x256xf32>
    %c0_5 = arith.constant 0 : index
    %c0_6 = arith.constant 0 : index
    %c0_7 = arith.constant 0 : index
    %7 = vector.load %arg2[%c0_5, %c0_6, %c0_7] : memref<36x8x8xf32, #tpu.memory_space<vmem>>, vector<1x8x8xf32>
    %8 = vector.shape_cast %7 : vector<1x8x8xf32> to vector<8x8xf32>
    %cst = arith.constant dense<0.000000e+00> : vector<8x256xf32>
    %9 = tpu.matmul %8, %6, %cst {dimension_numbers = #tpu.dot_dimension_numbers<[1], [0], [0], [1], [0, 0, 1, 1], [], []>} : vector<8x8xf32>, vector<8x256xf32>, vector<8x256xf32> -> vector<8x256xf32>
    %c16_i32 = arith.constant 16 : i32
    %10 = tpu.dynamic_rotate %1 by %c16_i32 dim 1 : vector<8x256xf32>, i32 -> vector<8x256xf32>
    %c1 = arith.constant 1 : index
    %c0_8 = arith.constant 0 : index
    %c0_9 = arith.constant 0 : index
    %11 = vector.load %arg6[%c1, %c0_8, %c0_9] : memref<9x1x256xf32, #tpu.memory_space<vmem>>, vector<1x1x256xf32>
    %12 = vector.shape_cast %11 : vector<1x1x256xf32> to vector<1x256xf32>
    %13 = vector.broadcast %12 : vector<1x256xf32> to vector<8x256xf32>
    %14 = arith.mulf %10, %13 : vector<8x256xf32>
    %c1_10 = arith.constant 1 : index
    %c0_11 = arith.constant 0 : index
    %c0_12 = arith.constant 0 : index
    %15 = vector.load %arg2[%c1_10, %c0_11, %c0_12] : memref<36x8x8xf32, #tpu.memory_space<vmem>>, vector<1x8x8xf32>
    %16 = vector.shape_cast %15 : vector<1x8x8xf32> to vector<8x8xf32>
    %cst_13 = arith.constant dense<0.000000e+00> : vector<8x256xf32>
    %17 = tpu.matmul %16, %14, %cst_13 {dimension_numbers = #tpu.dot_dimension_numbers<[1], [0], [0], [1], [0, 0, 1, 1], [], []>} : vector<8x8xf32>, vector<8x256xf32>, vector<8x256xf32> -> vector<8x256xf32>
    %18 = arith.addf %9, %17 : vector<8x256xf32>
    %c15_i32 = arith.constant 15 : i32
    %19 = tpu.dynamic_rotate %1 by %c15_i32 dim 1 : vector<8x256xf32>, i32 -> vector<8x256xf32>
    %c2 = arith.constant 2 : index
    %c0_14 = arith.constant 0 : index
    %c0_15 = arith.constant 0 : index
    %20 = vector.load %arg6[%c2, %c0_14, %c0_15] : memref<9x1x256xf32, #tpu.memory_space<vmem>>, vector<1x1x256xf32>
    %21 = vector.shape_cast %20 : vector<1x1x256xf32> to vector<1x256xf32>
    %22 = vector.broadcast %21 : vector<1x256xf32> to vector<8x256xf32>
    %23 = arith.mulf %19, %22 : vector<8x256xf32>
    %c2_16 = arith.constant 2 : index
    %c0_17 = arith.constant 0 : index
    %c0_18 = arith.constant 0 : index
    %24 = vector.load %arg2[%c2_16, %c0_17, %c0_18] : memref<36x8x8xf32, #tpu.memory_space<vmem>>, vector<1x8x8xf32>
    %25 = vector.shape_cast %24 : vector<1x8x8xf32> to vector<8x8xf32>
    %cst_19 = arith.constant dense<0.000000e+00> : vector<8x256xf32>
    %26 = tpu.matmul %25, %23, %cst_19 {dimension_numbers = #tpu.dot_dimension_numbers<[1], [0], [0], [1], [0, 0, 1, 1], [], []>} : vector<8x8xf32>, vector<8x256xf32>, vector<8x256xf32> -> vector<8x256xf32>
    %27 = arith.addf %18, %26 : vector<8x256xf32>
    %c1_i32 = arith.constant 1 : i32
    %28 = tpu.dynamic_rotate %1 by %c1_i32 dim 1 : vector<8x256xf32>, i32 -> vector<8x256xf32>
    %c3 = arith.constant 3 : index
    %c0_20 = arith.constant 0 : index
    %c0_21 = arith.constant 0 : index
    %29 = vector.load %arg6[%c3, %c0_20, %c0_21] : memref<9x1x256xf32, #tpu.memory_space<vmem>>, vector<1x1x256xf32>
    %30 = vector.shape_cast %29 : vector<1x1x256xf32> to vector<1x256xf32>
    %31 = vector.broadcast %30 : vector<1x256xf32> to vector<8x256xf32>
    %32 = arith.mulf %28, %31 : vector<8x256xf32>
    %c3_22 = arith.constant 3 : index
    %c0_23 = arith.constant 0 : index
    %c0_24 = arith.constant 0 : index
    %33 = vector.load %arg2[%c3_22, %c0_23, %c0_24] : memref<36x8x8xf32, #tpu.memory_space<vmem>>, vector<1x8x8xf32>
    %34 = vector.shape_cast %33 : vector<1x8x8xf32> to vector<8x8xf32>
    %cst_25 = arith.constant dense<0.000000e+00> : vector<8x256xf32>
    %35 = tpu.matmul %34, %32, %cst_25 {dimension_numbers = #tpu.dot_dimension_numbers<[1], [0], [0], [1], [0, 0, 1, 1], [], []>} : vector<8x8xf32>, vector<8x256xf32>, vector<8x256xf32> -> vector<8x256xf32>
    %36 = arith.addf %27, %35 : vector<8x256xf32>
    %c4 = arith.constant 4 : index
    %c0_26 = arith.constant 0 : index
    %c0_27 = arith.constant 0 : index
    %37 = vector.load %arg6[%c4, %c0_26, %c0_27] : memref<9x1x256xf32, #tpu.memory_space<vmem>>, vector<1x1x256xf32>
    %38 = vector.shape_cast %37 : vector<1x1x256xf32> to vector<1x256xf32>
    %39 = vector.broadcast %38 : vector<1x256xf32> to vector<8x256xf32>
    %40 = arith.mulf %1, %39 : vector<8x256xf32>
    %c4_28 = arith.constant 4 : index
    %c0_29 = arith.constant 0 : index
    %c0_30 = arith.constant 0 : index
    %41 = vector.load %arg2[%c4_28, %c0_29, %c0_30] : memref<36x8x8xf32, #tpu.memory_space<vmem>>, vector<1x8x8xf32>
    %42 = vector.shape_cast %41 : vector<1x8x8xf32> to vector<8x8xf32>
    %cst_31 = arith.constant dense<0.000000e+00> : vector<8x256xf32>
    %43 = tpu.matmul %42, %40, %cst_31 {dimension_numbers = #tpu.dot_dimension_numbers<[1], [0], [0], [1], [0, 0, 1, 1], [], []>} : vector<8x8xf32>, vector<8x256xf32>, vector<8x256xf32> -> vector<8x256xf32>
    %44 = arith.addf %36, %43 : vector<8x256xf32>
    %c255_i32 = arith.constant 255 : i32
    %45 = tpu.dynamic_rotate %1 by %c255_i32 dim 1 : vector<8x256xf32>, i32 -> vector<8x256xf32>
    %c5 = arith.constant 5 : index
    %c0_32 = arith.constant 0 : index
    %c0_33 = arith.constant 0 : index
    %46 = vector.load %arg6[%c5, %c0_32, %c0_33] : memref<9x1x256xf32, #tpu.memory_space<vmem>>, vector<1x1x256xf32>
    %47 = vector.shape_cast %46 : vector<1x1x256xf32> to vector<1x256xf32>
    %48 = vector.broadcast %47 : vector<1x256xf32> to vector<8x256xf32>
    %49 = arith.mulf %45, %48 : vector<8x256xf32>
    %c5_34 = arith.constant 5 : index
    %c0_35 = arith.constant 0 : index
    %c0_36 = arith.constant 0 : index
    %50 = vector.load %arg2[%c5_34, %c0_35, %c0_36] : memref<36x8x8xf32, #tpu.memory_space<vmem>>, vector<1x8x8xf32>
    %51 = vector.shape_cast %50 : vector<1x8x8xf32> to vector<8x8xf32>
    %cst_37 = arith.constant dense<0.000000e+00> : vector<8x256xf32>
    %52 = tpu.matmul %51, %49, %cst_37 {dimension_numbers = #tpu.dot_dimension_numbers<[1], [0], [0], [1], [0, 0, 1, 1], [], []>} : vector<8x8xf32>, vector<8x256xf32>, vector<8x256xf32> -> vector<8x256xf32>
    %53 = arith.addf %44, %52 : vector<8x256xf32>
    %c241_i32 = arith.constant 241 : i32
    %54 = tpu.dynamic_rotate %1 by %c241_i32 dim 1 : vector<8x256xf32>, i32 -> vector<8x256xf32>
    %c6 = arith.constant 6 : index
    %c0_38 = arith.constant 0 : index
    %c0_39 = arith.constant 0 : index
    %55 = vector.load %arg6[%c6, %c0_38, %c0_39] : memref<9x1x256xf32, #tpu.memory_space<vmem>>, vector<1x1x256xf32>
    %56 = vector.shape_cast %55 : vector<1x1x256xf32> to vector<1x256xf32>
    %57 = vector.broadcast %56 : vector<1x256xf32> to vector<8x256xf32>
    %58 = arith.mulf %54, %57 : vector<8x256xf32>
    %c6_40 = arith.constant 6 : index
    %c0_41 = arith.constant 0 : index
    %c0_42 = arith.constant 0 : index
    %59 = vector.load %arg2[%c6_40, %c0_41, %c0_42] : memref<36x8x8xf32, #tpu.memory_space<vmem>>, vector<1x8x8xf32>
    %60 = vector.shape_cast %59 : vector<1x8x8xf32> to vector<8x8xf32>
    %cst_43 = arith.constant dense<0.000000e+00> : vector<8x256xf32>
    %61 = tpu.matmul %60, %58, %cst_43 {dimension_numbers = #tpu.dot_dimension_numbers<[1], [0], [0], [1], [0, 0, 1, 1], [], []>} : vector<8x8xf32>, vector<8x256xf32>, vector<8x256xf32> -> vector<8x256xf32>
    %62 = arith.addf %53, %61 : vector<8x256xf32>
    %c240_i32 = arith.constant 240 : i32
    %63 = tpu.dynamic_rotate %1 by %c240_i32 dim 1 : vector<8x256xf32>, i32 -> vector<8x256xf32>
    %c7 = arith.constant 7 : index
    %c0_44 = arith.constant 0 : index
    %c0_45 = arith.constant 0 : index
    %64 = vector.load %arg6[%c7, %c0_44, %c0_45] : memref<9x1x256xf32, #tpu.memory_space<vmem>>, vector<1x1x256xf32>
    %65 = vector.shape_cast %64 : vector<1x1x256xf32> to vector<1x256xf32>
    %66 = vector.broadcast %65 : vector<1x256xf32> to vector<8x256xf32>
    %67 = arith.mulf %63, %66 : vector<8x256xf32>
    %c7_46 = arith.constant 7 : index
    %c0_47 = arith.constant 0 : index
    %c0_48 = arith.constant 0 : index
    %68 = vector.load %arg2[%c7_46, %c0_47, %c0_48] : memref<36x8x8xf32, #tpu.memory_space<vmem>>, vector<1x8x8xf32>
    %69 = vector.shape_cast %68 : vector<1x8x8xf32> to vector<8x8xf32>
    %cst_49 = arith.constant dense<0.000000e+00> : vector<8x256xf32>
    %70 = tpu.matmul %69, %67, %cst_49 {dimension_numbers = #tpu.dot_dimension_numbers<[1], [0], [0], [1], [0, 0, 1, 1], [], []>} : vector<8x8xf32>, vector<8x256xf32>, vector<8x256xf32> -> vector<8x256xf32>
    %71 = arith.addf %62, %70 : vector<8x256xf32>
    %c239_i32 = arith.constant 239 : i32
    %72 = tpu.dynamic_rotate %1 by %c239_i32 dim 1 : vector<8x256xf32>, i32 -> vector<8x256xf32>
    %c8 = arith.constant 8 : index
    %c0_50 = arith.constant 0 : index
    %c0_51 = arith.constant 0 : index
    %73 = vector.load %arg6[%c8, %c0_50, %c0_51] : memref<9x1x256xf32, #tpu.memory_space<vmem>>, vector<1x1x256xf32>
    %74 = vector.shape_cast %73 : vector<1x1x256xf32> to vector<1x256xf32>
    %75 = vector.broadcast %74 : vector<1x256xf32> to vector<8x256xf32>
    %76 = arith.mulf %72, %75 : vector<8x256xf32>
    %c8_52 = arith.constant 8 : index
    %c0_53 = arith.constant 0 : index
    %c0_54 = arith.constant 0 : index
    %77 = vector.load %arg2[%c8_52, %c0_53, %c0_54] : memref<36x8x8xf32, #tpu.memory_space<vmem>>, vector<1x8x8xf32>
    %78 = vector.shape_cast %77 : vector<1x8x8xf32> to vector<8x8xf32>
    %cst_55 = arith.constant dense<0.000000e+00> : vector<8x256xf32>
    %79 = tpu.matmul %78, %76, %cst_55 {dimension_numbers = #tpu.dot_dimension_numbers<[1], [0], [0], [1], [0, 0, 1, 1], [], []>} : vector<8x8xf32>, vector<8x256xf32>, vector<8x256xf32> -> vector<8x256xf32>
    %80 = arith.addf %71, %79 : vector<8x256xf32>
    %c0_56 = arith.constant 0 : index
    %c0_57 = arith.constant 0 : index
    %c0_58 = arith.constant 0 : index
    %81 = vector.load %arg3[%c0_56, %c0_57, %c0_58] : memref<4x8x1xf32, #tpu.memory_space<vmem>>, vector<1x8x1xf32>
    %82 = vector.shape_cast %81 : vector<1x8x1xf32> to vector<8x1xf32>
    %83 = vector.broadcast %82 : vector<8x1xf32> to vector<8x256xf32>
    %84 = arith.addf %80, %83 : vector<8x256xf32>
    %cst_59 = arith.constant 0.000000e+00 : f32
    %85 = vector.broadcast %cst_59 : f32 to vector<8x256xf32>
    %86 = arith.maximumf %84, %85 : vector<8x256xf32>
    %c0_60 = arith.constant 0 : index
    %c0_61 = arith.constant 0 : index
    %c0_62 = arith.constant 0 : index
    %87 = vector.load %arg4[%c0_60, %c0_61, %c0_62] : memref<5x8x1xf32, #tpu.memory_space<vmem>>, vector<1x8x1xf32>
    %88 = vector.shape_cast %87 : vector<1x8x1xf32> to vector<8x1xf32>
    %89 = vector.broadcast %88 : vector<8x1xf32> to vector<8x256xf32>
    %90 = arith.mulf %89, %86 : vector<8x256xf32>
    %c0_63 = arith.constant 0 : index
    %c0_64 = arith.constant 0 : index
    %c0_65 = arith.constant 0 : index
    %91 = vector.load %arg5[%c0_63, %c0_64, %c0_65] : memref<5x8x1xf32, #tpu.memory_space<vmem>>, vector<1x8x1xf32>
    %92 = vector.shape_cast %91 : vector<1x8x1xf32> to vector<8x1xf32>
    %93 = vector.broadcast %92 : vector<8x1xf32> to vector<8x256xf32>
    %94 = arith.addf %90, %93 : vector<8x256xf32>
    %c17_i32_66 = arith.constant 17 : i32
    %95 = tpu.dynamic_rotate %94 by %c17_i32_66 dim 1 : vector<8x256xf32>, i32 -> vector<8x256xf32>
    %c0_67 = arith.constant 0 : index
    %c0_68 = arith.constant 0 : index
    %c0_69 = arith.constant 0 : index
    %96 = vector.load %arg6[%c0_67, %c0_68, %c0_69] : memref<9x1x256xf32, #tpu.memory_space<vmem>>, vector<1x1x256xf32>
    %97 = vector.shape_cast %96 : vector<1x1x256xf32> to vector<1x256xf32>
    %98 = vector.broadcast %97 : vector<1x256xf32> to vector<8x256xf32>
    %99 = arith.mulf %95, %98 : vector<8x256xf32>
    %c9 = arith.constant 9 : index
    %c0_70 = arith.constant 0 : index
    %c0_71 = arith.constant 0 : index
    %100 = vector.load %arg2[%c9, %c0_70, %c0_71] : memref<36x8x8xf32, #tpu.memory_space<vmem>>, vector<1x8x8xf32>
    %101 = vector.shape_cast %100 : vector<1x8x8xf32> to vector<8x8xf32>
    %cst_72 = arith.constant dense<0.000000e+00> : vector<8x256xf32>
    %102 = tpu.matmul %101, %99, %cst_72 {dimension_numbers = #tpu.dot_dimension_numbers<[1], [0], [0], [1], [0, 0, 1, 1], [], []>} : vector<8x8xf32>, vector<8x256xf32>, vector<8x256xf32> -> vector<8x256xf32>
    %c16_i32_73 = arith.constant 16 : i32
    %103 = tpu.dynamic_rotate %94 by %c16_i32_73 dim 1 : vector<8x256xf32>, i32 -> vector<8x256xf32>
    %c1_74 = arith.constant 1 : index
    %c0_75 = arith.constant 0 : index
    %c0_76 = arith.constant 0 : index
    %104 = vector.load %arg6[%c1_74, %c0_75, %c0_76] : memref<9x1x256xf32, #tpu.memory_space<vmem>>, vector<1x1x256xf32>
    %105 = vector.shape_cast %104 : vector<1x1x256xf32> to vector<1x256xf32>
    %106 = vector.broadcast %105 : vector<1x256xf32> to vector<8x256xf32>
    %107 = arith.mulf %103, %106 : vector<8x256xf32>
    %c10 = arith.constant 10 : index
    %c0_77 = arith.constant 0 : index
    %c0_78 = arith.constant 0 : index
    %108 = vector.load %arg2[%c10, %c0_77, %c0_78] : memref<36x8x8xf32, #tpu.memory_space<vmem>>, vector<1x8x8xf32>
    %109 = vector.shape_cast %108 : vector<1x8x8xf32> to vector<8x8xf32>
    %cst_79 = arith.constant dense<0.000000e+00> : vector<8x256xf32>
    %110 = tpu.matmul %109, %107, %cst_79 {dimension_numbers = #tpu.dot_dimension_numbers<[1], [0], [0], [1], [0, 0, 1, 1], [], []>} : vector<8x8xf32>, vector<8x256xf32>, vector<8x256xf32> -> vector<8x256xf32>
    %111 = arith.addf %102, %110 : vector<8x256xf32>
    %c15_i32_80 = arith.constant 15 : i32
    %112 = tpu.dynamic_rotate %94 by %c15_i32_80 dim 1 : vector<8x256xf32>, i32 -> vector<8x256xf32>
    %c2_81 = arith.constant 2 : index
    %c0_82 = arith.constant 0 : index
    %c0_83 = arith.constant 0 : index
    %113 = vector.load %arg6[%c2_81, %c0_82, %c0_83] : memref<9x1x256xf32, #tpu.memory_space<vmem>>, vector<1x1x256xf32>
    %114 = vector.shape_cast %113 : vector<1x1x256xf32> to vector<1x256xf32>
    %115 = vector.broadcast %114 : vector<1x256xf32> to vector<8x256xf32>
    %116 = arith.mulf %112, %115 : vector<8x256xf32>
    %c11 = arith.constant 11 : index
    %c0_84 = arith.constant 0 : index
    %c0_85 = arith.constant 0 : index
    %117 = vector.load %arg2[%c11, %c0_84, %c0_85] : memref<36x8x8xf32, #tpu.memory_space<vmem>>, vector<1x8x8xf32>
    %118 = vector.shape_cast %117 : vector<1x8x8xf32> to vector<8x8xf32>
    %cst_86 = arith.constant dense<0.000000e+00> : vector<8x256xf32>
    %119 = tpu.matmul %118, %116, %cst_86 {dimension_numbers = #tpu.dot_dimension_numbers<[1], [0], [0], [1], [0, 0, 1, 1], [], []>} : vector<8x8xf32>, vector<8x256xf32>, vector<8x256xf32> -> vector<8x256xf32>
    %120 = arith.addf %111, %119 : vector<8x256xf32>
    %c1_i32_87 = arith.constant 1 : i32
    %121 = tpu.dynamic_rotate %94 by %c1_i32_87 dim 1 : vector<8x256xf32>, i32 -> vector<8x256xf32>
    %c3_88 = arith.constant 3 : index
    %c0_89 = arith.constant 0 : index
    %c0_90 = arith.constant 0 : index
    %122 = vector.load %arg6[%c3_88, %c0_89, %c0_90] : memref<9x1x256xf32, #tpu.memory_space<vmem>>, vector<1x1x256xf32>
    %123 = vector.shape_cast %122 : vector<1x1x256xf32> to vector<1x256xf32>
    %124 = vector.broadcast %123 : vector<1x256xf32> to vector<8x256xf32>
    %125 = arith.mulf %121, %124 : vector<8x256xf32>
    %c12 = arith.constant 12 : index
    %c0_91 = arith.constant 0 : index
    %c0_92 = arith.constant 0 : index
    %126 = vector.load %arg2[%c12, %c0_91, %c0_92] : memref<36x8x8xf32, #tpu.memory_space<vmem>>, vector<1x8x8xf32>
    %127 = vector.shape_cast %126 : vector<1x8x8xf32> to vector<8x8xf32>
    %cst_93 = arith.constant dense<0.000000e+00> : vector<8x256xf32>
    %128 = tpu.matmul %127, %125, %cst_93 {dimension_numbers = #tpu.dot_dimension_numbers<[1], [0], [0], [1], [0, 0, 1, 1], [], []>} : vector<8x8xf32>, vector<8x256xf32>, vector<8x256xf32> -> vector<8x256xf32>
    %129 = arith.addf %120, %128 : vector<8x256xf32>
    %c4_94 = arith.constant 4 : index
    %c0_95 = arith.constant 0 : index
    %c0_96 = arith.constant 0 : index
    %130 = vector.load %arg6[%c4_94, %c0_95, %c0_96] : memref<9x1x256xf32, #tpu.memory_space<vmem>>, vector<1x1x256xf32>
    %131 = vector.shape_cast %130 : vector<1x1x256xf32> to vector<1x256xf32>
    %132 = vector.broadcast %131 : vector<1x256xf32> to vector<8x256xf32>
    %133 = arith.mulf %94, %132 : vector<8x256xf32>
    %c13 = arith.constant 13 : index
    %c0_97 = arith.constant 0 : index
    %c0_98 = arith.constant 0 : index
    %134 = vector.load %arg2[%c13, %c0_97, %c0_98] : memref<36x8x8xf32, #tpu.memory_space<vmem>>, vector<1x8x8xf32>
    %135 = vector.shape_cast %134 : vector<1x8x8xf32> to vector<8x8xf32>
    %cst_99 = arith.constant dense<0.000000e+00> : vector<8x256xf32>
    %136 = tpu.matmul %135, %133, %cst_99 {dimension_numbers = #tpu.dot_dimension_numbers<[1], [0], [0], [1], [0, 0, 1, 1], [], []>} : vector<8x8xf32>, vector<8x256xf32>, vector<8x256xf32> -> vector<8x256xf32>
    %137 = arith.addf %129, %136 : vector<8x256xf32>
    %c255_i32_100 = arith.constant 255 : i32
    %138 = tpu.dynamic_rotate %94 by %c255_i32_100 dim 1 : vector<8x256xf32>, i32 -> vector<8x256xf32>
    %c5_101 = arith.constant 5 : index
    %c0_102 = arith.constant 0 : index
    %c0_103 = arith.constant 0 : index
    %139 = vector.load %arg6[%c5_101, %c0_102, %c0_103] : memref<9x1x256xf32, #tpu.memory_space<vmem>>, vector<1x1x256xf32>
    %140 = vector.shape_cast %139 : vector<1x1x256xf32> to vector<1x256xf32>
    %141 = vector.broadcast %140 : vector<1x256xf32> to vector<8x256xf32>
    %142 = arith.mulf %138, %141 : vector<8x256xf32>
    %c14 = arith.constant 14 : index
    %c0_104 = arith.constant 0 : index
    %c0_105 = arith.constant 0 : index
    %143 = vector.load %arg2[%c14, %c0_104, %c0_105] : memref<36x8x8xf32, #tpu.memory_space<vmem>>, vector<1x8x8xf32>
    %144 = vector.shape_cast %143 : vector<1x8x8xf32> to vector<8x8xf32>
    %cst_106 = arith.constant dense<0.000000e+00> : vector<8x256xf32>
    %145 = tpu.matmul %144, %142, %cst_106 {dimension_numbers = #tpu.dot_dimension_numbers<[1], [0], [0], [1], [0, 0, 1, 1], [], []>} : vector<8x8xf32>, vector<8x256xf32>, vector<8x256xf32> -> vector<8x256xf32>
    %146 = arith.addf %137, %145 : vector<8x256xf32>
    %c241_i32_107 = arith.constant 241 : i32
    %147 = tpu.dynamic_rotate %94 by %c241_i32_107 dim 1 : vector<8x256xf32>, i32 -> vector<8x256xf32>
    %c6_108 = arith.constant 6 : index
    %c0_109 = arith.constant 0 : index
    %c0_110 = arith.constant 0 : index
    %148 = vector.load %arg6[%c6_108, %c0_109, %c0_110] : memref<9x1x256xf32, #tpu.memory_space<vmem>>, vector<1x1x256xf32>
    %149 = vector.shape_cast %148 : vector<1x1x256xf32> to vector<1x256xf32>
    %150 = vector.broadcast %149 : vector<1x256xf32> to vector<8x256xf32>
    %151 = arith.mulf %147, %150 : vector<8x256xf32>
    %c15 = arith.constant 15 : index
    %c0_111 = arith.constant 0 : index
    %c0_112 = arith.constant 0 : index
    %152 = vector.load %arg2[%c15, %c0_111, %c0_112] : memref<36x8x8xf32, #tpu.memory_space<vmem>>, vector<1x8x8xf32>
    %153 = vector.shape_cast %152 : vector<1x8x8xf32> to vector<8x8xf32>
    %cst_113 = arith.constant dense<0.000000e+00> : vector<8x256xf32>
    %154 = tpu.matmul %153, %151, %cst_113 {dimension_numbers = #tpu.dot_dimension_numbers<[1], [0], [0], [1], [0, 0, 1, 1], [], []>} : vector<8x8xf32>, vector<8x256xf32>, vector<8x256xf32> -> vector<8x256xf32>
    %155 = arith.addf %146, %154 : vector<8x256xf32>
    %c240_i32_114 = arith.constant 240 : i32
    %156 = tpu.dynamic_rotate %94 by %c240_i32_114 dim 1 : vector<8x256xf32>, i32 -> vector<8x256xf32>
    %c7_115 = arith.constant 7 : index
    %c0_116 = arith.constant 0 : index
    %c0_117 = arith.constant 0 : index
    %157 = vector.load %arg6[%c7_115, %c0_116, %c0_117] : memref<9x1x256xf32, #tpu.memory_space<vmem>>, vector<1x1x256xf32>
    %158 = vector.shape_cast %157 : vector<1x1x256xf32> to vector<1x256xf32>
    %159 = vector.broadcast %158 : vector<1x256xf32> to vector<8x256xf32>
    %160 = arith.mulf %156, %159 : vector<8x256xf32>
    %c16 = arith.constant 16 : index
    %c0_118 = arith.constant 0 : index
    %c0_119 = arith.constant 0 : index
    %161 = vector.load %arg2[%c16, %c0_118, %c0_119] : memref<36x8x8xf32, #tpu.memory_space<vmem>>, vector<1x8x8xf32>
    %162 = vector.shape_cast %161 : vector<1x8x8xf32> to vector<8x8xf32>
    %cst_120 = arith.constant dense<0.000000e+00> : vector<8x256xf32>
    %163 = tpu.matmul %162, %160, %cst_120 {dimension_numbers = #tpu.dot_dimension_numbers<[1], [0], [0], [1], [0, 0, 1, 1], [], []>} : vector<8x8xf32>, vector<8x256xf32>, vector<8x256xf32> -> vector<8x256xf32>
    %164 = arith.addf %155, %163 : vector<8x256xf32>
    %c239_i32_121 = arith.constant 239 : i32
    %165 = tpu.dynamic_rotate %94 by %c239_i32_121 dim 1 : vector<8x256xf32>, i32 -> vector<8x256xf32>
    %c8_122 = arith.constant 8 : index
    %c0_123 = arith.constant 0 : index
    %c0_124 = arith.constant 0 : index
    %166 = vector.load %arg6[%c8_122, %c0_123, %c0_124] : memref<9x1x256xf32, #tpu.memory_space<vmem>>, vector<1x1x256xf32>
    %167 = vector.shape_cast %166 : vector<1x1x256xf32> to vector<1x256xf32>
    %168 = vector.broadcast %167 : vector<1x256xf32> to vector<8x256xf32>
    %169 = arith.mulf %165, %168 : vector<8x256xf32>
    %c17 = arith.constant 17 : index
    %c0_125 = arith.constant 0 : index
    %c0_126 = arith.constant 0 : index
    %170 = vector.load %arg2[%c17, %c0_125, %c0_126] : memref<36x8x8xf32, #tpu.memory_space<vmem>>, vector<1x8x8xf32>
    %171 = vector.shape_cast %170 : vector<1x8x8xf32> to vector<8x8xf32>
    %cst_127 = arith.constant dense<0.000000e+00> : vector<8x256xf32>
    %172 = tpu.matmul %171, %169, %cst_127 {dimension_numbers = #tpu.dot_dimension_numbers<[1], [0], [0], [1], [0, 0, 1, 1], [], []>} : vector<8x8xf32>, vector<8x256xf32>, vector<8x256xf32> -> vector<8x256xf32>
    %173 = arith.addf %164, %172 : vector<8x256xf32>
    %c1_128 = arith.constant 1 : index
    %c0_129 = arith.constant 0 : index
    %c0_130 = arith.constant 0 : index
    %174 = vector.load %arg3[%c1_128, %c0_129, %c0_130] : memref<4x8x1xf32, #tpu.memory_space<vmem>>, vector<1x8x1xf32>
    %175 = vector.shape_cast %174 : vector<1x8x1xf32> to vector<8x1xf32>
    %176 = vector.broadcast %175 : vector<8x1xf32> to vector<8x256xf32>
    %177 = arith.addf %173, %176 : vector<8x256xf32>
    %cst_131 = arith.constant 0.000000e+00 : f32
    %178 = vector.broadcast %cst_131 : f32 to vector<8x256xf32>
    %179 = arith.maximumf %177, %178 : vector<8x256xf32>
    %c1_132 = arith.constant 1 : index
    %c0_133 = arith.constant 0 : index
    %c0_134 = arith.constant 0 : index
    %180 = vector.load %arg4[%c1_132, %c0_133, %c0_134] : memref<5x8x1xf32, #tpu.memory_space<vmem>>, vector<1x8x1xf32>
    %181 = vector.shape_cast %180 : vector<1x8x1xf32> to vector<8x1xf32>
    %182 = vector.broadcast %181 : vector<8x1xf32> to vector<8x256xf32>
    %183 = arith.mulf %182, %179 : vector<8x256xf32>
    %c1_135 = arith.constant 1 : index
    %c0_136 = arith.constant 0 : index
    %c0_137 = arith.constant 0 : index
    %184 = vector.load %arg5[%c1_135, %c0_136, %c0_137] : memref<5x8x1xf32, #tpu.memory_space<vmem>>, vector<1x8x1xf32>
    %185 = vector.shape_cast %184 : vector<1x8x1xf32> to vector<8x1xf32>
    %186 = vector.broadcast %185 : vector<8x1xf32> to vector<8x256xf32>
    %187 = arith.addf %183, %186 : vector<8x256xf32>
    %188 = arith.addf %187, %1 : vector<8x256xf32>
    %c17_i32_138 = arith.constant 17 : i32
    %189 = tpu.dynamic_rotate %188 by %c17_i32_138 dim 1 : vector<8x256xf32>, i32 -> vector<8x256xf32>
    %c0_139 = arith.constant 0 : index
    %c0_140 = arith.constant 0 : index
    %c0_141 = arith.constant 0 : index
    %190 = vector.load %arg6[%c0_139, %c0_140, %c0_141] : memref<9x1x256xf32, #tpu.memory_space<vmem>>, vector<1x1x256xf32>
    %191 = vector.shape_cast %190 : vector<1x1x256xf32> to vector<1x256xf32>
    %192 = vector.broadcast %191 : vector<1x256xf32> to vector<8x256xf32>
    %193 = arith.mulf %189, %192 : vector<8x256xf32>
    %c0_142 = arith.constant 0 : index
    %c0_143 = arith.constant 0 : index
    %c0_144 = arith.constant 0 : index
    %194 = vector.load %arg2[%c0_142, %c0_143, %c0_144] : memref<36x8x8xf32, #tpu.memory_space<vmem>>, vector<1x8x8xf32>
    %195 = vector.shape_cast %194 : vector<1x8x8xf32> to vector<8x8xf32>
    %cst_145 = arith.constant dense<0.000000e+00> : vector<8x256xf32>
    %196 = tpu.matmul %195, %193, %cst_145 {dimension_numbers = #tpu.dot_dimension_numbers<[1], [0], [0], [1], [0, 0, 1, 1], [], []>} : vector<8x8xf32>, vector<8x256xf32>, vector<8x256xf32> -> vector<8x256xf32>
    %c16_i32_146 = arith.constant 16 : i32
    %197 = tpu.dynamic_rotate %188 by %c16_i32_146 dim 1 : vector<8x256xf32>, i32 -> vector<8x256xf32>
    %c1_147 = arith.constant 1 : index
    %c0_148 = arith.constant 0 : index
    %c0_149 = arith.constant 0 : index
    %198 = vector.load %arg6[%c1_147, %c0_148, %c0_149] : memref<9x1x256xf32, #tpu.memory_space<vmem>>, vector<1x1x256xf32>
    %199 = vector.shape_cast %198 : vector<1x1x256xf32> to vector<1x256xf32>
    %200 = vector.broadcast %199 : vector<1x256xf32> to vector<8x256xf32>
    %201 = arith.mulf %197, %200 : vector<8x256xf32>
    %c1_150 = arith.constant 1 : index
    %c0_151 = arith.constant 0 : index
    %c0_152 = arith.constant 0 : index
    %202 = vector.load %arg2[%c1_150, %c0_151, %c0_152] : memref<36x8x8xf32, #tpu.memory_space<vmem>>, vector<1x8x8xf32>
    %203 = vector.shape_cast %202 : vector<1x8x8xf32> to vector<8x8xf32>
    %cst_153 = arith.constant dense<0.000000e+00> : vector<8x256xf32>
    %204 = tpu.matmul %203, %201, %cst_153 {dimension_numbers = #tpu.dot_dimension_numbers<[1], [0], [0], [1], [0, 0, 1, 1], [], []>} : vector<8x8xf32>, vector<8x256xf32>, vector<8x256xf32> -> vector<8x256xf32>
    %205 = arith.addf %196, %204 : vector<8x256xf32>
    %c15_i32_154 = arith.constant 15 : i32
    %206 = tpu.dynamic_rotate %188 by %c15_i32_154 dim 1 : vector<8x256xf32>, i32 -> vector<8x256xf32>
    %c2_155 = arith.constant 2 : index
    %c0_156 = arith.constant 0 : index
    %c0_157 = arith.constant 0 : index
    %207 = vector.load %arg6[%c2_155, %c0_156, %c0_157] : memref<9x1x256xf32, #tpu.memory_space<vmem>>, vector<1x1x256xf32>
    %208 = vector.shape_cast %207 : vector<1x1x256xf32> to vector<1x256xf32>
    %209 = vector.broadcast %208 : vector<1x256xf32> to vector<8x256xf32>
    %210 = arith.mulf %206, %209 : vector<8x256xf32>
    %c2_158 = arith.constant 2 : index
    %c0_159 = arith.constant 0 : index
    %c0_160 = arith.constant 0 : index
    %211 = vector.load %arg2[%c2_158, %c0_159, %c0_160] : memref<36x8x8xf32, #tpu.memory_space<vmem>>, vector<1x8x8xf32>
    %212 = vector.shape_cast %211 : vector<1x8x8xf32> to vector<8x8xf32>
    %cst_161 = arith.constant dense<0.000000e+00> : vector<8x256xf32>
    %213 = tpu.matmul %212, %210, %cst_161 {dimension_numbers = #tpu.dot_dimension_numbers<[1], [0], [0], [1], [0, 0, 1, 1], [], []>} : vector<8x8xf32>, vector<8x256xf32>, vector<8x256xf32> -> vector<8x256xf32>
    %214 = arith.addf %205, %213 : vector<8x256xf32>
    %c1_i32_162 = arith.constant 1 : i32
    %215 = tpu.dynamic_rotate %188 by %c1_i32_162 dim 1 : vector<8x256xf32>, i32 -> vector<8x256xf32>
    %c3_163 = arith.constant 3 : index
    %c0_164 = arith.constant 0 : index
    %c0_165 = arith.constant 0 : index
    %216 = vector.load %arg6[%c3_163, %c0_164, %c0_165] : memref<9x1x256xf32, #tpu.memory_space<vmem>>, vector<1x1x256xf32>
    %217 = vector.shape_cast %216 : vector<1x1x256xf32> to vector<1x256xf32>
    %218 = vector.broadcast %217 : vector<1x256xf32> to vector<8x256xf32>
    %219 = arith.mulf %215, %218 : vector<8x256xf32>
    %c3_166 = arith.constant 3 : index
    %c0_167 = arith.constant 0 : index
    %c0_168 = arith.constant 0 : index
    %220 = vector.load %arg2[%c3_166, %c0_167, %c0_168] : memref<36x8x8xf32, #tpu.memory_space<vmem>>, vector<1x8x8xf32>
    %221 = vector.shape_cast %220 : vector<1x8x8xf32> to vector<8x8xf32>
    %cst_169 = arith.constant dense<0.000000e+00> : vector<8x256xf32>
    %222 = tpu.matmul %221, %219, %cst_169 {dimension_numbers = #tpu.dot_dimension_numbers<[1], [0], [0], [1], [0, 0, 1, 1], [], []>} : vector<8x8xf32>, vector<8x256xf32>, vector<8x256xf32> -> vector<8x256xf32>
    %223 = arith.addf %214, %222 : vector<8x256xf32>
    %c4_170 = arith.constant 4 : index
    %c0_171 = arith.constant 0 : index
    %c0_172 = arith.constant 0 : index
    %224 = vector.load %arg6[%c4_170, %c0_171, %c0_172] : memref<9x1x256xf32, #tpu.memory_space<vmem>>, vector<1x1x256xf32>
    %225 = vector.shape_cast %224 : vector<1x1x256xf32> to vector<1x256xf32>
    %226 = vector.broadcast %225 : vector<1x256xf32> to vector<8x256xf32>
    %227 = arith.mulf %188, %226 : vector<8x256xf32>
    %c4_173 = arith.constant 4 : index
    %c0_174 = arith.constant 0 : index
    %c0_175 = arith.constant 0 : index
    %228 = vector.load %arg2[%c4_173, %c0_174, %c0_175] : memref<36x8x8xf32, #tpu.memory_space<vmem>>, vector<1x8x8xf32>
    %229 = vector.shape_cast %228 : vector<1x8x8xf32> to vector<8x8xf32>
    %cst_176 = arith.constant dense<0.000000e+00> : vector<8x256xf32>
    %230 = tpu.matmul %229, %227, %cst_176 {dimension_numbers = #tpu.dot_dimension_numbers<[1], [0], [0], [1], [0, 0, 1, 1], [], []>} : vector<8x8xf32>, vector<8x256xf32>, vector<8x256xf32> -> vector<8x256xf32>
    %231 = arith.addf %223, %230 : vector<8x256xf32>
    %c255_i32_177 = arith.constant 255 : i32
    %232 = tpu.dynamic_rotate %188 by %c255_i32_177 dim 1 : vector<8x256xf32>, i32 -> vector<8x256xf32>
    %c5_178 = arith.constant 5 : index
    %c0_179 = arith.constant 0 : index
    %c0_180 = arith.constant 0 : index
    %233 = vector.load %arg6[%c5_178, %c0_179, %c0_180] : memref<9x1x256xf32, #tpu.memory_space<vmem>>, vector<1x1x256xf32>
    %234 = vector.shape_cast %233 : vector<1x1x256xf32> to vector<1x256xf32>
    %235 = vector.broadcast %234 : vector<1x256xf32> to vector<8x256xf32>
    %236 = arith.mulf %232, %235 : vector<8x256xf32>
    %c5_181 = arith.constant 5 : index
    %c0_182 = arith.constant 0 : index
    %c0_183 = arith.constant 0 : index
    %237 = vector.load %arg2[%c5_181, %c0_182, %c0_183] : memref<36x8x8xf32, #tpu.memory_space<vmem>>, vector<1x8x8xf32>
    %238 = vector.shape_cast %237 : vector<1x8x8xf32> to vector<8x8xf32>
    %cst_184 = arith.constant dense<0.000000e+00> : vector<8x256xf32>
    %239 = tpu.matmul %238, %236, %cst_184 {dimension_numbers = #tpu.dot_dimension_numbers<[1], [0], [0], [1], [0, 0, 1, 1], [], []>} : vector<8x8xf32>, vector<8x256xf32>, vector<8x256xf32> -> vector<8x256xf32>
    %240 = arith.addf %231, %239 : vector<8x256xf32>
    %c241_i32_185 = arith.constant 241 : i32
    %241 = tpu.dynamic_rotate %188 by %c241_i32_185 dim 1 : vector<8x256xf32>, i32 -> vector<8x256xf32>
    %c6_186 = arith.constant 6 : index
    %c0_187 = arith.constant 0 : index
    %c0_188 = arith.constant 0 : index
    %242 = vector.load %arg6[%c6_186, %c0_187, %c0_188] : memref<9x1x256xf32, #tpu.memory_space<vmem>>, vector<1x1x256xf32>
    %243 = vector.shape_cast %242 : vector<1x1x256xf32> to vector<1x256xf32>
    %244 = vector.broadcast %243 : vector<1x256xf32> to vector<8x256xf32>
    %245 = arith.mulf %241, %244 : vector<8x256xf32>
    %c6_189 = arith.constant 6 : index
    %c0_190 = arith.constant 0 : index
    %c0_191 = arith.constant 0 : index
    %246 = vector.load %arg2[%c6_189, %c0_190, %c0_191] : memref<36x8x8xf32, #tpu.memory_space<vmem>>, vector<1x8x8xf32>
    %247 = vector.shape_cast %246 : vector<1x8x8xf32> to vector<8x8xf32>
    %cst_192 = arith.constant dense<0.000000e+00> : vector<8x256xf32>
    %248 = tpu.matmul %247, %245, %cst_192 {dimension_numbers = #tpu.dot_dimension_numbers<[1], [0], [0], [1], [0, 0, 1, 1], [], []>} : vector<8x8xf32>, vector<8x256xf32>, vector<8x256xf32> -> vector<8x256xf32>
    %249 = arith.addf %240, %248 : vector<8x256xf32>
    %c240_i32_193 = arith.constant 240 : i32
    %250 = tpu.dynamic_rotate %188 by %c240_i32_193 dim 1 : vector<8x256xf32>, i32 -> vector<8x256xf32>
    %c7_194 = arith.constant 7 : index
    %c0_195 = arith.constant 0 : index
    %c0_196 = arith.constant 0 : index
    %251 = vector.load %arg6[%c7_194, %c0_195, %c0_196] : memref<9x1x256xf32, #tpu.memory_space<vmem>>, vector<1x1x256xf32>
    %252 = vector.shape_cast %251 : vector<1x1x256xf32> to vector<1x256xf32>
    %253 = vector.broadcast %252 : vector<1x256xf32> to vector<8x256xf32>
    %254 = arith.mulf %250, %253 : vector<8x256xf32>
    %c7_197 = arith.constant 7 : index
    %c0_198 = arith.constant 0 : index
    %c0_199 = arith.constant 0 : index
    %255 = vector.load %arg2[%c7_197, %c0_198, %c0_199] : memref<36x8x8xf32, #tpu.memory_space<vmem>>, vector<1x8x8xf32>
    %256 = vector.shape_cast %255 : vector<1x8x8xf32> to vector<8x8xf32>
    %cst_200 = arith.constant dense<0.000000e+00> : vector<8x256xf32>
    %257 = tpu.matmul %256, %254, %cst_200 {dimension_numbers = #tpu.dot_dimension_numbers<[1], [0], [0], [1], [0, 0, 1, 1], [], []>} : vector<8x8xf32>, vector<8x256xf32>, vector<8x256xf32> -> vector<8x256xf32>
    %258 = arith.addf %249, %257 : vector<8x256xf32>
    %c239_i32_201 = arith.constant 239 : i32
    %259 = tpu.dynamic_rotate %188 by %c239_i32_201 dim 1 : vector<8x256xf32>, i32 -> vector<8x256xf32>
    %c8_202 = arith.constant 8 : index
    %c0_203 = arith.constant 0 : index
    %c0_204 = arith.constant 0 : index
    %260 = vector.load %arg6[%c8_202, %c0_203, %c0_204] : memref<9x1x256xf32, #tpu.memory_space<vmem>>, vector<1x1x256xf32>
    %261 = vector.shape_cast %260 : vector<1x1x256xf32> to vector<1x256xf32>
    %262 = vector.broadcast %261 : vector<1x256xf32> to vector<8x256xf32>
    %263 = arith.mulf %259, %262 : vector<8x256xf32>
    %c8_205 = arith.constant 8 : index
    %c0_206 = arith.constant 0 : index
    %c0_207 = arith.constant 0 : index
    %264 = vector.load %arg2[%c8_205, %c0_206, %c0_207] : memref<36x8x8xf32, #tpu.memory_space<vmem>>, vector<1x8x8xf32>
    %265 = vector.shape_cast %264 : vector<1x8x8xf32> to vector<8x8xf32>
    %cst_208 = arith.constant dense<0.000000e+00> : vector<8x256xf32>
    %266 = tpu.matmul %265, %263, %cst_208 {dimension_numbers = #tpu.dot_dimension_numbers<[1], [0], [0], [1], [0, 0, 1, 1], [], []>} : vector<8x8xf32>, vector<8x256xf32>, vector<8x256xf32> -> vector<8x256xf32>
    %267 = arith.addf %258, %266 : vector<8x256xf32>
    %c0_209 = arith.constant 0 : index
    %c0_210 = arith.constant 0 : index
    %c0_211 = arith.constant 0 : index
    %268 = vector.load %arg3[%c0_209, %c0_210, %c0_211] : memref<4x8x1xf32, #tpu.memory_space<vmem>>, vector<1x8x1xf32>
    %269 = vector.shape_cast %268 : vector<1x8x1xf32> to vector<8x1xf32>
    %270 = vector.broadcast %269 : vector<8x1xf32> to vector<8x256xf32>
    %271 = arith.addf %267, %270 : vector<8x256xf32>
    %cst_212 = arith.constant 0.000000e+00 : f32
    %272 = vector.broadcast %cst_212 : f32 to vector<8x256xf32>
    %273 = arith.maximumf %271, %272 : vector<8x256xf32>
    %c0_213 = arith.constant 0 : index
    %c0_214 = arith.constant 0 : index
    %c0_215 = arith.constant 0 : index
    %274 = vector.load %arg4[%c0_213, %c0_214, %c0_215] : memref<5x8x1xf32, #tpu.memory_space<vmem>>, vector<1x8x1xf32>
    %275 = vector.shape_cast %274 : vector<1x8x1xf32> to vector<8x1xf32>
    %276 = vector.broadcast %275 : vector<8x1xf32> to vector<8x256xf32>
    %277 = arith.mulf %276, %273 : vector<8x256xf32>
    %c0_216 = arith.constant 0 : index
    %c0_217 = arith.constant 0 : index
    %c0_218 = arith.constant 0 : index
    %278 = vector.load %arg5[%c0_216, %c0_217, %c0_218] : memref<5x8x1xf32, #tpu.memory_space<vmem>>, vector<1x8x1xf32>
    %279 = vector.shape_cast %278 : vector<1x8x1xf32> to vector<8x1xf32>
    %280 = vector.broadcast %279 : vector<8x1xf32> to vector<8x256xf32>
    %281 = arith.addf %277, %280 : vector<8x256xf32>
    %c17_i32_219 = arith.constant 17 : i32
    %282 = tpu.dynamic_rotate %281 by %c17_i32_219 dim 1 : vector<8x256xf32>, i32 -> vector<8x256xf32>
    %c0_220 = arith.constant 0 : index
    %c0_221 = arith.constant 0 : index
    %c0_222 = arith.constant 0 : index
    %283 = vector.load %arg6[%c0_220, %c0_221, %c0_222] : memref<9x1x256xf32, #tpu.memory_space<vmem>>, vector<1x1x256xf32>
    %284 = vector.shape_cast %283 : vector<1x1x256xf32> to vector<1x256xf32>
    %285 = vector.broadcast %284 : vector<1x256xf32> to vector<8x256xf32>
    %286 = arith.mulf %282, %285 : vector<8x256xf32>
    %c9_223 = arith.constant 9 : index
    %c0_224 = arith.constant 0 : index
    %c0_225 = arith.constant 0 : index
    %287 = vector.load %arg2[%c9_223, %c0_224, %c0_225] : memref<36x8x8xf32, #tpu.memory_space<vmem>>, vector<1x8x8xf32>
    %288 = vector.shape_cast %287 : vector<1x8x8xf32> to vector<8x8xf32>
    %cst_226 = arith.constant dense<0.000000e+00> : vector<8x256xf32>
    %289 = tpu.matmul %288, %286, %cst_226 {dimension_numbers = #tpu.dot_dimension_numbers<[1], [0], [0], [1], [0, 0, 1, 1], [], []>} : vector<8x8xf32>, vector<8x256xf32>, vector<8x256xf32> -> vector<8x256xf32>
    %c16_i32_227 = arith.constant 16 : i32
    %290 = tpu.dynamic_rotate %281 by %c16_i32_227 dim 1 : vector<8x256xf32>, i32 -> vector<8x256xf32>
    %c1_228 = arith.constant 1 : index
    %c0_229 = arith.constant 0 : index
    %c0_230 = arith.constant 0 : index
    %291 = vector.load %arg6[%c1_228, %c0_229, %c0_230] : memref<9x1x256xf32, #tpu.memory_space<vmem>>, vector<1x1x256xf32>
    %292 = vector.shape_cast %291 : vector<1x1x256xf32> to vector<1x256xf32>
    %293 = vector.broadcast %292 : vector<1x256xf32> to vector<8x256xf32>
    %294 = arith.mulf %290, %293 : vector<8x256xf32>
    %c10_231 = arith.constant 10 : index
    %c0_232 = arith.constant 0 : index
    %c0_233 = arith.constant 0 : index
    %295 = vector.load %arg2[%c10_231, %c0_232, %c0_233] : memref<36x8x8xf32, #tpu.memory_space<vmem>>, vector<1x8x8xf32>
    %296 = vector.shape_cast %295 : vector<1x8x8xf32> to vector<8x8xf32>
    %cst_234 = arith.constant dense<0.000000e+00> : vector<8x256xf32>
    %297 = tpu.matmul %296, %294, %cst_234 {dimension_numbers = #tpu.dot_dimension_numbers<[1], [0], [0], [1], [0, 0, 1, 1], [], []>} : vector<8x8xf32>, vector<8x256xf32>, vector<8x256xf32> -> vector<8x256xf32>
    %298 = arith.addf %289, %297 : vector<8x256xf32>
    %c15_i32_235 = arith.constant 15 : i32
    %299 = tpu.dynamic_rotate %281 by %c15_i32_235 dim 1 : vector<8x256xf32>, i32 -> vector<8x256xf32>
    %c2_236 = arith.constant 2 : index
    %c0_237 = arith.constant 0 : index
    %c0_238 = arith.constant 0 : index
    %300 = vector.load %arg6[%c2_236, %c0_237, %c0_238] : memref<9x1x256xf32, #tpu.memory_space<vmem>>, vector<1x1x256xf32>
    %301 = vector.shape_cast %300 : vector<1x1x256xf32> to vector<1x256xf32>
    %302 = vector.broadcast %301 : vector<1x256xf32> to vector<8x256xf32>
    %303 = arith.mulf %299, %302 : vector<8x256xf32>
    %c11_239 = arith.constant 11 : index
    %c0_240 = arith.constant 0 : index
    %c0_241 = arith.constant 0 : index
    %304 = vector.load %arg2[%c11_239, %c0_240, %c0_241] : memref<36x8x8xf32, #tpu.memory_space<vmem>>, vector<1x8x8xf32>
    %305 = vector.shape_cast %304 : vector<1x8x8xf32> to vector<8x8xf32>
    %cst_242 = arith.constant dense<0.000000e+00> : vector<8x256xf32>
    %306 = tpu.matmul %305, %303, %cst_242 {dimension_numbers = #tpu.dot_dimension_numbers<[1], [0], [0], [1], [0, 0, 1, 1], [], []>} : vector<8x8xf32>, vector<8x256xf32>, vector<8x256xf32> -> vector<8x256xf32>
    %307 = arith.addf %298, %306 : vector<8x256xf32>
    %c1_i32_243 = arith.constant 1 : i32
    %308 = tpu.dynamic_rotate %281 by %c1_i32_243 dim 1 : vector<8x256xf32>, i32 -> vector<8x256xf32>
    %c3_244 = arith.constant 3 : index
    %c0_245 = arith.constant 0 : index
    %c0_246 = arith.constant 0 : index
    %309 = vector.load %arg6[%c3_244, %c0_245, %c0_246] : memref<9x1x256xf32, #tpu.memory_space<vmem>>, vector<1x1x256xf32>
    %310 = vector.shape_cast %309 : vector<1x1x256xf32> to vector<1x256xf32>
    %311 = vector.broadcast %310 : vector<1x256xf32> to vector<8x256xf32>
    %312 = arith.mulf %308, %311 : vector<8x256xf32>
    %c12_247 = arith.constant 12 : index
    %c0_248 = arith.constant 0 : index
    %c0_249 = arith.constant 0 : index
    %313 = vector.load %arg2[%c12_247, %c0_248, %c0_249] : memref<36x8x8xf32, #tpu.memory_space<vmem>>, vector<1x8x8xf32>
    %314 = vector.shape_cast %313 : vector<1x8x8xf32> to vector<8x8xf32>
    %cst_250 = arith.constant dense<0.000000e+00> : vector<8x256xf32>
    %315 = tpu.matmul %314, %312, %cst_250 {dimension_numbers = #tpu.dot_dimension_numbers<[1], [0], [0], [1], [0, 0, 1, 1], [], []>} : vector<8x8xf32>, vector<8x256xf32>, vector<8x256xf32> -> vector<8x256xf32>
    %316 = arith.addf %307, %315 : vector<8x256xf32>
    %c4_251 = arith.constant 4 : index
    %c0_252 = arith.constant 0 : index
    %c0_253 = arith.constant 0 : index
    %317 = vector.load %arg6[%c4_251, %c0_252, %c0_253] : memref<9x1x256xf32, #tpu.memory_space<vmem>>, vector<1x1x256xf32>
    %318 = vector.shape_cast %317 : vector<1x1x256xf32> to vector<1x256xf32>
    %319 = vector.broadcast %318 : vector<1x256xf32> to vector<8x256xf32>
    %320 = arith.mulf %281, %319 : vector<8x256xf32>
    %c13_254 = arith.constant 13 : index
    %c0_255 = arith.constant 0 : index
    %c0_256 = arith.constant 0 : index
    %321 = vector.load %arg2[%c13_254, %c0_255, %c0_256] : memref<36x8x8xf32, #tpu.memory_space<vmem>>, vector<1x8x8xf32>
    %322 = vector.shape_cast %321 : vector<1x8x8xf32> to vector<8x8xf32>
    %cst_257 = arith.constant dense<0.000000e+00> : vector<8x256xf32>
    %323 = tpu.matmul %322, %320, %cst_257 {dimension_numbers = #tpu.dot_dimension_numbers<[1], [0], [0], [1], [0, 0, 1, 1], [], []>} : vector<8x8xf32>, vector<8x256xf32>, vector<8x256xf32> -> vector<8x256xf32>
    %324 = arith.addf %316, %323 : vector<8x256xf32>
    %c255_i32_258 = arith.constant 255 : i32
    %325 = tpu.dynamic_rotate %281 by %c255_i32_258 dim 1 : vector<8x256xf32>, i32 -> vector<8x256xf32>
    %c5_259 = arith.constant 5 : index
    %c0_260 = arith.constant 0 : index
    %c0_261 = arith.constant 0 : index
    %326 = vector.load %arg6[%c5_259, %c0_260, %c0_261] : memref<9x1x256xf32, #tpu.memory_space<vmem>>, vector<1x1x256xf32>
    %327 = vector.shape_cast %326 : vector<1x1x256xf32> to vector<1x256xf32>
    %328 = vector.broadcast %327 : vector<1x256xf32> to vector<8x256xf32>
    %329 = arith.mulf %325, %328 : vector<8x256xf32>
    %c14_262 = arith.constant 14 : index
    %c0_263 = arith.constant 0 : index
    %c0_264 = arith.constant 0 : index
    %330 = vector.load %arg2[%c14_262, %c0_263, %c0_264] : memref<36x8x8xf32, #tpu.memory_space<vmem>>, vector<1x8x8xf32>
    %331 = vector.shape_cast %330 : vector<1x8x8xf32> to vector<8x8xf32>
    %cst_265 = arith.constant dense<0.000000e+00> : vector<8x256xf32>
    %332 = tpu.matmul %331, %329, %cst_265 {dimension_numbers = #tpu.dot_dimension_numbers<[1], [0], [0], [1], [0, 0, 1, 1], [], []>} : vector<8x8xf32>, vector<8x256xf32>, vector<8x256xf32> -> vector<8x256xf32>
    %333 = arith.addf %324, %332 : vector<8x256xf32>
    %c241_i32_266 = arith.constant 241 : i32
    %334 = tpu.dynamic_rotate %281 by %c241_i32_266 dim 1 : vector<8x256xf32>, i32 -> vector<8x256xf32>
    %c6_267 = arith.constant 6 : index
    %c0_268 = arith.constant 0 : index
    %c0_269 = arith.constant 0 : index
    %335 = vector.load %arg6[%c6_267, %c0_268, %c0_269] : memref<9x1x256xf32, #tpu.memory_space<vmem>>, vector<1x1x256xf32>
    %336 = vector.shape_cast %335 : vector<1x1x256xf32> to vector<1x256xf32>
    %337 = vector.broadcast %336 : vector<1x256xf32> to vector<8x256xf32>
    %338 = arith.mulf %334, %337 : vector<8x256xf32>
    %c15_270 = arith.constant 15 : index
    %c0_271 = arith.constant 0 : index
    %c0_272 = arith.constant 0 : index
    %339 = vector.load %arg2[%c15_270, %c0_271, %c0_272] : memref<36x8x8xf32, #tpu.memory_space<vmem>>, vector<1x8x8xf32>
    %340 = vector.shape_cast %339 : vector<1x8x8xf32> to vector<8x8xf32>
    %cst_273 = arith.constant dense<0.000000e+00> : vector<8x256xf32>
    %341 = tpu.matmul %340, %338, %cst_273 {dimension_numbers = #tpu.dot_dimension_numbers<[1], [0], [0], [1], [0, 0, 1, 1], [], []>} : vector<8x8xf32>, vector<8x256xf32>, vector<8x256xf32> -> vector<8x256xf32>
    %342 = arith.addf %333, %341 : vector<8x256xf32>
    %c240_i32_274 = arith.constant 240 : i32
    %343 = tpu.dynamic_rotate %281 by %c240_i32_274 dim 1 : vector<8x256xf32>, i32 -> vector<8x256xf32>
    %c7_275 = arith.constant 7 : index
    %c0_276 = arith.constant 0 : index
    %c0_277 = arith.constant 0 : index
    %344 = vector.load %arg6[%c7_275, %c0_276, %c0_277] : memref<9x1x256xf32, #tpu.memory_space<vmem>>, vector<1x1x256xf32>
    %345 = vector.shape_cast %344 : vector<1x1x256xf32> to vector<1x256xf32>
    %346 = vector.broadcast %345 : vector<1x256xf32> to vector<8x256xf32>
    %347 = arith.mulf %343, %346 : vector<8x256xf32>
    %c16_278 = arith.constant 16 : index
    %c0_279 = arith.constant 0 : index
    %c0_280 = arith.constant 0 : index
    %348 = vector.load %arg2[%c16_278, %c0_279, %c0_280] : memref<36x8x8xf32, #tpu.memory_space<vmem>>, vector<1x8x8xf32>
    %349 = vector.shape_cast %348 : vector<1x8x8xf32> to vector<8x8xf32>
    %cst_281 = arith.constant dense<0.000000e+00> : vector<8x256xf32>
    %350 = tpu.matmul %349, %347, %cst_281 {dimension_numbers = #tpu.dot_dimension_numbers<[1], [0], [0], [1], [0, 0, 1, 1], [], []>} : vector<8x8xf32>, vector<8x256xf32>, vector<8x256xf32> -> vector<8x256xf32>
    %351 = arith.addf %342, %350 : vector<8x256xf32>
    %c239_i32_282 = arith.constant 239 : i32
    %352 = tpu.dynamic_rotate %281 by %c239_i32_282 dim 1 : vector<8x256xf32>, i32 -> vector<8x256xf32>
    %c8_283 = arith.constant 8 : index
    %c0_284 = arith.constant 0 : index
    %c0_285 = arith.constant 0 : index
    %353 = vector.load %arg6[%c8_283, %c0_284, %c0_285] : memref<9x1x256xf32, #tpu.memory_space<vmem>>, vector<1x1x256xf32>
    %354 = vector.shape_cast %353 : vector<1x1x256xf32> to vector<1x256xf32>
    %355 = vector.broadcast %354 : vector<1x256xf32> to vector<8x256xf32>
    %356 = arith.mulf %352, %355 : vector<8x256xf32>
    %c17_286 = arith.constant 17 : index
    %c0_287 = arith.constant 0 : index
    %c0_288 = arith.constant 0 : index
    %357 = vector.load %arg2[%c17_286, %c0_287, %c0_288] : memref<36x8x8xf32, #tpu.memory_space<vmem>>, vector<1x8x8xf32>
    %358 = vector.shape_cast %357 : vector<1x8x8xf32> to vector<8x8xf32>
    %cst_289 = arith.constant dense<0.000000e+00> : vector<8x256xf32>
    %359 = tpu.matmul %358, %356, %cst_289 {dimension_numbers = #tpu.dot_dimension_numbers<[1], [0], [0], [1], [0, 0, 1, 1], [], []>} : vector<8x8xf32>, vector<8x256xf32>, vector<8x256xf32> -> vector<8x256xf32>
    %360 = arith.addf %351, %359 : vector<8x256xf32>
    %c1_290 = arith.constant 1 : index
    %c0_291 = arith.constant 0 : index
    %c0_292 = arith.constant 0 : index
    %361 = vector.load %arg3[%c1_290, %c0_291, %c0_292] : memref<4x8x1xf32, #tpu.memory_space<vmem>>, vector<1x8x1xf32>
    %362 = vector.shape_cast %361 : vector<1x8x1xf32> to vector<8x1xf32>
    %363 = vector.broadcast %362 : vector<8x1xf32> to vector<8x256xf32>
    %364 = arith.addf %360, %363 : vector<8x256xf32>
    %cst_293 = arith.constant 0.000000e+00 : f32
    %365 = vector.broadcast %cst_293 : f32 to vector<8x256xf32>
    %366 = arith.maximumf %364, %365 : vector<8x256xf32>
    %c1_294 = arith.constant 1 : index
    %c0_295 = arith.constant 0 : index
    %c0_296 = arith.constant 0 : index
    %367 = vector.load %arg4[%c1_294, %c0_295, %c0_296] : memref<5x8x1xf32, #tpu.memory_space<vmem>>, vector<1x8x1xf32>
    %368 = vector.shape_cast %367 : vector<1x8x1xf32> to vector<8x1xf32>
    %369 = vector.broadcast %368 : vector<8x1xf32> to vector<8x256xf32>
    %370 = arith.mulf %369, %366 : vector<8x256xf32>
    %c1_297 = arith.constant 1 : index
    %c0_298 = arith.constant 0 : index
    %c0_299 = arith.constant 0 : index
    %371 = vector.load %arg5[%c1_297, %c0_298, %c0_299] : memref<5x8x1xf32, #tpu.memory_space<vmem>>, vector<1x8x1xf32>
    %372 = vector.shape_cast %371 : vector<1x8x1xf32> to vector<8x1xf32>
    %373 = vector.broadcast %372 : vector<8x1xf32> to vector<8x256xf32>
    %374 = arith.addf %370, %373 : vector<8x256xf32>
    %375 = arith.addf %374, %1 : vector<8x256xf32>
    %c17_i32_300 = arith.constant 17 : i32
    %376 = tpu.dynamic_rotate %375 by %c17_i32_300 dim 1 : vector<8x256xf32>, i32 -> vector<8x256xf32>
    %c0_301 = arith.constant 0 : index
    %c0_302 = arith.constant 0 : index
    %c0_303 = arith.constant 0 : index
    %377 = vector.load %arg6[%c0_301, %c0_302, %c0_303] : memref<9x1x256xf32, #tpu.memory_space<vmem>>, vector<1x1x256xf32>
    %378 = vector.shape_cast %377 : vector<1x1x256xf32> to vector<1x256xf32>
    %379 = vector.broadcast %378 : vector<1x256xf32> to vector<8x256xf32>
    %380 = arith.mulf %376, %379 : vector<8x256xf32>
    %c18 = arith.constant 18 : index
    %c0_304 = arith.constant 0 : index
    %c0_305 = arith.constant 0 : index
    %381 = vector.load %arg2[%c18, %c0_304, %c0_305] : memref<36x8x8xf32, #tpu.memory_space<vmem>>, vector<1x8x8xf32>
    %382 = vector.shape_cast %381 : vector<1x8x8xf32> to vector<8x8xf32>
    %cst_306 = arith.constant dense<0.000000e+00> : vector<8x256xf32>
    %383 = tpu.matmul %382, %380, %cst_306 {dimension_numbers = #tpu.dot_dimension_numbers<[1], [0], [0], [1], [0, 0, 1, 1], [], []>} : vector<8x8xf32>, vector<8x256xf32>, vector<8x256xf32> -> vector<8x256xf32>
    %c16_i32_307 = arith.constant 16 : i32
    %384 = tpu.dynamic_rotate %375 by %c16_i32_307 dim 1 : vector<8x256xf32>, i32 -> vector<8x256xf32>
    %c1_308 = arith.constant 1 : index
    %c0_309 = arith.constant 0 : index
    %c0_310 = arith.constant 0 : index
    %385 = vector.load %arg6[%c1_308, %c0_309, %c0_310] : memref<9x1x256xf32, #tpu.memory_space<vmem>>, vector<1x1x256xf32>
    %386 = vector.shape_cast %385 : vector<1x1x256xf32> to vector<1x256xf32>
    %387 = vector.broadcast %386 : vector<1x256xf32> to vector<8x256xf32>
    %388 = arith.mulf %384, %387 : vector<8x256xf32>
    %c19 = arith.constant 19 : index
    %c0_311 = arith.constant 0 : index
    %c0_312 = arith.constant 0 : index
    %389 = vector.load %arg2[%c19, %c0_311, %c0_312] : memref<36x8x8xf32, #tpu.memory_space<vmem>>, vector<1x8x8xf32>
    %390 = vector.shape_cast %389 : vector<1x8x8xf32> to vector<8x8xf32>
    %cst_313 = arith.constant dense<0.000000e+00> : vector<8x256xf32>
    %391 = tpu.matmul %390, %388, %cst_313 {dimension_numbers = #tpu.dot_dimension_numbers<[1], [0], [0], [1], [0, 0, 1, 1], [], []>} : vector<8x8xf32>, vector<8x256xf32>, vector<8x256xf32> -> vector<8x256xf32>
    %392 = arith.addf %383, %391 : vector<8x256xf32>
    %c15_i32_314 = arith.constant 15 : i32
    %393 = tpu.dynamic_rotate %375 by %c15_i32_314 dim 1 : vector<8x256xf32>, i32 -> vector<8x256xf32>
    %c2_315 = arith.constant 2 : index
    %c0_316 = arith.constant 0 : index
    %c0_317 = arith.constant 0 : index
    %394 = vector.load %arg6[%c2_315, %c0_316, %c0_317] : memref<9x1x256xf32, #tpu.memory_space<vmem>>, vector<1x1x256xf32>
    %395 = vector.shape_cast %394 : vector<1x1x256xf32> to vector<1x256xf32>
    %396 = vector.broadcast %395 : vector<1x256xf32> to vector<8x256xf32>
    %397 = arith.mulf %393, %396 : vector<8x256xf32>
    %c20 = arith.constant 20 : index
    %c0_318 = arith.constant 0 : index
    %c0_319 = arith.constant 0 : index
    %398 = vector.load %arg2[%c20, %c0_318, %c0_319] : memref<36x8x8xf32, #tpu.memory_space<vmem>>, vector<1x8x8xf32>
    %399 = vector.shape_cast %398 : vector<1x8x8xf32> to vector<8x8xf32>
    %cst_320 = arith.constant dense<0.000000e+00> : vector<8x256xf32>
    %400 = tpu.matmul %399, %397, %cst_320 {dimension_numbers = #tpu.dot_dimension_numbers<[1], [0], [0], [1], [0, 0, 1, 1], [], []>} : vector<8x8xf32>, vector<8x256xf32>, vector<8x256xf32> -> vector<8x256xf32>
    %401 = arith.addf %392, %400 : vector<8x256xf32>
    %c1_i32_321 = arith.constant 1 : i32
    %402 = tpu.dynamic_rotate %375 by %c1_i32_321 dim 1 : vector<8x256xf32>, i32 -> vector<8x256xf32>
    %c3_322 = arith.constant 3 : index
    %c0_323 = arith.constant 0 : index
    %c0_324 = arith.constant 0 : index
    %403 = vector.load %arg6[%c3_322, %c0_323, %c0_324] : memref<9x1x256xf32, #tpu.memory_space<vmem>>, vector<1x1x256xf32>
    %404 = vector.shape_cast %403 : vector<1x1x256xf32> to vector<1x256xf32>
    %405 = vector.broadcast %404 : vector<1x256xf32> to vector<8x256xf32>
    %406 = arith.mulf %402, %405 : vector<8x256xf32>
    %c21 = arith.constant 21 : index
    %c0_325 = arith.constant 0 : index
    %c0_326 = arith.constant 0 : index
    %407 = vector.load %arg2[%c21, %c0_325, %c0_326] : memref<36x8x8xf32, #tpu.memory_space<vmem>>, vector<1x8x8xf32>
    %408 = vector.shape_cast %407 : vector<1x8x8xf32> to vector<8x8xf32>
    %cst_327 = arith.constant dense<0.000000e+00> : vector<8x256xf32>
    %409 = tpu.matmul %408, %406, %cst_327 {dimension_numbers = #tpu.dot_dimension_numbers<[1], [0], [0], [1], [0, 0, 1, 1], [], []>} : vector<8x8xf32>, vector<8x256xf32>, vector<8x256xf32> -> vector<8x256xf32>
    %410 = arith.addf %401, %409 : vector<8x256xf32>
    %c4_328 = arith.constant 4 : index
    %c0_329 = arith.constant 0 : index
    %c0_330 = arith.constant 0 : index
    %411 = vector.load %arg6[%c4_328, %c0_329, %c0_330] : memref<9x1x256xf32, #tpu.memory_space<vmem>>, vector<1x1x256xf32>
    %412 = vector.shape_cast %411 : vector<1x1x256xf32> to vector<1x256xf32>
    %413 = vector.broadcast %412 : vector<1x256xf32> to vector<8x256xf32>
    %414 = arith.mulf %375, %413 : vector<8x256xf32>
    %c22 = arith.constant 22 : index
    %c0_331 = arith.constant 0 : index
    %c0_332 = arith.constant 0 : index
    %415 = vector.load %arg2[%c22, %c0_331, %c0_332] : memref<36x8x8xf32, #tpu.memory_space<vmem>>, vector<1x8x8xf32>
    %416 = vector.shape_cast %415 : vector<1x8x8xf32> to vector<8x8xf32>
    %cst_333 = arith.constant dense<0.000000e+00> : vector<8x256xf32>
    %417 = tpu.matmul %416, %414, %cst_333 {dimension_numbers = #tpu.dot_dimension_numbers<[1], [0], [0], [1], [0, 0, 1, 1], [], []>} : vector<8x8xf32>, vector<8x256xf32>, vector<8x256xf32> -> vector<8x256xf32>
    %418 = arith.addf %410, %417 : vector<8x256xf32>
    %c255_i32_334 = arith.constant 255 : i32
    %419 = tpu.dynamic_rotate %375 by %c255_i32_334 dim 1 : vector<8x256xf32>, i32 -> vector<8x256xf32>
    %c5_335 = arith.constant 5 : index
    %c0_336 = arith.constant 0 : index
    %c0_337 = arith.constant 0 : index
    %420 = vector.load %arg6[%c5_335, %c0_336, %c0_337] : memref<9x1x256xf32, #tpu.memory_space<vmem>>, vector<1x1x256xf32>
    %421 = vector.shape_cast %420 : vector<1x1x256xf32> to vector<1x256xf32>
    %422 = vector.broadcast %421 : vector<1x256xf32> to vector<8x256xf32>
    %423 = arith.mulf %419, %422 : vector<8x256xf32>
    %c23 = arith.constant 23 : index
    %c0_338 = arith.constant 0 : index
    %c0_339 = arith.constant 0 : index
    %424 = vector.load %arg2[%c23, %c0_338, %c0_339] : memref<36x8x8xf32, #tpu.memory_space<vmem>>, vector<1x8x8xf32>
    %425 = vector.shape_cast %424 : vector<1x8x8xf32> to vector<8x8xf32>
    %cst_340 = arith.constant dense<0.000000e+00> : vector<8x256xf32>
    %426 = tpu.matmul %425, %423, %cst_340 {dimension_numbers = #tpu.dot_dimension_numbers<[1], [0], [0], [1], [0, 0, 1, 1], [], []>} : vector<8x8xf32>, vector<8x256xf32>, vector<8x256xf32> -> vector<8x256xf32>
    %427 = arith.addf %418, %426 : vector<8x256xf32>
    %c241_i32_341 = arith.constant 241 : i32
    %428 = tpu.dynamic_rotate %375 by %c241_i32_341 dim 1 : vector<8x256xf32>, i32 -> vector<8x256xf32>
    %c6_342 = arith.constant 6 : index
    %c0_343 = arith.constant 0 : index
    %c0_344 = arith.constant 0 : index
    %429 = vector.load %arg6[%c6_342, %c0_343, %c0_344] : memref<9x1x256xf32, #tpu.memory_space<vmem>>, vector<1x1x256xf32>
    %430 = vector.shape_cast %429 : vector<1x1x256xf32> to vector<1x256xf32>
    %431 = vector.broadcast %430 : vector<1x256xf32> to vector<8x256xf32>
    %432 = arith.mulf %428, %431 : vector<8x256xf32>
    %c24 = arith.constant 24 : index
    %c0_345 = arith.constant 0 : index
    %c0_346 = arith.constant 0 : index
    %433 = vector.load %arg2[%c24, %c0_345, %c0_346] : memref<36x8x8xf32, #tpu.memory_space<vmem>>, vector<1x8x8xf32>
    %434 = vector.shape_cast %433 : vector<1x8x8xf32> to vector<8x8xf32>
    %cst_347 = arith.constant dense<0.000000e+00> : vector<8x256xf32>
    %435 = tpu.matmul %434, %432, %cst_347 {dimension_numbers = #tpu.dot_dimension_numbers<[1], [0], [0], [1], [0, 0, 1, 1], [], []>} : vector<8x8xf32>, vector<8x256xf32>, vector<8x256xf32> -> vector<8x256xf32>
    %436 = arith.addf %427, %435 : vector<8x256xf32>
    %c240_i32_348 = arith.constant 240 : i32
    %437 = tpu.dynamic_rotate %375 by %c240_i32_348 dim 1 : vector<8x256xf32>, i32 -> vector<8x256xf32>
    %c7_349 = arith.constant 7 : index
    %c0_350 = arith.constant 0 : index
    %c0_351 = arith.constant 0 : index
    %438 = vector.load %arg6[%c7_349, %c0_350, %c0_351] : memref<9x1x256xf32, #tpu.memory_space<vmem>>, vector<1x1x256xf32>
    %439 = vector.shape_cast %438 : vector<1x1x256xf32> to vector<1x256xf32>
    %440 = vector.broadcast %439 : vector<1x256xf32> to vector<8x256xf32>
    %441 = arith.mulf %437, %440 : vector<8x256xf32>
    %c25 = arith.constant 25 : index
    %c0_352 = arith.constant 0 : index
    %c0_353 = arith.constant 0 : index
    %442 = vector.load %arg2[%c25, %c0_352, %c0_353] : memref<36x8x8xf32, #tpu.memory_space<vmem>>, vector<1x8x8xf32>
    %443 = vector.shape_cast %442 : vector<1x8x8xf32> to vector<8x8xf32>
    %cst_354 = arith.constant dense<0.000000e+00> : vector<8x256xf32>
    %444 = tpu.matmul %443, %441, %cst_354 {dimension_numbers = #tpu.dot_dimension_numbers<[1], [0], [0], [1], [0, 0, 1, 1], [], []>} : vector<8x8xf32>, vector<8x256xf32>, vector<8x256xf32> -> vector<8x256xf32>
    %445 = arith.addf %436, %444 : vector<8x256xf32>
    %c239_i32_355 = arith.constant 239 : i32
    %446 = tpu.dynamic_rotate %375 by %c239_i32_355 dim 1 : vector<8x256xf32>, i32 -> vector<8x256xf32>
    %c8_356 = arith.constant 8 : index
    %c0_357 = arith.constant 0 : index
    %c0_358 = arith.constant 0 : index
    %447 = vector.load %arg6[%c8_356, %c0_357, %c0_358] : memref<9x1x256xf32, #tpu.memory_space<vmem>>, vector<1x1x256xf32>
    %448 = vector.shape_cast %447 : vector<1x1x256xf32> to vector<1x256xf32>
    %449 = vector.broadcast %448 : vector<1x256xf32> to vector<8x256xf32>
    %450 = arith.mulf %446, %449 : vector<8x256xf32>
    %c26 = arith.constant 26 : index
    %c0_359 = arith.constant 0 : index
    %c0_360 = arith.constant 0 : index
    %451 = vector.load %arg2[%c26, %c0_359, %c0_360] : memref<36x8x8xf32, #tpu.memory_space<vmem>>, vector<1x8x8xf32>
    %452 = vector.shape_cast %451 : vector<1x8x8xf32> to vector<8x8xf32>
    %cst_361 = arith.constant dense<0.000000e+00> : vector<8x256xf32>
    %453 = tpu.matmul %452, %450, %cst_361 {dimension_numbers = #tpu.dot_dimension_numbers<[1], [0], [0], [1], [0, 0, 1, 1], [], []>} : vector<8x8xf32>, vector<8x256xf32>, vector<8x256xf32> -> vector<8x256xf32>
    %454 = arith.addf %445, %453 : vector<8x256xf32>
    %c2_362 = arith.constant 2 : index
    %c0_363 = arith.constant 0 : index
    %c0_364 = arith.constant 0 : index
    %455 = vector.load %arg3[%c2_362, %c0_363, %c0_364] : memref<4x8x1xf32, #tpu.memory_space<vmem>>, vector<1x8x1xf32>
    %456 = vector.shape_cast %455 : vector<1x8x1xf32> to vector<8x1xf32>
    %457 = vector.broadcast %456 : vector<8x1xf32> to vector<8x256xf32>
    %458 = arith.addf %454, %457 : vector<8x256xf32>
    %cst_365 = arith.constant 0.000000e+00 : f32
    %459 = vector.broadcast %cst_365 : f32 to vector<8x256xf32>
    %460 = arith.maximumf %458, %459 : vector<8x256xf32>
    %c2_366 = arith.constant 2 : index
    %c0_367 = arith.constant 0 : index
    %c0_368 = arith.constant 0 : index
    %461 = vector.load %arg4[%c2_366, %c0_367, %c0_368] : memref<5x8x1xf32, #tpu.memory_space<vmem>>, vector<1x8x1xf32>
    %462 = vector.shape_cast %461 : vector<1x8x1xf32> to vector<8x1xf32>
    %463 = vector.broadcast %462 : vector<8x1xf32> to vector<8x256xf32>
    %464 = arith.mulf %463, %460 : vector<8x256xf32>
    %c2_369 = arith.constant 2 : index
    %c0_370 = arith.constant 0 : index
    %c0_371 = arith.constant 0 : index
    %465 = vector.load %arg5[%c2_369, %c0_370, %c0_371] : memref<5x8x1xf32, #tpu.memory_space<vmem>>, vector<1x8x1xf32>
    %466 = vector.shape_cast %465 : vector<1x8x1xf32> to vector<8x1xf32>
    %467 = vector.broadcast %466 : vector<8x1xf32> to vector<8x256xf32>
    %468 = arith.addf %464, %467 : vector<8x256xf32>
    %c17_i32_372 = arith.constant 17 : i32
    %469 = tpu.dynamic_rotate %468 by %c17_i32_372 dim 1 : vector<8x256xf32>, i32 -> vector<8x256xf32>
    %c0_373 = arith.constant 0 : index
    %c0_374 = arith.constant 0 : index
    %c0_375 = arith.constant 0 : index
    %470 = vector.load %arg6[%c0_373, %c0_374, %c0_375] : memref<9x1x256xf32, #tpu.memory_space<vmem>>, vector<1x1x256xf32>
    %471 = vector.shape_cast %470 : vector<1x1x256xf32> to vector<1x256xf32>
    %472 = vector.broadcast %471 : vector<1x256xf32> to vector<8x256xf32>
    %473 = arith.mulf %469, %472 : vector<8x256xf32>
    %c27 = arith.constant 27 : index
    %c0_376 = arith.constant 0 : index
    %c0_377 = arith.constant 0 : index
    %474 = vector.load %arg2[%c27, %c0_376, %c0_377] : memref<36x8x8xf32, #tpu.memory_space<vmem>>, vector<1x8x8xf32>
    %475 = vector.shape_cast %474 : vector<1x8x8xf32> to vector<8x8xf32>
    %cst_378 = arith.constant dense<0.000000e+00> : vector<8x256xf32>
    %476 = tpu.matmul %475, %473, %cst_378 {dimension_numbers = #tpu.dot_dimension_numbers<[1], [0], [0], [1], [0, 0, 1, 1], [], []>} : vector<8x8xf32>, vector<8x256xf32>, vector<8x256xf32> -> vector<8x256xf32>
    %c16_i32_379 = arith.constant 16 : i32
    %477 = tpu.dynamic_rotate %468 by %c16_i32_379 dim 1 : vector<8x256xf32>, i32 -> vector<8x256xf32>
    %c1_380 = arith.constant 1 : index
    %c0_381 = arith.constant 0 : index
    %c0_382 = arith.constant 0 : index
    %478 = vector.load %arg6[%c1_380, %c0_381, %c0_382] : memref<9x1x256xf32, #tpu.memory_space<vmem>>, vector<1x1x256xf32>
    %479 = vector.shape_cast %478 : vector<1x1x256xf32> to vector<1x256xf32>
    %480 = vector.broadcast %479 : vector<1x256xf32> to vector<8x256xf32>
    %481 = arith.mulf %477, %480 : vector<8x256xf32>
    %c28 = arith.constant 28 : index
    %c0_383 = arith.constant 0 : index
    %c0_384 = arith.constant 0 : index
    %482 = vector.load %arg2[%c28, %c0_383, %c0_384] : memref<36x8x8xf32, #tpu.memory_space<vmem>>, vector<1x8x8xf32>
    %483 = vector.shape_cast %482 : vector<1x8x8xf32> to vector<8x8xf32>
    %cst_385 = arith.constant dense<0.000000e+00> : vector<8x256xf32>
    %484 = tpu.matmul %483, %481, %cst_385 {dimension_numbers = #tpu.dot_dimension_numbers<[1], [0], [0], [1], [0, 0, 1, 1], [], []>} : vector<8x8xf32>, vector<8x256xf32>, vector<8x256xf32> -> vector<8x256xf32>
    %485 = arith.addf %476, %484 : vector<8x256xf32>
    %c15_i32_386 = arith.constant 15 : i32
    %486 = tpu.dynamic_rotate %468 by %c15_i32_386 dim 1 : vector<8x256xf32>, i32 -> vector<8x256xf32>
    %c2_387 = arith.constant 2 : index
    %c0_388 = arith.constant 0 : index
    %c0_389 = arith.constant 0 : index
    %487 = vector.load %arg6[%c2_387, %c0_388, %c0_389] : memref<9x1x256xf32, #tpu.memory_space<vmem>>, vector<1x1x256xf32>
    %488 = vector.shape_cast %487 : vector<1x1x256xf32> to vector<1x256xf32>
    %489 = vector.broadcast %488 : vector<1x256xf32> to vector<8x256xf32>
    %490 = arith.mulf %486, %489 : vector<8x256xf32>
    %c29 = arith.constant 29 : index
    %c0_390 = arith.constant 0 : index
    %c0_391 = arith.constant 0 : index
    %491 = vector.load %arg2[%c29, %c0_390, %c0_391] : memref<36x8x8xf32, #tpu.memory_space<vmem>>, vector<1x8x8xf32>
    %492 = vector.shape_cast %491 : vector<1x8x8xf32> to vector<8x8xf32>
    %cst_392 = arith.constant dense<0.000000e+00> : vector<8x256xf32>
    %493 = tpu.matmul %492, %490, %cst_392 {dimension_numbers = #tpu.dot_dimension_numbers<[1], [0], [0], [1], [0, 0, 1, 1], [], []>} : vector<8x8xf32>, vector<8x256xf32>, vector<8x256xf32> -> vector<8x256xf32>
    %494 = arith.addf %485, %493 : vector<8x256xf32>
    %c1_i32_393 = arith.constant 1 : i32
    %495 = tpu.dynamic_rotate %468 by %c1_i32_393 dim 1 : vector<8x256xf32>, i32 -> vector<8x256xf32>
    %c3_394 = arith.constant 3 : index
    %c0_395 = arith.constant 0 : index
    %c0_396 = arith.constant 0 : index
    %496 = vector.load %arg6[%c3_394, %c0_395, %c0_396] : memref<9x1x256xf32, #tpu.memory_space<vmem>>, vector<1x1x256xf32>
    %497 = vector.shape_cast %496 : vector<1x1x256xf32> to vector<1x256xf32>
    %498 = vector.broadcast %497 : vector<1x256xf32> to vector<8x256xf32>
    %499 = arith.mulf %495, %498 : vector<8x256xf32>
    %c30 = arith.constant 30 : index
    %c0_397 = arith.constant 0 : index
    %c0_398 = arith.constant 0 : index
    %500 = vector.load %arg2[%c30, %c0_397, %c0_398] : memref<36x8x8xf32, #tpu.memory_space<vmem>>, vector<1x8x8xf32>
    %501 = vector.shape_cast %500 : vector<1x8x8xf32> to vector<8x8xf32>
    %cst_399 = arith.constant dense<0.000000e+00> : vector<8x256xf32>
    %502 = tpu.matmul %501, %499, %cst_399 {dimension_numbers = #tpu.dot_dimension_numbers<[1], [0], [0], [1], [0, 0, 1, 1], [], []>} : vector<8x8xf32>, vector<8x256xf32>, vector<8x256xf32> -> vector<8x256xf32>
    %503 = arith.addf %494, %502 : vector<8x256xf32>
    %c4_400 = arith.constant 4 : index
    %c0_401 = arith.constant 0 : index
    %c0_402 = arith.constant 0 : index
    %504 = vector.load %arg6[%c4_400, %c0_401, %c0_402] : memref<9x1x256xf32, #tpu.memory_space<vmem>>, vector<1x1x256xf32>
    %505 = vector.shape_cast %504 : vector<1x1x256xf32> to vector<1x256xf32>
    %506 = vector.broadcast %505 : vector<1x256xf32> to vector<8x256xf32>
    %507 = arith.mulf %468, %506 : vector<8x256xf32>
    %c31 = arith.constant 31 : index
    %c0_403 = arith.constant 0 : index
    %c0_404 = arith.constant 0 : index
    %508 = vector.load %arg2[%c31, %c0_403, %c0_404] : memref<36x8x8xf32, #tpu.memory_space<vmem>>, vector<1x8x8xf32>
    %509 = vector.shape_cast %508 : vector<1x8x8xf32> to vector<8x8xf32>
    %cst_405 = arith.constant dense<0.000000e+00> : vector<8x256xf32>
    %510 = tpu.matmul %509, %507, %cst_405 {dimension_numbers = #tpu.dot_dimension_numbers<[1], [0], [0], [1], [0, 0, 1, 1], [], []>} : vector<8x8xf32>, vector<8x256xf32>, vector<8x256xf32> -> vector<8x256xf32>
    %511 = arith.addf %503, %510 : vector<8x256xf32>
    %c255_i32_406 = arith.constant 255 : i32
    %512 = tpu.dynamic_rotate %468 by %c255_i32_406 dim 1 : vector<8x256xf32>, i32 -> vector<8x256xf32>
    %c5_407 = arith.constant 5 : index
    %c0_408 = arith.constant 0 : index
    %c0_409 = arith.constant 0 : index
    %513 = vector.load %arg6[%c5_407, %c0_408, %c0_409] : memref<9x1x256xf32, #tpu.memory_space<vmem>>, vector<1x1x256xf32>
    %514 = vector.shape_cast %513 : vector<1x1x256xf32> to vector<1x256xf32>
    %515 = vector.broadcast %514 : vector<1x256xf32> to vector<8x256xf32>
    %516 = arith.mulf %512, %515 : vector<8x256xf32>
    %c32 = arith.constant 32 : index
    %c0_410 = arith.constant 0 : index
    %c0_411 = arith.constant 0 : index
    %517 = vector.load %arg2[%c32, %c0_410, %c0_411] : memref<36x8x8xf32, #tpu.memory_space<vmem>>, vector<1x8x8xf32>
    %518 = vector.shape_cast %517 : vector<1x8x8xf32> to vector<8x8xf32>
    %cst_412 = arith.constant dense<0.000000e+00> : vector<8x256xf32>
    %519 = tpu.matmul %518, %516, %cst_412 {dimension_numbers = #tpu.dot_dimension_numbers<[1], [0], [0], [1], [0, 0, 1, 1], [], []>} : vector<8x8xf32>, vector<8x256xf32>, vector<8x256xf32> -> vector<8x256xf32>
    %520 = arith.addf %511, %519 : vector<8x256xf32>
    %c241_i32_413 = arith.constant 241 : i32
    %521 = tpu.dynamic_rotate %468 by %c241_i32_413 dim 1 : vector<8x256xf32>, i32 -> vector<8x256xf32>
    %c6_414 = arith.constant 6 : index
    %c0_415 = arith.constant 0 : index
    %c0_416 = arith.constant 0 : index
    %522 = vector.load %arg6[%c6_414, %c0_415, %c0_416] : memref<9x1x256xf32, #tpu.memory_space<vmem>>, vector<1x1x256xf32>
    %523 = vector.shape_cast %522 : vector<1x1x256xf32> to vector<1x256xf32>
    %524 = vector.broadcast %523 : vector<1x256xf32> to vector<8x256xf32>
    %525 = arith.mulf %521, %524 : vector<8x256xf32>
    %c33 = arith.constant 33 : index
    %c0_417 = arith.constant 0 : index
    %c0_418 = arith.constant 0 : index
    %526 = vector.load %arg2[%c33, %c0_417, %c0_418] : memref<36x8x8xf32, #tpu.memory_space<vmem>>, vector<1x8x8xf32>
    %527 = vector.shape_cast %526 : vector<1x8x8xf32> to vector<8x8xf32>
    %cst_419 = arith.constant dense<0.000000e+00> : vector<8x256xf32>
    %528 = tpu.matmul %527, %525, %cst_419 {dimension_numbers = #tpu.dot_dimension_numbers<[1], [0], [0], [1], [0, 0, 1, 1], [], []>} : vector<8x8xf32>, vector<8x256xf32>, vector<8x256xf32> -> vector<8x256xf32>
    %529 = arith.addf %520, %528 : vector<8x256xf32>
    %c240_i32_420 = arith.constant 240 : i32
    %530 = tpu.dynamic_rotate %468 by %c240_i32_420 dim 1 : vector<8x256xf32>, i32 -> vector<8x256xf32>
    %c7_421 = arith.constant 7 : index
    %c0_422 = arith.constant 0 : index
    %c0_423 = arith.constant 0 : index
    %531 = vector.load %arg6[%c7_421, %c0_422, %c0_423] : memref<9x1x256xf32, #tpu.memory_space<vmem>>, vector<1x1x256xf32>
    %532 = vector.shape_cast %531 : vector<1x1x256xf32> to vector<1x256xf32>
    %533 = vector.broadcast %532 : vector<1x256xf32> to vector<8x256xf32>
    %534 = arith.mulf %530, %533 : vector<8x256xf32>
    %c34 = arith.constant 34 : index
    %c0_424 = arith.constant 0 : index
    %c0_425 = arith.constant 0 : index
    %535 = vector.load %arg2[%c34, %c0_424, %c0_425] : memref<36x8x8xf32, #tpu.memory_space<vmem>>, vector<1x8x8xf32>
    %536 = vector.shape_cast %535 : vector<1x8x8xf32> to vector<8x8xf32>
    %cst_426 = arith.constant dense<0.000000e+00> : vector<8x256xf32>
    %537 = tpu.matmul %536, %534, %cst_426 {dimension_numbers = #tpu.dot_dimension_numbers<[1], [0], [0], [1], [0, 0, 1, 1], [], []>} : vector<8x8xf32>, vector<8x256xf32>, vector<8x256xf32> -> vector<8x256xf32>
    %538 = arith.addf %529, %537 : vector<8x256xf32>
    %c239_i32_427 = arith.constant 239 : i32
    %539 = tpu.dynamic_rotate %468 by %c239_i32_427 dim 1 : vector<8x256xf32>, i32 -> vector<8x256xf32>
    %c8_428 = arith.constant 8 : index
    %c0_429 = arith.constant 0 : index
    %c0_430 = arith.constant 0 : index
    %540 = vector.load %arg6[%c8_428, %c0_429, %c0_430] : memref<9x1x256xf32, #tpu.memory_space<vmem>>, vector<1x1x256xf32>
    %541 = vector.shape_cast %540 : vector<1x1x256xf32> to vector<1x256xf32>
    %542 = vector.broadcast %541 : vector<1x256xf32> to vector<8x256xf32>
    %543 = arith.mulf %539, %542 : vector<8x256xf32>
    %c35 = arith.constant 35 : index
    %c0_431 = arith.constant 0 : index
    %c0_432 = arith.constant 0 : index
    %544 = vector.load %arg2[%c35, %c0_431, %c0_432] : memref<36x8x8xf32, #tpu.memory_space<vmem>>, vector<1x8x8xf32>
    %545 = vector.shape_cast %544 : vector<1x8x8xf32> to vector<8x8xf32>
    %cst_433 = arith.constant dense<0.000000e+00> : vector<8x256xf32>
    %546 = tpu.matmul %545, %543, %cst_433 {dimension_numbers = #tpu.dot_dimension_numbers<[1], [0], [0], [1], [0, 0, 1, 1], [], []>} : vector<8x8xf32>, vector<8x256xf32>, vector<8x256xf32> -> vector<8x256xf32>
    %547 = arith.addf %538, %546 : vector<8x256xf32>
    %c3_434 = arith.constant 3 : index
    %c0_435 = arith.constant 0 : index
    %c0_436 = arith.constant 0 : index
    %548 = vector.load %arg3[%c3_434, %c0_435, %c0_436] : memref<4x8x1xf32, #tpu.memory_space<vmem>>, vector<1x8x1xf32>
    %549 = vector.shape_cast %548 : vector<1x8x1xf32> to vector<8x1xf32>
    %550 = vector.broadcast %549 : vector<8x1xf32> to vector<8x256xf32>
    %551 = arith.addf %547, %550 : vector<8x256xf32>
    %cst_437 = arith.constant 0.000000e+00 : f32
    %552 = vector.broadcast %cst_437 : f32 to vector<8x256xf32>
    %553 = arith.maximumf %551, %552 : vector<8x256xf32>
    %c3_438 = arith.constant 3 : index
    %c0_439 = arith.constant 0 : index
    %c0_440 = arith.constant 0 : index
    %554 = vector.load %arg4[%c3_438, %c0_439, %c0_440] : memref<5x8x1xf32, #tpu.memory_space<vmem>>, vector<1x8x1xf32>
    %555 = vector.shape_cast %554 : vector<1x8x1xf32> to vector<8x1xf32>
    %556 = vector.broadcast %555 : vector<8x1xf32> to vector<8x256xf32>
    %557 = arith.mulf %556, %553 : vector<8x256xf32>
    %c3_441 = arith.constant 3 : index
    %c0_442 = arith.constant 0 : index
    %c0_443 = arith.constant 0 : index
    %558 = vector.load %arg5[%c3_441, %c0_442, %c0_443] : memref<5x8x1xf32, #tpu.memory_space<vmem>>, vector<1x8x1xf32>
    %559 = vector.shape_cast %558 : vector<1x8x1xf32> to vector<8x1xf32>
    %560 = vector.broadcast %559 : vector<8x1xf32> to vector<8x256xf32>
    %561 = arith.addf %557, %560 : vector<8x256xf32>
    %562 = arith.addf %561, %1 : vector<8x256xf32>
    %c4_444 = arith.constant 4 : index
    %c0_445 = arith.constant 0 : index
    %c0_446 = arith.constant 0 : index
    %563 = vector.load %arg4[%c4_444, %c0_445, %c0_446] : memref<5x8x1xf32, #tpu.memory_space<vmem>>, vector<1x8x1xf32>
    %564 = vector.shape_cast %563 : vector<1x8x1xf32> to vector<8x1xf32>
    %cst_447 = arith.constant 0.000000e+00 : f32
    %565 = vector.broadcast %cst_447 : f32 to vector<8x256xf32>
    %566 = arith.maximumf %562, %565 : vector<8x256xf32>
    %567 = vector.broadcast %564 : vector<8x1xf32> to vector<8x256xf32>
    %568 = arith.mulf %567, %566 : vector<8x256xf32>
    %c4_448 = arith.constant 4 : index
    %c0_449 = arith.constant 0 : index
    %c0_450 = arith.constant 0 : index
    %569 = vector.load %arg5[%c4_448, %c0_449, %c0_450] : memref<5x8x1xf32, #tpu.memory_space<vmem>>, vector<1x8x1xf32>
    %570 = vector.shape_cast %569 : vector<1x8x1xf32> to vector<8x1xf32>
    %571 = vector.broadcast %570 : vector<8x1xf32> to vector<8x256xf32>
    %572 = arith.addf %568, %571 : vector<8x256xf32>
    %c255_i32_451 = arith.constant 255 : i32
    %573 = tpu.dynamic_rotate %572 by %c255_i32_451 dim 1 : vector<8x256xf32>, i32 -> vector<8x256xf32>
    %574 = arith.maximumf %572, %573 : vector<8x256xf32>
    %c254_i32 = arith.constant 254 : i32
    %575 = tpu.dynamic_rotate %572 by %c254_i32 dim 1 : vector<8x256xf32>, i32 -> vector<8x256xf32>
    %576 = arith.maximumf %574, %575 : vector<8x256xf32>
    %c253_i32 = arith.constant 253 : i32
    %577 = tpu.dynamic_rotate %572 by %c253_i32 dim 1 : vector<8x256xf32>, i32 -> vector<8x256xf32>
    %578 = arith.maximumf %576, %577 : vector<8x256xf32>
    %c240_i32_452 = arith.constant 240 : i32
    %579 = tpu.dynamic_rotate %578 by %c240_i32_452 dim 1 : vector<8x256xf32>, i32 -> vector<8x256xf32>
    %580 = arith.maximumf %578, %579 : vector<8x256xf32>
    %c224_i32 = arith.constant 224 : i32
    %581 = tpu.dynamic_rotate %578 by %c224_i32 dim 1 : vector<8x256xf32>, i32 -> vector<8x256xf32>
    %582 = arith.maximumf %580, %581 : vector<8x256xf32>
    %c208_i32 = arith.constant 208 : i32
    %583 = tpu.dynamic_rotate %578 by %c208_i32 dim 1 : vector<8x256xf32>, i32 -> vector<8x256xf32>
    %584 = arith.maximumf %582, %583 : vector<8x256xf32>
    %c0_453 = arith.constant 0 : index
    %c0_454 = arith.constant 0 : index
    %585 = vector.load %arg7[%c0_453, %c0_454] : memref<256x128xf32, #tpu.memory_space<vmem>>, vector<256x128xf32>
    %cst_455 = arith.constant dense<0.000000e+00> : vector<8x128xf32>
    %586 = tpu.matmul %584, %585, %cst_455 {dimension_numbers = #tpu.dot_dimension_numbers<[1], [0], [0], [1], [0, 0, 1, 1], [], []>} : vector<8x256xf32>, vector<256x128xf32>, vector<8x128xf32> -> vector<8x128xf32>
    %c0_456 = arith.constant 0 : index
    %c0_457 = arith.constant 0 : index
    %c0_458 = arith.constant 0 : index
    %587 = vector.load %arg8[%c0_456, %c0_457, %c0_458] : memref<1x8x128xf32, #tpu.memory_space<vmem>>, vector<1x8x128xf32>
    %588 = vector.shape_cast %587 : vector<1x8x128xf32> to vector<8x128xf32>
    %589 = vector.shape_cast %586 : vector<8x128xf32> to vector<1x8x128xf32>
    tpu.vector_store %arg8[%c0_456, %c0_457, %c0_458], %589 {strides = array<i32>} : memref<1x8x128xf32, #tpu.memory_space<vmem>>, vector<1x8x128xf32>,
    return
  }
  func.func @transform_0(%arg0: i32) -> (i32, i32, i32) {
    %c0_i32 = arith.constant 0 : i32
    %c0_i32_0 = arith.constant 0 : i32
    %c0_i32_1 = arith.constant 0 : i32
    return %arg0, %c0_i32, %c0_i32_0 : i32, i32, i32
  }
  func.func @transform_1(%arg0: i32) -> (i32, i32, i32) {
    %c0_i32 = arith.constant 0 : i32
    %c0_i32_0 = arith.constant 0 : i32
    %c0_i32_1 = arith.constant 0 : i32
    %c0_i32_2 = arith.constant 0 : i32
    return %c0_i32, %c0_i32_0, %c0_i32_1 : i32, i32, i32
  }
  func.func @transform_2(%arg0: i32) -> (i32, i32, i32) {
    %c0_i32 = arith.constant 0 : i32
    %c0_i32_0 = arith.constant 0 : i32
    %c0_i32_1 = arith.constant 0 : i32
    %c0_i32_2 = arith.constant 0 : i32
    return %c0_i32, %c0_i32_0, %c0_i32_1 : i32, i32, i32
  }
  func.func @transform_3(%arg0: i32) -> (i32, i32, i32) {
    %c0_i32 = arith.constant 0 : i32
    %c0_i32_0 = arith.constant 0 : i32
    %c0_i32_1 = arith.constant 0 : i32
    %c0_i32_2 = arith.constant 0 : i32
    return %c0_i32, %c0_i32_0, %c0_i32_1 : i32, i32, i32
  }
  func.func @transform_4(%arg0: i32) -> (i32, i32, i32) {
    %c0_i32 = arith.constant 0 : i32
    %c0_i32_0 = arith.constant 0 : i32
    %c0_i32_1 = arith.constant 0 : i32
    %c0_i32_2 = arith.constant 0 : i32
    return %c0_i32, %c0_i32_0, %c0_i32_1 : i32, i32, i32
  }
  func.func @transform_5(%arg0: i32) -> (i32, i32, i32) {
    %c0_i32 = arith.constant 0 : i32
    %c0_i32_0 = arith.constant 0 : i32
    %c0_i32_1 = arith.constant 0 : i32
    %c0_i32_2 = arith.constant 0 : i32
    return %c0_i32, %c0_i32_0, %c0_i32_1 : i32, i32, i32
  }
  func.func @transform_6(%arg0: i32) -> (i32, i32) {
    %c0_i32 = arith.constant 0 : i32
    %c0_i32_0 = arith.constant 0 : i32
    %c0_i32_1 = arith.constant 0 : i32
    return %c0_i32, %c0_i32_0 : i32, i32
  }
  func.func @transform_7(%arg0: i32) -> (i32, i32, i32) {
    %c0_i32 = arith.constant 0 : i32
    %c0_i32_0 = arith.constant 0 : i32
    %c0_i32_1 = arith.constant 0 : i32
    return %arg0, %c0_i32, %c0_i32_0 : i32, i32, i32
  }
}

</mosaic_0001>

<llo_original>
// kernel: tpu_custom_call.1
$region0: #{tpu_custom_call.1}
  #allocation0 [shape = 'u32[]', space=smem, size = 0x4, offset = 0x4, fixed_abs, tag = 'smem constant byte address 0x4 - core index']
  #allocation1 [shape = 'u32[72,128]{1,0:T(1,128)}', space=vmem, size = 0x9000, scoped, tag = 'internal scratch']
  %s0 = inlined_call_operand.vmem [shape: f32[2,8,256], index: 0, kind: input, shape index: {}]
  %s1 = inlined_call_operand.vmem [shape: f32[36,8,8], index: 1, kind: input, shape index: {}]
  %s2 = inlined_call_operand.vmem [shape: f32[4,8,1], index: 2, kind: input, shape index: {}]
  %s3 = inlined_call_operand.vmem [shape: f32[5,8,1], index: 3, kind: input, shape index: {}]
  %s4 = inlined_call_operand.vmem [shape: f32[5,8,1], index: 4, kind: input, shape index: {}]
  %s5 = inlined_call_operand.vmem [shape: f32[9,1,256], index: 5, kind: input, shape index: {}]
  %s6 = inlined_call_operand.vmem [shape: f32[256,128], index: 6, kind: input, shape index: {}]
  %s7 = inlined_call_operand.hbm [shape: f32[2,8,128], index: 7, kind: output, shape index: {}]
  %s8 = sld [smem:[#allocation0]]
  $region61: #{tpu_custom_call.1} parent=0
    _
  %s10 = ssub.s32 1, %s8
  %s11 = scalar_select 0, %s10, %s8
  $region1: #{tpu_custom_call.1} parent=0
    #allocation2 [shape = 'u8[8192]{0}', space=vmem, size = 0x2000, scoped, tag = 'output window, operand 0']
    #allocation3 [shape = 's32[2]{0}', space=sflag, size = 0x8, scoped, tag = 'scoped memory for tpu_custom_call.1']
    %12 = vsyncpa [#allocation3], 0
    %s13 = scalar_lea.sflag [#allocation3], 1
    %14 = vsyncpa %s13, 0
    loop: start=0, step=1, limit=4
    $region2: #{tpu_custom_call.1} parent=1 // loop_pre_header
      _
    $region3: #{tpu_custom_call.1} parent=1 // loop_header
      %s16 = sphi 0, %s20
      %p17 = scmp.ge.s32.totalorder %s16, 4
      %s26 = sphi 0, %s28
      %s29 = sphi 0, %s26
      %s30 = sphi 0, %s29
      %s46 = sphi 0, %s30
      %s50 = sphi 0, %s50
      %s52 = sphi 0, %s50
      %s53 = sphi 0, %s52
      %s67 = sphi 0, %s53
      %s71 = sphi 0, %s71
      %s73 = sphi 0, %s71
      %s74 = sphi 0, %s73
      %s88 = sphi 0, %s74
      %s92 = sphi 0, %s92
      %s94 = sphi 0, %s92
      %s95 = sphi 0, %s94
      %s109 = sphi 0, %s95
      %s113 = sphi 0, %s113
      %s115 = sphi 0, %s113
      %s116 = sphi 0, %s115
      %s130 = sphi 0, %s116
      %s134 = sphi 0, %s134
      %s136 = sphi 0, %s134
      %s137 = sphi 0, %s136
      %s151 = sphi 0, %s137
      %s155 = sphi 0, %s155
      %s157 = sphi 0, %s155
      %s158 = sphi 0, %s157
      %s172 = sphi 0, %s158
      %s178 = sphi 0, %s180
      %s181 = sphi 0, %s178
      %s182 = sphi 0, %s181
      %s198 = sphi 0, %s182
    $region4: #{tpu_custom_call.1} parent=1 // loop_header_branch
      %19 = sbr.rel (%p17) target = $region8
    $region5: #{tpu_custom_call.1} parent=1 // loop_body
      %s21 = ssub.s32 %s16, 1
      %s22 = ssub.s32 %s16, 2
      %s23 = sadd.s32 %s16, 1
      %s24 = ssub.s32 %s16, %s23
      %p25 = scmp.eq.s32.totalorder %s24, 0
      %s27 = sadd.s32 %s26, 1
      %s28 = scalar_select %p25, %s26, %s27
      %p31 = pneg %p25
      %p32 = scmp.eq.s32.totalorder %s16, 1
      %p33 = por %p31, %p32
      %p34 = scmp.ne.s32.totalorder %s26, %s29
      %p35 = scmp.eq.s32.totalorder %s16, 0
      %p36 = por %p34, %p35
      %p37 = scmp.ne.s32.totalorder %s26, %s29
      %p38 = scmp.eq.s32.totalorder %s21, 1
      %p39 = por %p37, %p38
      %p40 = scmp.ne.s32.totalorder %s29, %s30
      %p41 = scmp.eq.s32.totalorder %s21, 0
      %p42 = por %p40, %p41
      %p43 = scmp.ne.s32.totalorder %s29, %s30
      %p44 = scmp.eq.s32.totalorder %s22, 1
      %p45 = por %p43, %p44
      %p47 = scmp.ne.s32.totalorder %s30, %s46
      %p48 = scmp.eq.s32.totalorder %s22, 0
      %p49 = por %p47, %p48
      %s51 = sadd.s32 %s50, 1
      %p54 = scmp.eq.s32.totalorder %s16, 1
      %p55 = scmp.ne.s32.totalorder %s50, %s52
      %p56 = scmp.eq.s32.totalorder %s16, 0
      %p57 = por %p55, %p56
      %p58 = scmp.ne.s32.totalorder %s50, %s52
      %p59 = scmp.eq.s32.totalorder %s21, 1
      %p60 = por %p58, %p59
      %p61 = scmp.ne.s32.totalorder %s52, %s53
      %p62 = scmp.eq.s32.totalorder %s21, 0
      %p63 = por %p61, %p62
      %p64 = scmp.ne.s32.totalorder %s52, %s53
      %p65 = scmp.eq.s32.totalorder %s22, 1
      %p66 = por %p64, %p65
      %p68 = scmp.ne.s32.totalorder %s53, %s67
      %p69 = scmp.eq.s32.totalorder %s22, 0
      %p70 = por %p68, %p69
      %s72 = sadd.s32 %s71, 1
      %p75 = scmp.eq.s32.totalorder %s16, 1
      %p76 = scmp.ne.s32.totalorder %s71, %s73
      %p77 = scmp.eq.s32.totalorder %s16, 0
      %p78 = por %p76, %p77
      %p79 = scmp.ne.s32.totalorder %s71, %s73
      %p80 = scmp.eq.s32.totalorder %s21, 1
      %p81 = por %p79, %p80
      %p82 = scmp.ne.s32.totalorder %s73, %s74
      %p83 = scmp.eq.s32.totalorder %s21, 0
      %p84 = por %p82, %p83
      %p85 = scmp.ne.s32.totalorder %s73, %s74
      %p86 = scmp.eq.s32.totalorder %s22, 1
      %p87 = por %p85, %p86
      %p89 = scmp.ne.s32.totalorder %s74, %s88
      %p90 = scmp.eq.s32.totalorder %s22, 0
      %p91 = por %p89, %p90
      %s93 = sadd.s32 %s92, 1
      %p96 = scmp.eq.s32.totalorder %s16, 1
      %p97 = scmp.ne.s32.totalorder %s92, %s94
      %p98 = scmp.eq.s32.totalorder %s16, 0
      %p99 = por %p97, %p98
      %p100 = scmp.ne.s32.totalorder %s92, %s94
      %p101 = scmp.eq.s32.totalorder %s21, 1
      %p102 = por %p100, %p101
      %p103 = scmp.ne.s32.totalorder %s94, %s95
      %p104 = scmp.eq.s32.totalorder %s21, 0
      %p105 = por %p103, %p104
      %p106 = scmp.ne.s32.totalorder %s94, %s95
      %p107 = scmp.eq.s32.totalorder %s22, 1
      %p108 = por %p106, %p107
      %p110 = scmp.ne.s32.totalorder %s95, %s109
      %p111 = scmp.eq.s32.totalorder %s22, 0
      %p112 = por %p110, %p111
      %s114 = sadd.s32 %s113, 1
      %p117 = scmp.eq.s32.totalorder %s16, 1
      %p118 = scmp.ne.s32.totalorder %s113, %s115
      %p119 = scmp.eq.s32.totalorder %s16, 0
      %p120 = por %p118, %p119
      %p121 = scmp.ne.s32.totalorder %s113, %s115
      %p122 = scmp.eq.s32.totalorder %s21, 1
      %p123 = por %p121, %p122
      %p124 = scmp.ne.s32.totalorder %s115, %s116
      %p125 = scmp.eq.s32.totalorder %s21, 0
      %p126 = por %p124, %p125
      %p127 = scmp.ne.s32.totalorder %s115, %s116
      %p128 = scmp.eq.s32.totalorder %s22, 1
      %p129 = por %p127, %p128
      %p131 = scmp.ne.s32.totalorder %s116, %s130
      %p132 = scmp.eq.s32.totalorder %s22, 0
      %p133 = por %p131, %p132
      %s135 = sadd.s32 %s134, 1
      %p138 = scmp.eq.s32.totalorder %s16, 1
      %p139 = scmp.ne.s32.totalorder %s134, %s136
      %p140 = scmp.eq.s32.totalorder %s16, 0
      %p141 = por %p139, %p140
      %p142 = scmp.ne.s32.totalorder %s134, %s136
      %p143 = scmp.eq.s32.totalorder %s21, 1
      %p144 = por %p142, %p143
      %p145 = scmp.ne.s32.totalorder %s136, %s137
      %p146 = scmp.eq.s32.totalorder %s21, 0
      %p147 = por %p145, %p146
      %p148 = scmp.ne.s32.totalorder %s136, %s137
      %p149 = scmp.eq.s32.totalorder %s22, 1
      %p150 = por %p148, %p149
      %p152 = scmp.ne.s32.totalorder %s137, %s151
      %p153 = scmp.eq.s32.totalorder %s22, 0
      %p154 = por %p152, %p153
      %s156 = sadd.s32 %s155, 1
      %p159 = scmp.eq.s32.totalorder %s16, 1
      %p160 = scmp.ne.s32.totalorder %s155, %s157
      %p161 = scmp.eq.s32.totalorder %s16, 0
      %p162 = por %p160, %p161
      %p163 = scmp.ne.s32.totalorder %s155, %s157
      %p164 = scmp.eq.s32.totalorder %s21, 1
      %p165 = por %p163, %p164
      %p166 = scmp.ne.s32.totalorder %s157, %s158
      %p167 = scmp.eq.s32.totalorder %s21, 0
      %p168 = por %p166, %p167
      %p169 = scmp.ne.s32.totalorder %s157, %s158
      %p170 = scmp.eq.s32.totalorder %s22, 1
      %p171 = por %p169, %p170
      %p173 = scmp.ne.s32.totalorder %s158, %s172
      %p174 = scmp.eq.s32.totalorder %s22, 0
      %p175 = por %p173, %p174
      %s176 = ssub.s32 %s16, %s23
      %p177 = scmp.eq.s32.totalorder %s176, 0
      %s179 = sadd.s32 %s178, 1
      %s180 = scalar_select %p177, %s178, %s179
      %p183 = pneg %p177
      %p184 = scmp.eq.s32.totalorder %s16, 1
      %p185 = por %p183, %p184
      %p186 = scmp.ne.s32.totalorder %s178, %s181
      %p187 = scmp.eq.s32.totalorder %s16, 0
      %p188 = por %p186, %p187
      %p189 = scmp.ne.s32.totalorder %s178, %s181
      %p190 = scmp.eq.s32.totalorder %s21, 1
      %p191 = por %p189, %p190
      %p192 = scmp.ne.s32.totalorder %s181, %s182
      %p193 = scmp.eq.s32.totalorder %s21, 0
      %p194 = por %p192, %p193
      %p195 = scmp.ne.s32.totalorder %s181, %s182
      %p196 = scmp.eq.s32.totalorder %s22, 1
      %p197 = por %p195, %p196
      %p199 = scmp.ne.s32.totalorder %s182, %s198
      %p200 = scmp.eq.s32.totalorder %s22, 0
      %p201 = por %p199, %p200
      %p202 = scmp.le.s32.totalorder 1, %s16
      %p203 = scmp.lt.s32.totalorder %s16, 3
      %p204 = pnand %p202, %p203
      %p205 = pneg %p204
      // Predicated region
      $region9: #{tpu_custom_call.1} parent=5 // pred_check
        _
      $region10: #{tpu_custom_call.1} parent=5 // pred_check_branch
        %207 = sbr.rel (%p204) target = $region12
      $region11: #{tpu_custom_call.1} parent=5 // pred_region
        %s208 = ssub.s32 %s16, 1
        // Predicated region
        $region13: #{tpu_custom_call.1} parent=11 // pred_check
          %p209 = pneg %p63
        $region14: #{tpu_custom_call.1} parent=11 // pred_check_branch
          %211 = sbr.rel (%p209) target = $region16
        $region15: #{tpu_custom_call.1} parent=11 // pred_region
          _
        $region16: #{tpu_custom_call.1} parent=11 // pred_fallthru
          _
        // Predicated region
        $region17: #{tpu_custom_call.1} parent=11 // pred_check
          %p212 = pneg %p84
        $region18: #{tpu_custom_call.1} parent=11 // pred_check_branch
          %214 = sbr.rel (%p212) target = $region20
        $region19: #{tpu_custom_call.1} parent=11 // pred_region
          _
        $region20: #{tpu_custom_call.1} parent=11 // pred_fallthru
          _
        // Predicated region
        $region21: #{tpu_custom_call.1} parent=11 // pred_check
          %p215 = pneg %p105
        $region22: #{tpu_custom_call.1} parent=11 // pred_check_branch
          %217 = sbr.rel (%p215) target = $region24
        $region23: #{tpu_custom_call.1} parent=11 // pred_region
          _
        $region24: #{tpu_custom_call.1} parent=11 // pred_fallthru
          _
        // Predicated region
        $region25: #{tpu_custom_call.1} parent=11 // pred_check
          %p218 = pneg %p126
        $region26: #{tpu_custom_call.1} parent=11 // pred_check_branch
          %220 = sbr.rel (%p218) target = $region28
        $region27: #{tpu_custom_call.1} parent=11 // pred_region
          _
        $region28: #{tpu_custom_call.1} parent=11 // pred_fallthru
          _
        // Predicated region
        $region29: #{tpu_custom_call.1} parent=11 // pred_check
          %p221 = pneg %p147
        $region30: #{tpu_custom_call.1} parent=11 // pred_check_branch
          %223 = sbr.rel (%p221) target = $region32
        $region31: #{tpu_custom_call.1} parent=11 // pred_region
          _
        $region32: #{tpu_custom_call.1} parent=11 // pred_fallthru
          _
        // Predicated region
        $region33: #{tpu_custom_call.1} parent=11 // pred_check
          %p224 = pneg %p168
        $region34: #{tpu_custom_call.1} parent=11 // pred_check_branch
          %226 = sbr.rel (%p224) target = $region36
        $region35: #{tpu_custom_call.1} parent=11 // pred_region
          _
        $region36: #{tpu_custom_call.1} parent=11 // pred_fallthru
          _
      $region12: #{tpu_custom_call.1} parent=5 // pred_fallthru
        _
      %p227 = scmp.lt.s32.totalorder %s16, 2
      // Predicated region
      $region37: #{tpu_custom_call.1} parent=5 // pred_check
        %p228 = pneg %p227
      $region38: #{tpu_custom_call.1} parent=5 // pred_check_branch
        %230 = sbr.rel (%p228) target = $region40
      $region39: #{tpu_custom_call.1} parent=5 // pred_region
        // Predicated region
        $region41: #{tpu_custom_call.1} parent=39 // pred_check
          %p231 = pneg %p36
        $region42: #{tpu_custom_call.1} parent=39 // pred_check_branch
          %233 = sbr.rel (%p231) target = $region44
        $region43: #{tpu_custom_call.1} parent=39 // pred_region
          %p234 = scmp.lt.s32.totalorder %s16, 1
          %s235 = scalar_select %p234, %s16, 1
          %s236 = smul.addr %s235, 2
          %s237 = smul.addr %s236, 8
          %s238 = scalar_lea.vmem %s0, %s237
        $region44: #{tpu_custom_call.1} parent=39 // pred_fallthru
          _
      $region40: #{tpu_custom_call.1} parent=5 // pred_fallthru
        _
      %p239 = scmp.le.s32.totalorder 1, %s16
      %p240 = scmp.lt.s32.totalorder %s16, 3
      %p241 = pnand %p239, %p240
      %p242 = pneg %p241
      // Predicated region
      $region45: #{tpu_custom_call.1} parent=5 // pred_check
        _
      $region46: #{tpu_custom_call.1} parent=5 // pred_check_branch
        %244 = sbr.rel (%p241) target = $region48
      $region47: #{tpu_custom_call.1} parent=5 // pred_region
        %s245 = ssub.s32 %s16, 1
        %p246 = scmp.lt.s32.totalorder %s21, 1
        %s247 = scalar_select %p246, %s21, 1
        %s248 = smul.addr %s247, 2
        %s249 = smul.addr %s248, 8
        %s250 = scalar_lea.vmem %s0, %s249
        %p251 = pneg %p42
        %p252 = pneg %p39
        %p253 = pneg %p63
        %p254 = pneg %p60
        %p255 = pneg %p84
        %p256 = pneg %p81
        %p257 = pneg %p105
        %p258 = pneg %p102
        %p259 = pneg %p126
        %p260 = pneg %p123
        %p261 = pneg %p147
        %p262 = pneg %p144
        %p263 = pneg %p168
        %p264 = pneg %p165
        %p265 = pneg %p194
        %p266 = pneg %p191
        %s267 = sand.u32 %s181, 1
        %s268 = scalar_lea.sflag [#allocation3], %s267
        %s269 = sand.u32 %s181, 1
        %s270 = smul.addr %s269, 8
        %s271 = scalar_lea.vmem [#allocation2], %s270
        %p272 = scmp.lt.s32.totalorder %s21, 1
        %s273 = scalar_select %p272, %s21, 1
        %s274 = smul.addr %s273, 2
        %s275 = smul.addr %s274, 8
        %s276 = scalar_lea.vmem %s0, %s275
        %v277 = vld [vmem:[%s276] sm:$0xff]
        %v278 = vld [vmem:[%s276 + $0x8] sm:$0xff]
        %279 = vrot.lane.b32.xlu0 %v277, 17
        %v280 = vpop.permute.xlu0 %279
        %281 = vrot.lane.b32.xlu0 %v278, 17
        %v282 = vpop.permute.xlu0 %281
        %v283 = vlaneseq
        %v284 = vand.u32 %v283, 127
        %vm285 = vcmp.lt.s32.totalorder %v284, 17
        %v286 = vsel %vm285, %v280, %v282
        %v287 = vsel %vm285, %v282, %v280
        %v288 = vld [vmem:[%s5] sm:$0x3]
        %v290 = vperm.slane %v288, 0
        %v291 = vperm.slane %v288, 1
        %v294 = vmul.f32 %v287, %v290
        %v295 = vmul.f32 %v286, %v291
        %v296 = vld [vmem:[%s1] sm:$0xff]
        %297 = vrot.lane.b32.xlu0 %v277, 16
        %v298 = vpop.permute.xlu0 %297
        %299 = vrot.lane.b32.xlu0 %v278, 16
        %v300 = vpop.permute.xlu0 %299
        %vm301 = vcmp.lt.s32.totalorder %v284, 16
        %v302 = vsel %vm301, %v298, %v300
        %v303 = vsel %vm301, %v300, %v298
        %s304 = scalar_lea.vmem %s5, 2
        %v305 = vld [vmem:[%s304] sm:$0x3]
        %v307 = vperm.slane %v305, 0
        %v308 = vperm.slane %v305, 1
        %v311 = vmul.f32 %v303, %v307
        %v312 = vmul.f32 %v302, %v308
        %s313 = scalar_lea.vmem %s1, 8
        %v314 = vld [vmem:[%s313] sm:$0xff]
        %vm315 = vcmask 64512
        %v317 = vsel %vm315, %v314, 0
        %319 = vmatpush.msra.mxu0 0.0
        %320 = vmatpush.msra.mxu0 0.0
        %321 = vmatpush.msra.mxu0 0.0
        %322 = vmatpush.msra.mxu0 0.0
        %323 = vmatpush.msra.mxu0 0.0
        %324 = vmatpush.msra.mxu0 0.0
        %325 = vmatpush.msra.mxu0 0.0
        %326 = vmatpush.msra.mxu0 0.0
        %327 = vmatpush.msra.mxu0 0.0
        %328 = vmatpush.msra.mxu0 0.0
        %329 = vmatpush.msra.mxu0 0.0
        %330 = vmatpush.msra.mxu0 0.0
        %331 = vmatpush.msra.mxu0 0.0
        %332 = vmatpush.msra.mxu0 0.0
        %333 = vmatpush.msra.mxu0 0.0
        %334 = vmatpush.msra.mxu0 %v311
        %335 = vmatmul.f32.gmra.mxu0 %v317
        %v336 = vpop.f32.mrf.mxu0
        %v337 = vadd.f32 0.0, %v336
        %338 = vdwg.mxu0
        %339 = vmatpush.msra.mxu0 0.0
        %340 = vmatpush.msra.mxu0 0.0
        %341 = vmatpush.msra.mxu0 0.0
        %342 = vmatpush.msra.mxu0 0.0
        %343 = vmatpush.msra.mxu0 0.0
        %344 = vmatpush.msra.mxu0 0.0
        %345 = vmatpush.msra.mxu0 0.0
        %346 = vmatpush.msra.mxu0 0.0
        %347 = vmatpush.msra.mxu0 0.0
        %348 = vmatpush.msra.mxu0 0.0
        %349 = vmatpush.msra.mxu0 0.0
        %350 = vmatpush.msra.mxu0 0.0
        %351 = vmatpush.msra.mxu0 0.0
        %352 = vmatpush.msra.mxu0 0.0
        %353 = vmatpush.msra.mxu0 0.0
        %354 = vmatpush.msra.mxu0 %v312
        %355 = vmatmul.f32.gmra.mxu0 %v317
        %v356 = vpop.f32.mrf.mxu0
        %v357 = vadd.f32 0.0, %v356
        %358 = vdwg.mxu0
        %v360 = vsel %vm315, %v296, 0
        %362 = vmatpush.msra.mxu0 0.0
        %363 = vmatpush.msra.mxu0 0.0
        %364 = vmatpush.msra.mxu0 0.0
        %365 = vmatpush.msra.mxu0 0.0
        %366 = vmatpush.msra.mxu0 0.0
        %367 = vmatpush.msra.mxu0 0.0
        %368 = vmatpush.msra.mxu0 0.0
        %369 = vmatpush.msra.mxu0 0.0
        %370 = vmatpush.msra.mxu0 0.0
        %371 = vmatpush.msra.mxu0 0.0
        %372 = vmatpush.msra.mxu0 0.0
        %373 = vmatpush.msra.mxu0 0.0
        %374 = vmatpush.msra.mxu0 0.0
        %375 = vmatpush.msra.mxu0 0.0
        %376 = vmatpush.msra.mxu0 0.0
        %377 = vmatpush.msra.mxu0 %v294
        %378 = vmatmul.f32.gmra.mxu0 %v360
        %v379 = vpop.f32.mrf.mxu0
        %v380 = vadd.f32 %v337, %v379
        %381 = vdwg.mxu0
        %382 = vmatpush.msra.mxu0 0.0
        %383 = vmatpush.msra.mxu0 0.0
        %384 = vmatpush.msra.mxu0 0.0
        %385 = vmatpush.msra.mxu0 0.0
        %386 = vmatpush.msra.mxu0 0.0
        %387 = vmatpush.msra.mxu0 0.0
        %388 = vmatpush.msra.mxu0 0.0
        %389 = vmatpush.msra.mxu0 0.0
        %390 = vmatpush.msra.mxu0 0.0
        %391 = vmatpush.msra.mxu0 0.0
        %392 = vmatpush.msra.mxu0 0.0
        %393 = vmatpush.msra.mxu0 0.0
        %394 = vmatpush.msra.mxu0 0.0
        %395 = vmatpush.msra.mxu0 0.0
        %396 = vmatpush.msra.mxu0 0.0
        %397 = vmatpush.msra.mxu0 %v295
        %398 = vmatmul.f32.gmra.mxu0 %v360
        %v399 = vpop.f32.mrf.mxu0
        %v400 = vadd.f32 %v357, %v399
        %401 = vdwg.mxu0
        %402 = vrot.lane.b32.xlu0 %v277, 15
        %v403 = vpop.permute.xlu0 %402
        %404 = vrot.lane.b32.xlu0 %v278, 15
        %v405 = vpop.permute.xlu0 %404
        %vm406 = vcmp.lt.s32.totalorder %v284, 15
        %v407 = vsel %vm406, %v403, %v405
        %v408 = vsel %vm406, %v405, %v403
        %s409 = scalar_lea.vmem %s5, 4
        %v410 = vld [vmem:[%s409] sm:$0x3]
        %v412 = vperm.slane %v410, 0
        %v413 = vperm.slane %v410, 1
        %v416 = vmul.f32 %v408, %v412
        %v417 = vmul.f32 %v407, %v413
        %s418 = scalar_lea.vmem %s1, 16
        %v419 = vld [vmem:[%s418] sm:$0xff]
        %v421 = vsel %vm315, %v419, 0
        %423 = vmatpush.msra.mxu0 0.0
        %424 = vmatpush.msra.mxu0 0.0
        %425 = vmatpush.msra.mxu0 0.0
        %426 = vmatpush.msra.mxu0 0.0
        %427 = vmatpush.msra.mxu0 0.0
        %428 = vmatpush.msra.mxu0 0.0
        %429 = vmatpush.msra.mxu0 0.0
        %430 = vmatpush.msra.mxu0 0.0
        %431 = vmatpush.msra.mxu0 0.0
        %432 = vmatpush.msra.mxu0 0.0
        %433 = vmatpush.msra.mxu0 0.0
        %434 = vmatpush.msra.mxu0 0.0
        %435 = vmatpush.msra.mxu0 0.0
        %436 = vmatpush.msra.mxu0 0.0
        %437 = vmatpush.msra.mxu0 0.0
        %438 = vmatpush.msra.mxu0 %v416
        %439 = vmatmul.f32.gmra.mxu0 %v421
        %v440 = vpop.f32.mrf.mxu0
        %v441 = vadd.f32 0.0, %v440
        %442 = vdwg.mxu0
        %443 = vmatpush.msra.mxu0 0.0
        %444 = vmatpush.msra.mxu0 0.0
        %445 = vmatpush.msra.mxu0 0.0
        %446 = vmatpush.msra.mxu0 0.0
        %447 = vmatpush.msra.mxu0 0.0
        %448 = vmatpush.msra.mxu0 0.0
        %449 = vmatpush.msra.mxu0 0.0
        %450 = vmatpush.msra.mxu0 0.0
        %451 = vmatpush.msra.mxu0 0.0
        %452 = vmatpush.msra.mxu0 0.0
        %453 = vmatpush.msra.mxu0 0.0
        %454 = vmatpush.msra.mxu0 0.0
        %455 = vmatpush.msra.mxu0 0.0
        %456 = vmatpush.msra.mxu0 0.0
        %457 = vmatpush.msra.mxu0 0.0
        %458 = vmatpush.msra.mxu0 %v417
        %459 = vmatmul.f32.gmra.mxu0 %v421
        %v460 = vpop.f32.mrf.mxu0
        %v461 = vadd.f32 0.0, %v460
        %462 = vdwg.mxu0
        %v463 = vadd.f32 %v380, %v441
        %v464 = vadd.f32 %v400, %v461
        %465 = vrot.lane.b32.xlu0 %v277, 1
        %v466 = vpop.permute.xlu0 %465
        %467 = vrot.lane.b32.xlu0 %v278, 1
        %v468 = vpop.permute.xlu0 %467
        %vm469 = vcmp.lt.s32.totalorder %v284, 1
        %v470 = vsel %vm469, %v466, %v468
        %v471 = vsel %vm469, %v468, %v466
        %s472 = scalar_lea.vmem %s5, 6
        %v473 = vld [vmem:[%s472] sm:$0x3]
        %v475 = vperm.slane %v473, 0
        %v476 = vperm.slane %v473, 1
        %v479 = vmul.f32 %v471, %v475
        %v480 = vmul.f32 %v470, %v476
        %s481 = scalar_lea.vmem %s1, 24
        %v482 = vld [vmem:[%s481] sm:$0xff]
        %v484 = vsel %vm315, %v482, 0
        %486 = vmatpush.msra.mxu0 0.0
        %487 = vmatpush.msra.mxu0 0.0
        %488 = vmatpush.msra.mxu0 0.0
        %489 = vmatpush.msra.mxu0 0.0
        %490 = vmatpush.msra.mxu0 0.0
        %491 = vmatpush.msra.mxu0 0.0
        %492 = vmatpush.msra.mxu0 0.0
        %493 = vmatpush.msra.mxu0 0.0
        %494 = vmatpush.msra.mxu0 0.0
        %495 = vmatpush.msra.mxu0 0.0
        %496 = vmatpush.msra.mxu0 0.0
        %497 = vmatpush.msra.mxu0 0.0
        %498 = vmatpush.msra.mxu0 0.0
        %499 = vmatpush.msra.mxu0 0.0
        %500 = vmatpush.msra.mxu0 0.0
        %501 = vmatpush.msra.mxu0 %v479
        %502 = vmatmul.f32.gmra.mxu0 %v484
        %v503 = vpop.f32.mrf.mxu0
        %v504 = vadd.f32 0.0, %v503
        %505 = vdwg.mxu0
        %506 = vmatpush.msra.mxu0 0.0
        %507 = vmatpush.msra.mxu0 0.0
        %508 = vmatpush.msra.mxu0 0.0
        %509 = vmatpush.msra.mxu0 0.0
        %510 = vmatpush.msra.mxu0 0.0
        %511 = vmatpush.msra.mxu0 0.0
        %512 = vmatpush.msra.mxu0 0.0
        %513 = vmatpush.msra.mxu0 0.0
        %514 = vmatpush.msra.mxu0 0.0
        %515 = vmatpush.msra.mxu0 0.0
        %516 = vmatpush.msra.mxu0 0.0
        %517 = vmatpush.msra.mxu0 0.0
        %518 = vmatpush.msra.mxu0 0.0
        %519 = vmatpush.msra.mxu0 0.0
        %520 = vmatpush.msra.mxu0 0.0
        %521 = vmatpush.msra.mxu0 %v480
        %522 = vmatmul.f32.gmra.mxu0 %v484
        %v523 = vpop.f32.mrf.mxu0
        %v524 = vadd.f32 0.0, %v523
        %525 = vdwg.mxu0
        %v526 = vadd.f32 %v463, %v504
        %v527 = vadd.f32 %v464, %v524
        %s528 = scalar_lea.vmem %s5, 8
        %v529 = vld [vmem:[%s528] sm:$0x3]
        %v531 = vperm.slane %v529, 0
        %v532 = vperm.slane %v529, 1
        %v535 = vmul.f32 %v277, %v531
        %v536 = vmul.f32 %v278, %v532
        %s537 = scalar_lea.vmem %s1, 32
        %v538 = vld [vmem:[%s537] sm:$0xff]
        %v540 = vsel %vm315, %v538, 0
        %542 = vmatpush.msra.mxu0 0.0
        %543 = vmatpush.msra.mxu0 0.0
        %544 = vmatpush.msra.mxu0 0.0
        %545 = vmatpush.msra.mxu0 0.0
        %546 = vmatpush.msra.mxu0 0.0
        %547 = vmatpush.msra.mxu0 0.0
        %548 = vmatpush.msra.mxu0 0.0
        %549 = vmatpush.msra.mxu0 0.0
        %550 = vmatpush.msra.mxu0 0.0
        %551 = vmatpush.msra.mxu0 0.0
        %552 = vmatpush.msra.mxu0 0.0
        %553 = vmatpush.msra.mxu0 0.0
        %554 = vmatpush.msra.mxu0 0.0
        %555 = vmatpush.msra.mxu0 0.0
        %556 = vmatpush.msra.mxu0 0.0
        %557 = vmatpush.msra.mxu0 %v535
        %558 = vmatmul.f32.gmra.mxu0 %v540
        %v559 = vpop.f32.mrf.mxu0
        %v560 = vadd.f32 0.0, %v559
        %561 = vdwg.mxu0
        %562 = vmatpush.msra.mxu0 0.0
        %563 = vmatpush.msra.mxu0 0.0
        %564 = vmatpush.msra.mxu0 0.0
        %565 = vmatpush.msra.mxu0 0.0
        %566 = vmatpush.msra.mxu0 0.0
        %567 = vmatpush.msra.mxu0 0.0
        %568 = vmatpush.msra.mxu0 0.0
        %569 = vmatpush.msra.mxu0 0.0
        %570 = vmatpush.msra.mxu0 0.0
        %571 = vmatpush.msra.mxu0 0.0
        %572 = vmatpush.msra.mxu0 0.0
        %573 = vmatpush.msra.mxu0 0.0
        %574 = vmatpush.msra.mxu0 0.0
        %575 = vmatpush.msra.mxu0 0.0
        %576 = vmatpush.msra.mxu0 0.0
        %577 = vmatpush.msra.mxu0 %v536
        %578 = vmatmul.f32.gmra.mxu0 %v540
        %v579 = vpop.f32.mrf.mxu0
        %v580 = vadd.f32 0.0, %v579
        %581 = vdwg.mxu0
        %v582 = vadd.f32 %v526, %v560
        %v583 = vadd.f32 %v527, %v580
        %584 = vrot.lane.b32.xlu0 %v277, 127
        %v585 = vpop.permute.xlu0 %584
        %586 = vrot.lane.b32.xlu0 %v278, 127
        %v587 = vpop.permute.xlu0 %586
        %vm588 = vcmp.lt.s32.totalorder %v284, 127
        %v589 = vsel %vm588, %v585, %v587
        %v590 = vsel %vm588, %v587, %v585
        %s591 = scalar_lea.vmem %s5, 10
        %v592 = vld [vmem:[%s591] sm:$0x3]
        %v594 = vperm.slane %v592, 0
        %v595 = vperm.slane %v592, 1
        %v598 = vmul.f32 %v589, %v594
        %v599 = vmul.f32 %v590, %v595
        %s600 = scalar_lea.vmem %s1, 40
        %v601 = vld [vmem:[%s600] sm:$0xff]
        %v603 = vsel %vm315, %v601, 0
        %605 = vmatpush.msra.mxu0 0.0
        %606 = vmatpush.msra.mxu0 0.0
        %607 = vmatpush.msra.mxu0 0.0
        %608 = vmatpush.msra.mxu0 0.0
        %609 = vmatpush.msra.mxu0 0.0
        %610 = vmatpush.msra.mxu0 0.0
        %611 = vmatpush.msra.mxu0 0.0
        %612 = vmatpush.msra.mxu0 0.0
        %613 = vmatpush.msra.mxu0 0.0
        %614 = vmatpush.msra.mxu0 0.0
        %615 = vmatpush.msra.mxu0 0.0
        %616 = vmatpush.msra.mxu0 0.0
        %617 = vmatpush.msra.mxu0 0.0
        %618 = vmatpush.msra.mxu0 0.0
        %619 = vmatpush.msra.mxu0 0.0
        %620 = vmatpush.msra.mxu0 %v598
        %621 = vmatmul.f32.gmra.mxu0 %v603
        %v622 = vpop.f32.mrf.mxu0
        %v623 = vadd.f32 0.0, %v622
        %624 = vdwg.mxu0
        %625 = vmatpush.msra.mxu0 0.0
        %626 = vmatpush.msra.mxu0 0.0
        %627 = vmatpush.msra.mxu0 0.0
        %628 = vmatpush.msra.mxu0 0.0
        %629 = vmatpush.msra.mxu0 0.0
        %630 = vmatpush.msra.mxu0 0.0
        %631 = vmatpush.msra.mxu0 0.0
        %632 = vmatpush.msra.mxu0 0.0
        %633 = vmatpush.msra.mxu0 0.0
        %634 = vmatpush.msra.mxu0 0.0
        %635 = vmatpush.msra.mxu0 0.0
        %636 = vmatpush.msra.mxu0 0.0
        %637 = vmatpush.msra.mxu0 0.0
        %638 = vmatpush.msra.mxu0 0.0
        %639 = vmatpush.msra.mxu0 0.0
        %640 = vmatpush.msra.mxu0 %v599
        %641 = vmatmul.f32.gmra.mxu0 %v603
        %v642 = vpop.f32.mrf.mxu0
        %v643 = vadd.f32 0.0, %v642
        %644 = vdwg.mxu0
        %v645 = vadd.f32 %v582, %v623
        %v646 = vadd.f32 %v583, %v643
        %647 = vrot.lane.b32.xlu0 %v277, 113
        %v648 = vpop.permute.xlu0 %647
        %649 = vrot.lane.b32.xlu0 %v278, 113
        %v650 = vpop.permute.xlu0 %649
        %vm651 = vcmp.lt.s32.totalorder %v284, 113
        %v652 = vsel %vm651, %v648, %v650
        %v653 = vsel %vm651, %v650, %v648
        %s654 = scalar_lea.vmem %s5, 12
        %v655 = vld [vmem:[%s654] sm:$0x3]
        %v657 = vperm.slane %v655, 0
        %v658 = vperm.slane %v655, 1
        %v661 = vmul.f32 %v652, %v657
        %v662 = vmul.f32 %v653, %v658
        %s663 = scalar_lea.vmem %s1, 48
        %v664 = vld [vmem:[%s663] sm:$0xff]
        %v666 = vsel %vm315, %v664, 0
        %668 = vmatpush.msra.mxu0 0.0
        %669 = vmatpush.msra.mxu0 0.0
        %670 = vmatpush.msra.mxu0 0.0
        %671 = vmatpush.msra.mxu0 0.0
        %672 = vmatpush.msra.mxu0 0.0
        %673 = vmatpush.msra.mxu0 0.0
        %674 = vmatpush.msra.mxu0 0.0
        %675 = vmatpush.msra.mxu0 0.0
        %676 = vmatpush.msra.mxu0 0.0
        %677 = vmatpush.msra.mxu0 0.0
        %678 = vmatpush.msra.mxu0 0.0
        %679 = vmatpush.msra.mxu0 0.0
        %680 = vmatpush.msra.mxu0 0.0
        %681 = vmatpush.msra.mxu0 0.0
        %682 = vmatpush.msra.mxu0 0.0
        %683 = vmatpush.msra.mxu0 %v661
        %684 = vmatmul.f32.gmra.mxu0 %v666
        %v685 = vpop.f32.mrf.mxu0
        %v686 = vadd.f32 0.0, %v685
        %687 = vdwg.mxu0
        %688 = vmatpush.msra.mxu0 0.0
        %689 = vmatpush.msra.mxu0 0.0
        %690 = vmatpush.msra.mxu0 0.0
        %691 = vmatpush.msra.mxu0 0.0
        %692 = vmatpush.msra.mxu0 0.0
        %693 = vmatpush.msra.mxu0 0.0
        %694 = vmatpush.msra.mxu0 0.0
        %695 = vmatpush.msra.mxu0 0.0
        %696 = vmatpush.msra.mxu0 0.0
        %697 = vmatpush.msra.mxu0 0.0
        %698 = vmatpush.msra.mxu0 0.0
        %699 = vmatpush.msra.mxu0 0.0
        %700 = vmatpush.msra.mxu0 0.0
        %701 = vmatpush.msra.mxu0 0.0
        %702 = vmatpush.msra.mxu0 0.0
        %703 = vmatpush.msra.mxu0 %v662
        %704 = vmatmul.f32.gmra.mxu0 %v666
        %v705 = vpop.f32.mrf.mxu0
        %v706 = vadd.f32 0.0, %v705
        %707 = vdwg.mxu0
        %v708 = vadd.f32 %v645, %v686
        %v709 = vadd.f32 %v646, %v706
        %710 = vrot.lane.b32.xlu0 %v277, 112
        %v711 = vpop.permute.xlu0 %710
        %712 = vrot.lane.b32.xlu0 %v278, 112
        %v713 = vpop.permute.xlu0 %712
        %vm714 = vcmp.lt.s32.totalorder %v284, 112
        %v715 = vsel %vm714, %v711, %v713
        %v716 = vsel %vm714, %v713, %v711
        %s717 = scalar_lea.vmem %s5, 14
        %v718 = vld [vmem:[%s717] sm:$0x3]
        %v720 = vperm.slane %v718, 0
        %v721 = vperm.slane %v718, 1
        %v724 = vmul.f32 %v715, %v720
        %v725 = vmul.f32 %v716, %v721
        %s726 = scalar_lea.vmem %s1, 56
        %v727 = vld [vmem:[%s726] sm:$0xff]
        %v729 = vsel %vm315, %v727, 0
        %731 = vmatpush.msra.mxu0 0.0
        %732 = vmatpush.msra.mxu0 0.0
        %733 = vmatpush.msra.mxu0 0.0
        %734 = vmatpush.msra.mxu0 0.0
        %735 = vmatpush.msra.mxu0 0.0
        %736 = vmatpush.msra.mxu0 0.0
        %737 = vmatpush.msra.mxu0 0.0
        %738 = vmatpush.msra.mxu0 0.0
        %739 = vmatpush.msra.mxu0 0.0
        %740 = vmatpush.msra.mxu0 0.0
        %741 = vmatpush.msra.mxu0 0.0
        %742 = vmatpush.msra.mxu0 0.0
        %743 = vmatpush.msra.mxu0 0.0
        %744 = vmatpush.msra.mxu0 0.0
        %745 = vmatpush.msra.mxu0 0.0
        %746 = vmatpush.msra.mxu0 %v724
        %747 = vmatmul.f32.gmra.mxu0 %v729
        %v748 = vpop.f32.mrf.mxu0
        %v749 = vadd.f32 0.0, %v748
        %750 = vdwg.mxu0
        %751 = vmatpush.msra.mxu0 0.0
        %752 = vmatpush.msra.mxu0 0.0
        %753 = vmatpush.msra.mxu0 0.0
        %754 = vmatpush.msra.mxu0 0.0
        %755 = vmatpush.msra.mxu0 0.0
        %756 = vmatpush.msra.mxu0 0.0
        %757 = vmatpush.msra.mxu0 0.0
        %758 = vmatpush.msra.mxu0 0.0
        %759 = vmatpush.msra.mxu0 0.0
        %760 = vmatpush.msra.mxu0 0.0
        %761 = vmatpush.msra.mxu0 0.0
        %762 = vmatpush.msra.mxu0 0.0
        %763 = vmatpush.msra.mxu0 0.0
        %764 = vmatpush.msra.mxu0 0.0
        %765 = vmatpush.msra.mxu0 0.0
        %766 = vmatpush.msra.mxu0 %v725
        %767 = vmatmul.f32.gmra.mxu0 %v729
        %v768 = vpop.f32.mrf.mxu0
        %v769 = vadd.f32 0.0, %v768
        %770 = vdwg.mxu0
        %v771 = vadd.f32 %v708, %v749
        %v772 = vadd.f32 %v709, %v769
        %773 = vrot.lane.b32.xlu0 %v277, 111
        %v774 = vpop.permute.xlu0 %773
        %775 = vrot.lane.b32.xlu0 %v278, 111
        %v776 = vpop.permute.xlu0 %775
        %vm777 = vcmp.lt.s32.totalorder %v284, 111
        %v778 = vsel %vm777, %v774, %v776
        %v779 = vsel %vm777, %v776, %v774
        %s780 = scalar_lea.vmem %s5, 16
        %v781 = vld [vmem:[%s780] sm:$0x3]
        %v783 = vperm.slane %v781, 0
        %v784 = vperm.slane %v781, 1
        %v787 = vmul.f32 %v778, %v783
        %v788 = vmul.f32 %v779, %v784
        %s789 = scalar_lea.vmem %s1, 64
        %v790 = vld [vmem:[%s789] sm:$0xff]
        %v792 = vsel %vm315, %v790, 0
        %794 = vmatpush.msra.mxu0 0.0
        %795 = vmatpush.msra.mxu0 0.0
        %796 = vmatpush.msra.mxu0 0.0
        %797 = vmatpush.msra.mxu0 0.0
        %798 = vmatpush.msra.mxu0 0.0
        %799 = vmatpush.msra.mxu0 0.0
        %800 = vmatpush.msra.mxu0 0.0
        %801 = vmatpush.msra.mxu0 0.0
        %802 = vmatpush.msra.mxu0 0.0
        %803 = vmatpush.msra.mxu0 0.0
        %804 = vmatpush.msra.mxu0 0.0
        %805 = vmatpush.msra.mxu0 0.0
        %806 = vmatpush.msra.mxu0 0.0
        %807 = vmatpush.msra.mxu0 0.0
        %808 = vmatpush.msra.mxu0 0.0
        %809 = vmatpush.msra.mxu0 %v787
        %810 = vmatmul.f32.gmra.mxu0 %v792
        %v811 = vpop.f32.mrf.mxu0
        %v812 = vadd.f32 0.0, %v811
        %813 = vdwg.mxu0
        %814 = vmatpush.msra.mxu0 0.0
        %815 = vmatpush.msra.mxu0 0.0
        %816 = vmatpush.msra.mxu0 0.0
        %817 = vmatpush.msra.mxu0 0.0
        %818 = vmatpush.msra.mxu0 0.0
        %819 = vmatpush.msra.mxu0 0.0
        %820 = vmatpush.msra.mxu0 0.0
        %821 = vmatpush.msra.mxu0 0.0
        %822 = vmatpush.msra.mxu0 0.0
        %823 = vmatpush.msra.mxu0 0.0
        %824 = vmatpush.msra.mxu0 0.0
        %825 = vmatpush.msra.mxu0 0.0
        %826 = vmatpush.msra.mxu0 0.0
        %827 = vmatpush.msra.mxu0 0.0
        %828 = vmatpush.msra.mxu0 0.0
        %829 = vmatpush.msra.mxu0 %v788
        %830 = vmatmul.f32.gmra.mxu0 %v792
        %v831 = vpop.f32.mrf.mxu0
        %v832 = vadd.f32 0.0, %v831
        %833 = vdwg.mxu0
        %v834 = vadd.f32 %v771, %v812
        %v835 = vadd.f32 %v772, %v832
        %v836 = vld [vmem:[%s2] sm:$0xff]
        %838 = vset.pattern.permute.xlu0 0
        %839 = vperm.xlu0 %838, %v836
        %v840 = vpop.permute.xlu0 %839
        %v842 = vadd.f32 %v834, %v840
        %v843 = vadd.f32 %v835, %v840
        %v844 = vmax.f32 %v842, 0.0
        %v845 = vmax.f32 %v843, 0.0
        %v846 = vld [vmem:[%s3] sm:$0xff]
        %848 = vset.pattern.permute.xlu0 0
        %849 = vperm.xlu0 %848, %v846
        %v850 = vpop.permute.xlu0 %849
        %v852 = vmul.f32 %v850, %v844
        %v853 = vmul.f32 %v850, %v845
        %v854 = vld [vmem:[%s4] sm:$0xff]
        %856 = vset.pattern.permute.xlu0 0
        %857 = vperm.xlu0 %856, %v854
        %v858 = vpop.permute.xlu0 %857
        %v860 = vadd.f32 %v852, %v858
        %v861 = vadd.f32 %v853, %v858
        %862 = vrot.lane.b32.xlu0 %v860, 17
        %v863 = vpop.permute.xlu0 %862
        %864 = vrot.lane.b32.xlu0 %v861, 17
        %v865 = vpop.permute.xlu0 %864
        %v866 = vsel %vm285, %v863, %v865
        %v867 = vsel %vm285, %v865, %v863
        %v868 = vmul.f32 %v867, %v290
        %v869 = vmul.f32 %v866, %v291
        %s870 = scalar_lea.vmem %s1, 72
        %v871 = vld [vmem:[%s870] sm:$0xff]
        %872 = vrot.lane.b32.xlu0 %v860, 16
        %v873 = vpop.permute.xlu0 %872
        %874 = vrot.lane.b32.xlu0 %v861, 16
        %v875 = vpop.permute.xlu0 %874
        %v876 = vsel %vm301, %v873, %v875
        %v877 = vsel %vm301, %v875, %v873
        %v878 = vmul.f32 %v877, %v307
        %v879 = vmul.f32 %v876, %v308
        %s880 = scalar_lea.vmem %s1, 80
        %v881 = vld [vmem:[%s880] sm:$0xff]
        %v883 = vsel %vm315, %v881, 0
        %885 = vmatpush.msra.mxu0 0.0
        %886 = vmatpush.msra.mxu0 0.0
        %887 = vmatpush.msra.mxu0 0.0
        %888 = vmatpush.msra.mxu0 0.0
        %889 = vmatpush.msra.mxu0 0.0
        %890 = vmatpush.msra.mxu0 0.0
        %891 = vmatpush.msra.mxu0 0.0
        %892 = vmatpush.msra.mxu0 0.0
        %893 = vmatpush.msra.mxu0 0.0
        %894 = vmatpush.msra.mxu0 0.0
        %895 = vmatpush.msra.mxu0 0.0
        %896 = vmatpush.msra.mxu0 0.0
        %897 = vmatpush.msra.mxu0 0.0
        %898 = vmatpush.msra.mxu0 0.0
        %899 = vmatpush.msra.mxu0 0.0
        %900 = vmatpush.msra.mxu0 %v878
        %901 = vmatmul.f32.gmra.mxu0 %v883
        %v902 = vpop.f32.mrf.mxu0
        %v903 = vadd.f32 0.0, %v902
        %904 = vdwg.mxu0
        %905 = vmatpush.msra.mxu0 0.0
        %906 = vmatpush.msra.mxu0 0.0
        %907 = vmatpush.msra.mxu0 0.0
        %908 = vmatpush.msra.mxu0 0.0
        %909 = vmatpush.msra.mxu0 0.0
        %910 = vmatpush.msra.mxu0 0.0
        %911 = vmatpush.msra.mxu0 0.0
        %912 = vmatpush.msra.mxu0 0.0
        %913 = vmatpush.msra.mxu0 0.0
        %914 = vmatpush.msra.mxu0 0.0
        %915 = vmatpush.msra.mxu0 0.0
        %916 = vmatpush.msra.mxu0 0.0
        %917 = vmatpush.msra.mxu0 0.0
        %918 = vmatpush.msra.mxu0 0.0
        %919 = vmatpush.msra.mxu0 0.0
        %920 = vmatpush.msra.mxu0 %v879
        %921 = vmatmul.f32.gmra.mxu0 %v883
        %v922 = vpop.f32.mrf.mxu0
        %v923 = vadd.f32 0.0, %v922
        %924 = vdwg.mxu0
        %v926 = vsel %vm315, %v871, 0
        %928 = vmatpush.msra.mxu0 0.0
        %929 = vmatpush.msra.mxu0 0.0
        %930 = vmatpush.msra.mxu0 0.0
        %931 = vmatpush.msra.mxu0 0.0
        %932 = vmatpush.msra.mxu0 0.0
        %933 = vmatpush.msra.mxu0 0.0
        %934 = vmatpush.msra.mxu0 0.0
        %935 = vmatpush.msra.mxu0 0.0
        %936 = vmatpush.msra.mxu0 0.0
        %937 = vmatpush.msra.mxu0 0.0
        %938 = vmatpush.msra.mxu0 0.0
        %939 = vmatpush.msra.mxu0 0.0
        %940 = vmatpush.msra.mxu0 0.0
        %941 = vmatpush.msra.mxu0 0.0
        %942 = vmatpush.msra.mxu0 0.0
        %943 = vmatpush.msra.mxu0 %v868
        %944 = vmatmul.f32.gmra.mxu0 %v926
        %v945 = vpop.f32.mrf.mxu0
        %v946 = vadd.f32 %v903, %v945
        %947 = vdwg.mxu0
        %948 = vmatpush.msra.mxu0 0.0
        %949 = vmatpush.msra.mxu0 0.0
        %950 = vmatpush.msra.mxu0 0.0
        %951 = vmatpush.msra.mxu0 0.0
        %952 = vmatpush.msra.mxu0 0.0
        %953 = vmatpush.msra.mxu0 0.0
        %954 = vmatpush.msra.mxu0 0.0
        %955 = vmatpush.msra.mxu0 0.0
        %956 = vmatpush.msra.mxu0 0.0
        %957 = vmatpush.msra.mxu0 0.0
        %958 = vmatpush.msra.mxu0 0.0
        %959 = vmatpush.msra.mxu0 0.0
        %960 = vmatpush.msra.mxu0 0.0
        %961 = vmatpush.msra.mxu0 0.0
        %962 = vmatpush.msra.mxu0 0.0
        %963 = vmatpush.msra.mxu0 %v869
        %964 = vmatmul.f32.gmra.mxu0 %v926
        %v965 = vpop.f32.mrf.mxu0
        %v966 = vadd.f32 %v923, %v965
        %967 = vdwg.mxu0
        %968 = vrot.lane.b32.xlu0 %v860, 15
        %v969 = vpop.permute.xlu0 %968
        %970 = vrot.lane.b32.xlu0 %v861, 15
        %v971 = vpop.permute.xlu0 %970
        %v972 = vsel %vm406, %v969, %v971
        %v973 = vsel %vm406, %v971, %v969
        %v974 = vmul.f32 %v973, %v412
        %v975 = vmul.f32 %v972, %v413
        %s976 = scalar_lea.vmem %s1, 88
        %v977 = vld [vmem:[%s976] sm:$0xff]
        %v979 = vsel %vm315, %v977, 0
        %981 = vmatpush.msra.mxu0 0.0
        %982 = vmatpush.msra.mxu0 0.0
        %983 = vmatpush.msra.mxu0 0.0
        %984 = vmatpush.msra.mxu0 0.0
        %985 = vmatpush.msra.mxu0 0.0
        %986 = vmatpush.msra.mxu0 0.0
        %987 = vmatpush.msra.mxu0 0.0
        %988 = vmatpush.msra.mxu0 0.0
        %989 = vmatpush.msra.mxu0 0.0
        %990 = vmatpush.msra.mxu0 0.0
        %991 = vmatpush.msra.mxu0 0.0
        %992 = vmatpush.msra.mxu0 0.0
        %993 = vmatpush.msra.mxu0 0.0
        %994 = vmatpush.msra.mxu0 0.0
        %995 = vmatpush.msra.mxu0 0.0
        %996 = vmatpush.msra.mxu0 %v974
        %997 = vmatmul.f32.gmra.mxu0 %v979
        %v998 = vpop.f32.mrf.mxu0
        %v999 = vadd.f32 0.0, %v998
        %1000 = vdwg.mxu0
        %1001 = vmatpush.msra.mxu0 0.0
        %1002 = vmatpush.msra.mxu0 0.0
        %1003 = vmatpush.msra.mxu0 0.0
        %1004 = vmatpush.msra.mxu0 0.0
        %1005 = vmatpush.msra.mxu0 0.0
        %1006 = vmatpush.msra.mxu0 0.0
        %1007 = vmatpush.msra.mxu0 0.0
        %1008 = vmatpush.msra.mxu0 0.0
        %1009 = vmatpush.msra.mxu0 0.0
        %1010 = vmatpush.msra.mxu0 0.0
        %1011 = vmatpush.msra.mxu0 0.0
        %1012 = vmatpush.msra.mxu0 0.0
        %1013 = vmatpush.msra.mxu0 0.0
        %1014 = vmatpush.msra.mxu0 0.0
        %1015 = vmatpush.msra.mxu0 0.0
        %1016 = vmatpush.msra.mxu0 %v975
        %1017 = vmatmul.f32.gmra.mxu0 %v979
        %v1018 = vpop.f32.mrf.mxu0
        %v1019 = vadd.f32 0.0, %v1018
        %1020 = vdwg.mxu0
        %v1021 = vadd.f32 %v946, %v999
        %v1022 = vadd.f32 %v966, %v1019
        %1023 = vrot.lane.b32.xlu0 %v860, 1
        %v1024 = vpop.permute.xlu0 %1023
        %1025 = vrot.lane.b32.xlu0 %v861, 1
        %v1026 = vpop.permute.xlu0 %1025
        %v1027 = vsel %vm469, %v1024, %v1026
        %v1028 = vsel %vm469, %v1026, %v1024
        %v1029 = vmul.f32 %v1028, %v475
        %v1030 = vmul.f32 %v1027, %v476
        %s1031 = scalar_lea.vmem %s1, 96
        %v1032 = vld [vmem:[%s1031] sm:$0xff]
        %v1034 = vsel %vm315, %v1032, 0
        %1036 = vmatpush.msra.mxu0 0.0
        %1037 = vmatpush.msra.mxu0 0.0
        %1038 = vmatpush.msra.mxu0 0.0
        %1039 = vmatpush.msra.mxu0 0.0
        %1040 = vmatpush.msra.mxu0 0.0
        %1041 = vmatpush.msra.mxu0 0.0
        %1042 = vmatpush.msra.mxu0 0.0
        %1043 = vmatpush.msra.mxu0 0.0
        %1044 = vmatpush.msra.mxu0 0.0
        %1045 = vmatpush.msra.mxu0 0.0
        %1046 = vmatpush.msra.mxu0 0.0
        %1047 = vmatpush.msra.mxu0 0.0
        %1048 = vmatpush.msra.mxu0 0.0
        %1049 = vmatpush.msra.mxu0 0.0
        %1050 = vmatpush.msra.mxu0 0.0
        %1051 = vmatpush.msra.mxu0 %v1029
        %1052 = vmatmul.f32.gmra.mxu0 %v1034
        %v1053 = vpop.f32.mrf.mxu0
        %v1054 = vadd.f32 0.0, %v1053
        %1055 = vdwg.mxu0
        %1056 = vmatpush.msra.mxu0 0.0
        %1057 = vmatpush.msra.mxu0 0.0
        %1058 = vmatpush.msra.mxu0 0.0
        %1059 = vmatpush.msra.mxu0 0.0
        %1060 = vmatpush.msra.mxu0 0.0
        %1061 = vmatpush.msra.mxu0 0.0
        %1062 = vmatpush.msra.mxu0 0.0
        %1063 = vmatpush.msra.mxu0 0.0
        %1064 = vmatpush.msra.mxu0 0.0
        %1065 = vmatpush.msra.mxu0 0.0
        %1066 = vmatpush.msra.mxu0 0.0
        %1067 = vmatpush.msra.mxu0 0.0
        %1068 = vmatpush.msra.mxu0 0.0
        %1069 = vmatpush.msra.mxu0 0.0
        %1070 = vmatpush.msra.mxu0 0.0
        %1071 = vmatpush.msra.mxu0 %v1030
        %1072 = vmatmul.f32.gmra.mxu0 %v1034
        %v1073 = vpop.f32.mrf.mxu0
        %v1074 = vadd.f32 0.0, %v1073
        %1075 = vdwg.mxu0
        %v1076 = vadd.f32 %v1021, %v1054
        %v1077 = vadd.f32 %v1022, %v1074
        %v1078 = vmul.f32 %v860, %v531
        %v1079 = vmul.f32 %v861, %v532
        %s1080 = scalar_lea.vmem %s1, 104
        %v1081 = vld [vmem:[%s1080] sm:$0xff]
        %v1083 = vsel %vm315, %v1081, 0
        %1085 = vmatpush.msra.mxu0 0.0
        %1086 = vmatpush.msra.mxu0 0.0
        %1087 = vmatpush.msra.mxu0 0.0
        %1088 = vmatpush.msra.mxu0 0.0
        %1089 = vmatpush.msra.mxu0 0.0
        %1090 = vmatpush.msra.mxu0 0.0
        %1091 = vmatpush.msra.mxu0 0.0
        %1092 = vmatpush.msra.mxu0 0.0
        %1093 = vmatpush.msra.mxu0 0.0
        %1094 = vmatpush.msra.mxu0 0.0
        %1095 = vmatpush.msra.mxu0 0.0
        %1096 = vmatpush.msra.mxu0 0.0
        %1097 = vmatpush.msra.mxu0 0.0
        %1098 = vmatpush.msra.mxu0 0.0
        %1099 = vmatpush.msra.mxu0 0.0
        %1100 = vmatpush.msra.mxu0 %v1078
        %1101 = vmatmul.f32.gmra.mxu0 %v1083
        %v1102 = vpop.f32.mrf.mxu0
        %v1103 = vadd.f32 0.0, %v1102
        %1104 = vdwg.mxu0
        %1105 = vmatpush.msra.mxu0 0.0
        %1106 = vmatpush.msra.mxu0 0.0
        %1107 = vmatpush.msra.mxu0 0.0
        %1108 = vmatpush.msra.mxu0 0.0
        %1109 = vmatpush.msra.mxu0 0.0
        %1110 = vmatpush.msra.mxu0 0.0
        %1111 = vmatpush.msra.mxu0 0.0
        %1112 = vmatpush.msra.mxu0 0.0
        %1113 = vmatpush.msra.mxu0 0.0
        %1114 = vmatpush.msra.mxu0 0.0
        %1115 = vmatpush.msra.mxu0 0.0
        %1116 = vmatpush.msra.mxu0 0.0
        %1117 = vmatpush.msra.mxu0 0.0
        %1118 = vmatpush.msra.mxu0 0.0
        %1119 = vmatpush.msra.mxu0 0.0
        %1120 = vmatpush.msra.mxu0 %v1079
        %1121 = vmatmul.f32.gmra.mxu0 %v1083
        %v1122 = vpop.f32.mrf.mxu0
        %v1123 = vadd.f32 0.0, %v1122
        %1124 = vdwg.mxu0
        %v1125 = vadd.f32 %v1076, %v1103
        %v1126 = vadd.f32 %v1077, %v1123
        %1127 = vrot.lane.b32.xlu0 %v860, 127
        %v1128 = vpop.permute.xlu0 %1127
        %1129 = vrot.lane.b32.xlu0 %v861, 127
        %v1130 = vpop.permute.xlu0 %1129
        %v1131 = vsel %vm588, %v1128, %v1130
        %v1132 = vsel %vm588, %v1130, %v1128
        %v1133 = vmul.f32 %v1131, %v594
        %v1134 = vmul.f32 %v1132, %v595
        %s1135 = scalar_lea.vmem %s1, 112
        %v1136 = vld [vmem:[%s1135] sm:$0xff]
        %v1138 = vsel %vm315, %v1136, 0
        %1140 = vmatpush.msra.mxu0 0.0
        %1141 = vmatpush.msra.mxu0 0.0
        %1142 = vmatpush.msra.mxu0 0.0
        %1143 = vmatpush.msra.mxu0 0.0
        %1144 = vmatpush.msra.mxu0 0.0
        %1145 = vmatpush.msra.mxu0 0.0
        %1146 = vmatpush.msra.mxu0 0.0
        %1147 = vmatpush.msra.mxu0 0.0
        %1148 = vmatpush.msra.mxu0 0.0
        %1149 = vmatpush.msra.mxu0 0.0
        %1150 = vmatpush.msra.mxu0 0.0
        %1151 = vmatpush.msra.mxu0 0.0
        %1152 = vmatpush.msra.mxu0 0.0
        %1153 = vmatpush.msra.mxu0 0.0
        %1154 = vmatpush.msra.mxu0 0.0
        %1155 = vmatpush.msra.mxu0 %v1133
        %1156 = vmatmul.f32.gmra.mxu0 %v1138
        %v1157 = vpop.f32.mrf.mxu0
        %v1158 = vadd.f32 0.0, %v1157
        %1159 = vdwg.mxu0
        %1160 = vmatpush.msra.mxu0 0.0
        %1161 = vmatpush.msra.mxu0 0.0
        %1162 = vmatpush.msra.mxu0 0.0
        %1163 = vmatpush.msra.mxu0 0.0
        %1164 = vmatpush.msra.mxu0 0.0
        %1165 = vmatpush.msra.mxu0 0.0
        %1166 = vmatpush.msra.mxu0 0.0
        %1167 = vmatpush.msra.mxu0 0.0
        %1168 = vmatpush.msra.mxu0 0.0
        %1169 = vmatpush.msra.mxu0 0.0
        %1170 = vmatpush.msra.mxu0 0.0
        %1171 = vmatpush.msra.mxu0 0.0
        %1172 = vmatpush.msra.mxu0 0.0
        %1173 = vmatpush.msra.mxu0 0.0
        %1174 = vmatpush.msra.mxu0 0.0
        %1175 = vmatpush.msra.mxu0 %v1134
        %1176 = vmatmul.f32.gmra.mxu0 %v1138
        %v1177 = vpop.f32.mrf.mxu0
        %v1178 = vadd.f32 0.0, %v1177
        %1179 = vdwg.mxu0
        %v1180 = vadd.f32 %v1125, %v1158
        %v1181 = vadd.f32 %v1126, %v1178
        %1182 = vrot.lane.b32.xlu0 %v860, 113
        %v1183 = vpop.permute.xlu0 %1182
        %1184 = vrot.lane.b32.xlu0 %v861, 113
        %v1185 = vpop.permute.xlu0 %1184
        %v1186 = vsel %vm651, %v1183, %v1185
        %v1187 = vsel %vm651, %v1185, %v1183
        %v1188 = vmul.f32 %v1186, %v657
        %v1189 = vmul.f32 %v1187, %v658
        %s1190 = scalar_lea.vmem %s1, 120
        %v1191 = vld [vmem:[%s1190] sm:$0xff]
        %v1193 = vsel %vm315, %v1191, 0
        %1195 = vmatpush.msra.mxu0 0.0
        %1196 = vmatpush.msra.mxu0 0.0
        %1197 = vmatpush.msra.mxu0 0.0
        %1198 = vmatpush.msra.mxu0 0.0
        %1199 = vmatpush.msra.mxu0 0.0
        %1200 = vmatpush.msra.mxu0 0.0
        %1201 = vmatpush.msra.mxu0 0.0
        %1202 = vmatpush.msra.mxu0 0.0
        %1203 = vmatpush.msra.mxu0 0.0
        %1204 = vmatpush.msra.mxu0 0.0
        %1205 = vmatpush.msra.mxu0 0.0
        %1206 = vmatpush.msra.mxu0 0.0
        %1207 = vmatpush.msra.mxu0 0.0
        %1208 = vmatpush.msra.mxu0 0.0
        %1209 = vmatpush.msra.mxu0 0.0
        %1210 = vmatpush.msra.mxu0 %v1188
        %1211 = vmatmul.f32.gmra.mxu0 %v1193
        %v1212 = vpop.f32.mrf.mxu0
        %v1213 = vadd.f32 0.0, %v1212
        %1214 = vdwg.mxu0
        %1215 = vmatpush.msra.mxu0 0.0
        %1216 = vmatpush.msra.mxu0 0.0
        %1217 = vmatpush.msra.mxu0 0.0
        %1218 = vmatpush.msra.mxu0 0.0
        %1219 = vmatpush.msra.mxu0 0.0
        %1220 = vmatpush.msra.mxu0 0.0
        %1221 = vmatpush.msra.mxu0 0.0
        %1222 = vmatpush.msra.mxu0 0.0
        %1223 = vmatpush.msra.mxu0 0.0
        %1224 = vmatpush.msra.mxu0 0.0
        %1225 = vmatpush.msra.mxu0 0.0
        %1226 = vmatpush.msra.mxu0 0.0
        %1227 = vmatpush.msra.mxu0 0.0
        %1228 = vmatpush.msra.mxu0 0.0
        %1229 = vmatpush.msra.mxu0 0.0
        %1230 = vmatpush.msra.mxu0 %v1189
        %1231 = vmatmul.f32.gmra.mxu0 %v1193
        %v1232 = vpop.f32.mrf.mxu0
        %v1233 = vadd.f32 0.0, %v1232
        %1234 = vdwg.mxu0
        %v1235 = vadd.f32 %v1180, %v1213
        %v1236 = vadd.f32 %v1181, %v1233
        %1237 = vrot.lane.b32.xlu0 %v860, 112
        %v1238 = vpop.permute.xlu0 %1237
        %1239 = vrot.lane.b32.xlu0 %v861, 112
        %v1240 = vpop.permute.xlu0 %1239
        %v1241 = vsel %vm714, %v1238, %v1240
        %v1242 = vsel %vm714, %v1240, %v1238
        %v1243 = vmul.f32 %v1241, %v720
        %v1244 = vmul.f32 %v1242, %v721
        %s1245 = scalar_lea.vmem %s1, 128
        %v1246 = vld [vmem:[%s1245] sm:$0xff]
        %v1248 = vsel %vm315, %v1246, 0
        %1250 = vmatpush.msra.mxu0 0.0
        %1251 = vmatpush.msra.mxu0 0.0
        %1252 = vmatpush.msra.mxu0 0.0
        %1253 = vmatpush.msra.mxu0 0.0
        %1254 = vmatpush.msra.mxu0 0.0
        %1255 = vmatpush.msra.mxu0 0.0
        %1256 = vmatpush.msra.mxu0 0.0
        %1257 = vmatpush.msra.mxu0 0.0
        %1258 = vmatpush.msra.mxu0 0.0
        %1259 = vmatpush.msra.mxu0 0.0
        %1260 = vmatpush.msra.mxu0 0.0
        %1261 = vmatpush.msra.mxu0 0.0
        %1262 = vmatpush.msra.mxu0 0.0
        %1263 = vmatpush.msra.mxu0 0.0
        %1264 = vmatpush.msra.mxu0 0.0
        %1265 = vmatpush.msra.mxu0 %v1243
        %1266 = vmatmul.f32.gmra.mxu0 %v1248
        %v1267 = vpop.f32.mrf.mxu0
        %v1268 = vadd.f32 0.0, %v1267
        %1269 = vdwg.mxu0
        %1270 = vmatpush.msra.mxu0 0.0
        %1271 = vmatpush.msra.mxu0 0.0
        %1272 = vmatpush.msra.mxu0 0.0
        %1273 = vmatpush.msra.mxu0 0.0
        %1274 = vmatpush.msra.mxu0 0.0
        %1275 = vmatpush.msra.mxu0 0.0
        %1276 = vmatpush.msra.mxu0 0.0
        %1277 = vmatpush.msra.mxu0 0.0
        %1278 = vmatpush.msra.mxu0 0.0
        %1279 = vmatpush.msra.mxu0 0.0
        %1280 = vmatpush.msra.mxu0 0.0
        %1281 = vmatpush.msra.mxu0 0.0
        %1282 = vmatpush.msra.mxu0 0.0
        %1283 = vmatpush.msra.mxu0 0.0
        %1284 = vmatpush.msra.mxu0 0.0
        %1285 = vmatpush.msra.mxu0 %v1244
        %1286 = vmatmul.f32.gmra.mxu0 %v1248
        %v1287 = vpop.f32.mrf.mxu0
        %v1288 = vadd.f32 0.0, %v1287
        %1289 = vdwg.mxu0
        %v1290 = vadd.f32 %v1235, %v1268
        %v1291 = vadd.f32 %v1236, %v1288
        %1292 = vrot.lane.b32.xlu0 %v860, 111
        %v1293 = vpop.permute.xlu0 %1292
        %1294 = vrot.lane.b32.xlu0 %v861, 111
        %v1295 = vpop.permute.xlu0 %1294
        %v1296 = vsel %vm777, %v1293, %v1295
        %v1297 = vsel %vm777, %v1295, %v1293
        %v1298 = vmul.f32 %v1296, %v783
        %v1299 = vmul.f32 %v1297, %v784
        %s1300 = scalar_lea.vmem %s1, 136
        %v1301 = vld [vmem:[%s1300] sm:$0xff]
        %v1303 = vsel %vm315, %v1301, 0
        %1305 = vmatpush.msra.mxu0 0.0
        %1306 = vmatpush.msra.mxu0 0.0
        %1307 = vmatpush.msra.mxu0 0.0
        %1308 = vmatpush.msra.mxu0 0.0
        %1309 = vmatpush.msra.mxu0 0.0
        %1310 = vmatpush.msra.mxu0 0.0
        %1311 = vmatpush.msra.mxu0 0.0
        %1312 = vmatpush.msra.mxu0 0.0
        %1313 = vmatpush.msra.mxu0 0.0
        %1314 = vmatpush.msra.mxu0 0.0
        %1315 = vmatpush.msra.mxu0 0.0
        %1316 = vmatpush.msra.mxu0 0.0
        %1317 = vmatpush.msra.mxu0 0.0
        %1318 = vmatpush.msra.mxu0 0.0
        %1319 = vmatpush.msra.mxu0 0.0
        %1320 = vmatpush.msra.mxu0 %v1298
        %1321 = vmatmul.f32.gmra.mxu0 %v1303
        %v1322 = vpop.f32.mrf.mxu0
        %v1323 = vadd.f32 0.0, %v1322
        %1324 = vdwg.mxu0
        %1325 = vmatpush.msra.mxu0 0.0
        %1326 = vmatpush.msra.mxu0 0.0
        %1327 = vmatpush.msra.mxu0 0.0
        %1328 = vmatpush.msra.mxu0 0.0
        %1329 = vmatpush.msra.mxu0 0.0
        %1330 = vmatpush.msra.mxu0 0.0
        %1331 = vmatpush.msra.mxu0 0.0
        %1332 = vmatpush.msra.mxu0 0.0
        %1333 = vmatpush.msra.mxu0 0.0
        %1334 = vmatpush.msra.mxu0 0.0
        %1335 = vmatpush.msra.mxu0 0.0
        %1336 = vmatpush.msra.mxu0 0.0
        %1337 = vmatpush.msra.mxu0 0.0
        %1338 = vmatpush.msra.mxu0 0.0
        %1339 = vmatpush.msra.mxu0 0.0
        %1340 = vmatpush.msra.mxu0 %v1299
        %1341 = vmatmul.f32.gmra.mxu0 %v1303
        %v1342 = vpop.f32.mrf.mxu0
        %v1343 = vadd.f32 0.0, %v1342
        %1344 = vdwg.mxu0
        %v1345 = vadd.f32 %v1290, %v1323
        %v1346 = vadd.f32 %v1291, %v1343
        %s1347 = scalar_lea.vmem %s2, 8
        %v1348 = vld [vmem:[%s1347] sm:$0xff]
        %1350 = vset.pattern.permute.xlu0 0
        %1351 = vperm.xlu0 %1350, %v1348
        %v1352 = vpop.permute.xlu0 %1351
        %v1354 = vadd.f32 %v1345, %v1352
        %v1355 = vadd.f32 %v1346, %v1352
        %v1356 = vmax.f32 %v1354, 0.0
        %v1357 = vmax.f32 %v1355, 0.0
        %s1358 = scalar_lea.vmem %s3, 8
        %v1359 = vld [vmem:[%s1358] sm:$0xff]
        %1361 = vset.pattern.permute.xlu0 0
        %1362 = vperm.xlu0 %1361, %v1359
        %v1363 = vpop.permute.xlu0 %1362
        %v1365 = vmul.f32 %v1363, %v1356
        %v1366 = vmul.f32 %v1363, %v1357
        %s1367 = scalar_lea.vmem %s4, 8
        %v1368 = vld [vmem:[%s1367] sm:$0xff]
        %1370 = vset.pattern.permute.xlu0 0
        %1371 = vperm.xlu0 %1370, %v1368
        %v1372 = vpop.permute.xlu0 %1371
        %v1374 = vadd.f32 %v1365, %v1372
        %v1375 = vadd.f32 %v1366, %v1372
        %v1376 = vadd.f32 %v1374, %v277
        %v1377 = vadd.f32 %v1375, %v278
        %1378 = vrot.lane.b32.xlu0 %v1376, 17
        %v1379 = vpop.permute.xlu0 %1378
        %1380 = vrot.lane.b32.xlu0 %v1377, 17
        %v1381 = vpop.permute.xlu0 %1380
        %v1382 = vsel %vm285, %v1379, %v1381
        %v1383 = vsel %vm285, %v1381, %v1379
        %v1384 = vmul.f32 %v1383, %v290
        %v1385 = vmul.f32 %v1382, %v291
        %1386 = vrot.lane.b32.xlu0 %v1376, 16
        %v1387 = vpop.permute.xlu0 %1386
        %1388 = vrot.lane.b32.xlu0 %v1377, 16
        %v1389 = vpop.permute.xlu0 %1388
        %v1390 = vsel %vm301, %v1387, %v1389
        %v1391 = vsel %vm301, %v1389, %v1387
        %v1392 = vmul.f32 %v1391, %v307
        %v1393 = vmul.f32 %v1390, %v308
        %1394 = vmatpush.msra.mxu0 0.0
        %1395 = vmatpush.msra.mxu0 0.0
        %1396 = vmatpush.msra.mxu0 0.0
        %1397 = vmatpush.msra.mxu0 0.0
        %1398 = vmatpush.msra.mxu0 0.0
        %1399 = vmatpush.msra.mxu0 0.0
        %1400 = vmatpush.msra.mxu0 0.0
        %1401 = vmatpush.msra.mxu0 0.0
        %1402 = vmatpush.msra.mxu0 0.0
        %1403 = vmatpush.msra.mxu0 0.0
        %1404 = vmatpush.msra.mxu0 0.0
        %1405 = vmatpush.msra.mxu0 0.0
        %1406 = vmatpush.msra.mxu0 0.0
        %1407 = vmatpush.msra.mxu0 0.0
        %1408 = vmatpush.msra.mxu0 0.0
        %1409 = vmatpush.msra.mxu0 %v1392
        %1410 = vmatmul.f32.gmra.mxu0 %v317
        %v1411 = vpop.f32.mrf.mxu0
        %v1412 = vadd.f32 0.0, %v1411
        %1413 = vdwg.mxu0
        %1414 = vmatpush.msra.mxu0 0.0
        %1415 = vmatpush.msra.mxu0 0.0
        %1416 = vmatpush.msra.mxu0 0.0
        %1417 = vmatpush.msra.mxu0 0.0
        %1418 = vmatpush.msra.mxu0 0.0
        %1419 = vmatpush.msra.mxu0 0.0
        %1420 = vmatpush.msra.mxu0 0.0
        %1421 = vmatpush.msra.mxu0 0.0
        %1422 = vmatpush.msra.mxu0 0.0
        %1423 = vmatpush.msra.mxu0 0.0
        %1424 = vmatpush.msra.mxu0 0.0
        %1425 = vmatpush.msra.mxu0 0.0
        %1426 = vmatpush.msra.mxu0 0.0
        %1427 = vmatpush.msra.mxu0 0.0
        %1428 = vmatpush.msra.mxu0 0.0
        %1429 = vmatpush.msra.mxu0 %v1393
        %1430 = vmatmul.f32.gmra.mxu0 %v317
        %v1431 = vpop.f32.mrf.mxu0
        %v1432 = vadd.f32 0.0, %v1431
        %1433 = vdwg.mxu0
        %1434 = vmatpush.msra.mxu0 0.0
        %1435 = vmatpush.msra.mxu0 0.0
        %1436 = vmatpush.msra.mxu0 0.0
        %1437 = vmatpush.msra.mxu0 0.0
        %1438 = vmatpush.msra.mxu0 0.0
        %1439 = vmatpush.msra.mxu0 0.0
        %1440 = vmatpush.msra.mxu0 0.0
        %1441 = vmatpush.msra.mxu0 0.0
        %1442 = vmatpush.msra.mxu0 0.0
        %1443 = vmatpush.msra.mxu0 0.0
        %1444 = vmatpush.msra.mxu0 0.0
        %1445 = vmatpush.msra.mxu0 0.0
        %1446 = vmatpush.msra.mxu0 0.0
        %1447 = vmatpush.msra.mxu0 0.0
        %1448 = vmatpush.msra.mxu0 0.0
        %1449 = vmatpush.msra.mxu0 %v1384
        %1450 = vmatmul.f32.gmra.mxu0 %v360
        %v1451 = vpop.f32.mrf.mxu0
        %v1452 = vadd.f32 %v1412, %v1451
        %1453 = vdwg.mxu0
        %1454 = vmatpush.msra.mxu0 0.0
        %1455 = vmatpush.msra.mxu0 0.0
        %1456 = vmatpush.msra.mxu0 0.0
        %1457 = vmatpush.msra.mxu0 0.0
        %1458 = vmatpush.msra.mxu0 0.0
        %1459 = vmatpush.msra.mxu0 0.0
        %1460 = vmatpush.msra.mxu0 0.0
        %1461 = vmatpush.msra.mxu0 0.0
        %1462 = vmatpush.msra.mxu0 0.0
        %1463 = vmatpush.msra.mxu0 0.0
        %1464 = vmatpush.msra.mxu0 0.0
        %1465 = vmatpush.msra.mxu0 0.0
        %1466 = vmatpush.msra.mxu0 0.0
        %1467 = vmatpush.msra.mxu0 0.0
        %1468 = vmatpush.msra.mxu0 0.0
        %1469 = vmatpush.msra.mxu0 %v1385
        %1470 = vmatmul.f32.gmra.mxu0 %v360
        %v1471 = vpop.f32.mrf.mxu0
        %v1472 = vadd.f32 %v1432, %v1471
        %1473 = vdwg.mxu0
        %1474 = vrot.lane.b32.xlu0 %v1376, 15
        %v1475 = vpop.permute.xlu0 %1474
        %1476 = vrot.lane.b32.xlu0 %v1377, 15
        %v1477 = vpop.permute.xlu0 %1476
        %v1478 = vsel %vm406, %v1475, %v1477
        %v1479 = vsel %vm406, %v1477, %v1475
        %v1480 = vmul.f32 %v1479, %v412
        %v1481 = vmul.f32 %v1478, %v413
        %1482 = vmatpush.msra.mxu0 0.0
        %1483 = vmatpush.msra.mxu0 0.0
        %1484 = vmatpush.msra.mxu0 0.0
        %1485 = vmatpush.msra.mxu0 0.0
        %1486 = vmatpush.msra.mxu0 0.0
        %1487 = vmatpush.msra.mxu0 0.0
        %1488 = vmatpush.msra.mxu0 0.0
        %1489 = vmatpush.msra.mxu0 0.0
        %1490 = vmatpush.msra.mxu0 0.0
        %1491 = vmatpush.msra.mxu0 0.0
        %1492 = vmatpush.msra.mxu0 0.0
        %1493 = vmatpush.msra.mxu0 0.0
        %1494 = vmatpush.msra.mxu0 0.0
        %1495 = vmatpush.msra.mxu0 0.0
        %1496 = vmatpush.msra.mxu0 0.0
        %1497 = vmatpush.msra.mxu0 %v1480
        %1498 = vmatmul.f32.gmra.mxu0 %v421
        %v1499 = vpop.f32.mrf.mxu0
        %v1500 = vadd.f32 0.0, %v1499
        %1501 = vdwg.mxu0
        %1502 = vmatpush.msra.mxu0 0.0
        %1503 = vmatpush.msra.mxu0 0.0
        %1504 = vmatpush.msra.mxu0 0.0
        %1505 = vmatpush.msra.mxu0 0.0
        %1506 = vmatpush.msra.mxu0 0.0
        %1507 = vmatpush.msra.mxu0 0.0
        %1508 = vmatpush.msra.mxu0 0.0
        %1509 = vmatpush.msra.mxu0 0.0
        %1510 = vmatpush.msra.mxu0 0.0
        %1511 = vmatpush.msra.mxu0 0.0
        %1512 = vmatpush.msra.mxu0 0.0
        %1513 = vmatpush.msra.mxu0 0.0
        %1514 = vmatpush.msra.mxu0 0.0
        %1515 = vmatpush.msra.mxu0 0.0
        %1516 = vmatpush.msra.mxu0 0.0
        %1517 = vmatpush.msra.mxu0 %v1481
        %1518 = vmatmul.f32.gmra.mxu0 %v421
        %v1519 = vpop.f32.mrf.mxu0
        %v1520 = vadd.f32 0.0, %v1519
        %1521 = vdwg.mxu0
        %v1522 = vadd.f32 %v1452, %v1500
        %v1523 = vadd.f32 %v1472, %v1520
        %1524 = vrot.lane.b32.xlu0 %v1376, 1
        %v1525 = vpop.permute.xlu0 %1524
        %1526 = vrot.lane.b32.xlu0 %v1377, 1
        %v1527 = vpop.permute.xlu0 %1526
        %v1528 = vsel %vm469, %v1525, %v1527
        %v1529 = vsel %vm469, %v1527, %v1525
        %v1530 = vmul.f32 %v1529, %v475
        %v1531 = vmul.f32 %v1528, %v476
        %1532 = vmatpush.msra.mxu0 0.0
        %1533 = vmatpush.msra.mxu0 0.0
        %1534 = vmatpush.msra.mxu0 0.0
        %1535 = vmatpush.msra.mxu0 0.0
        %1536 = vmatpush.msra.mxu0 0.0
        %1537 = vmatpush.msra.mxu0 0.0
        %1538 = vmatpush.msra.mxu0 0.0
        %1539 = vmatpush.msra.mxu0 0.0
        %1540 = vmatpush.msra.mxu0 0.0
        %1541 = vmatpush.msra.mxu0 0.0
        %1542 = vmatpush.msra.mxu0 0.0
        %1543 = vmatpush.msra.mxu0 0.0
        %1544 = vmatpush.msra.mxu0 0.0
        %1545 = vmatpush.msra.mxu0 0.0
        %1546 = vmatpush.msra.mxu0 0.0
        %1547 = vmatpush.msra.mxu0 %v1530
        %1548 = vmatmul.f32.gmra.mxu0 %v484
        %v1549 = vpop.f32.mrf.mxu0
        %v1550 = vadd.f32 0.0, %v1549
        %1551 = vdwg.mxu0
        %1552 = vmatpush.msra.mxu0 0.0
        %1553 = vmatpush.msra.mxu0 0.0
        %1554 = vmatpush.msra.mxu0 0.0
        %1555 = vmatpush.msra.mxu0 0.0
        %1556 = vmatpush.msra.mxu0 0.0
        %1557 = vmatpush.msra.mxu0 0.0
        %1558 = vmatpush.msra.mxu0 0.0
        %1559 = vmatpush.msra.mxu0 0.0
        %1560 = vmatpush.msra.mxu0 0.0
        %1561 = vmatpush.msra.mxu0 0.0
        %1562 = vmatpush.msra.mxu0 0.0
        %1563 = vmatpush.msra.mxu0 0.0
        %1564 = vmatpush.msra.mxu0 0.0
        %1565 = vmatpush.msra.mxu0 0.0
        %1566 = vmatpush.msra.mxu0 0.0
        %1567 = vmatpush.msra.mxu0 %v1531
        %1568 = vmatmul.f32.gmra.mxu0 %v484
        %v1569 = vpop.f32.mrf.mxu0
        %v1570 = vadd.f32 0.0, %v1569
        %1571 = vdwg.mxu0
        %v1572 = vadd.f32 %v1522, %v1550
        %v1573 = vadd.f32 %v1523, %v1570
        %v1574 = vmul.f32 %v1376, %v531
        %v1575 = vmul.f32 %v1377, %v532
        %1576 = vmatpush.msra.mxu0 0.0
        %1577 = vmatpush.msra.mxu0 0.0
        %1578 = vmatpush.msra.mxu0 0.0
        %1579 = vmatpush.msra.mxu0 0.0
        %1580 = vmatpush.msra.mxu0 0.0
        %1581 = vmatpush.msra.mxu0 0.0
        %1582 = vmatpush.msra.mxu0 0.0
        %1583 = vmatpush.msra.mxu0 0.0
        %1584 = vmatpush.msra.mxu0 0.0
        %1585 = vmatpush.msra.mxu0 0.0
        %1586 = vmatpush.msra.mxu0 0.0
        %1587 = vmatpush.msra.mxu0 0.0
        %1588 = vmatpush.msra.mxu0 0.0
        %1589 = vmatpush.msra.mxu0 0.0
        %1590 = vmatpush.msra.mxu0 0.0
        %1591 = vmatpush.msra.mxu0 %v1574
        %1592 = vmatmul.f32.gmra.mxu0 %v540
        %v1593 = vpop.f32.mrf.mxu0
        %v1594 = vadd.f32 0.0, %v1593
        %1595 = vdwg.mxu0
        %1596 = vmatpush.msra.mxu0 0.0
        %1597 = vmatpush.msra.mxu0 0.0
        %1598 = vmatpush.msra.mxu0 0.0
        %1599 = vmatpush.msra.mxu0 0.0
        %1600 = vmatpush.msra.mxu0 0.0
        %1601 = vmatpush.msra.mxu0 0.0
        %1602 = vmatpush.msra.mxu0 0.0
        %1603 = vmatpush.msra.mxu0 0.0
        %1604 = vmatpush.msra.mxu0 0.0
        %1605 = vmatpush.msra.mxu0 0.0
        %1606 = vmatpush.msra.mxu0 0.0
        %1607 = vmatpush.msra.mxu0 0.0
        %1608 = vmatpush.msra.mxu0 0.0
        %1609 = vmatpush.msra.mxu0 0.0
        %1610 = vmatpush.msra.mxu0 0.0
        %1611 = vmatpush.msra.mxu0 %v1575
        %1612 = vmatmul.f32.gmra.mxu0 %v540
        %v1613 = vpop.f32.mrf.mxu0
        %v1614 = vadd.f32 0.0, %v1613
        %1615 = vdwg.mxu0
        %v1616 = vadd.f32 %v1572, %v1594
        %v1617 = vadd.f32 %v1573, %v1614
        %1618 = vrot.lane.b32.xlu0 %v1376, 127
        %v1619 = vpop.permute.xlu0 %1618
        %1620 = vrot.lane.b32.xlu0 %v1377, 127
        %v1621 = vpop.permute.xlu0 %1620
        %v1622 = vsel %vm588, %v1619, %v1621
        %v1623 = vsel %vm588, %v1621, %v1619
        %v1624 = vmul.f32 %v1622, %v594
        %v1625 = vmul.f32 %v1623, %v595
        %1626 = vmatpush.msra.mxu0 0.0
        %1627 = vmatpush.msra.mxu0 0.0
        %1628 = vmatpush.msra.mxu0 0.0
        %1629 = vmatpush.msra.mxu0 0.0
        %1630 = vmatpush.msra.mxu0 0.0
        %1631 = vmatpush.msra.mxu0 0.0
        %1632 = vmatpush.msra.mxu0 0.0
        %1633 = vmatpush.msra.mxu0 0.0
        %1634 = vmatpush.msra.mxu0 0.0
        %1635 = vmatpush.msra.mxu0 0.0
        %1636 = vmatpush.msra.mxu0 0.0
        %1637 = vmatpush.msra.mxu0 0.0
        %1638 = vmatpush.msra.mxu0 0.0
        %1639 = vmatpush.msra.mxu0 0.0
        %1640 = vmatpush.msra.mxu0 0.0
        %1641 = vmatpush.msra.mxu0 %v1624
        %1642 = vmatmul.f32.gmra.mxu0 %v603
        %v1643 = vpop.f32.mrf.mxu0
        %v1644 = vadd.f32 0.0, %v1643
        %1645 = vdwg.mxu0
        %1646 = vmatpush.msra.mxu0 0.0
        %1647 = vmatpush.msra.mxu0 0.0
        %1648 = vmatpush.msra.mxu0 0.0
        %1649 = vmatpush.msra.mxu0 0.0
        %1650 = vmatpush.msra.mxu0 0.0
        %1651 = vmatpush.msra.mxu0 0.0
        %1652 = vmatpush.msra.mxu0 0.0
        %1653 = vmatpush.msra.mxu0 0.0
        %1654 = vmatpush.msra.mxu0 0.0
        %1655 = vmatpush.msra.mxu0 0.0
        %1656 = vmatpush.msra.mxu0 0.0
        %1657 = vmatpush.msra.mxu0 0.0
        %1658 = vmatpush.msra.mxu0 0.0
        %1659 = vmatpush.msra.mxu0 0.0
        %1660 = vmatpush.msra.mxu0 0.0
        %1661 = vmatpush.msra.mxu0 %v1625
        %1662 = vmatmul.f32.gmra.mxu0 %v603
        %v1663 = vpop.f32.mrf.mxu0
        %v1664 = vadd.f32 0.0, %v1663
        %1665 = vdwg.mxu0
        %v1666 = vadd.f32 %v1616, %v1644
        %v1667 = vadd.f32 %v1617, %v1664
        %1668 = vrot.lane.b32.xlu0 %v1376, 113
        %v1669 = vpop.permute.xlu0 %1668
        %1670 = vrot.lane.b32.xlu0 %v1377, 113
        %v1671 = vpop.permute.xlu0 %1670
        %v1672 = vsel %vm651, %v1669, %v1671
        %v1673 = vsel %vm651, %v1671, %v1669
        %v1674 = vmul.f32 %v1672, %v657
        %v1675 = vmul.f32 %v1673, %v658
        %1676 = vmatpush.msra.mxu0 0.0
        %1677 = vmatpush.msra.mxu0 0.0
        %1678 = vmatpush.msra.mxu0 0.0
        %1679 = vmatpush.msra.mxu0 0.0
        %1680 = vmatpush.msra.mxu0 0.0
        %1681 = vmatpush.msra.mxu0 0.0
        %1682 = vmatpush.msra.mxu0 0.0
        %1683 = vmatpush.msra.mxu0 0.0
        %1684 = vmatpush.msra.mxu0 0.0
        %1685 = vmatpush.msra.mxu0 0.0
        %1686 = vmatpush.msra.mxu0 0.0
        %1687 = vmatpush.msra.mxu0 0.0
        %1688 = vmatpush.msra.mxu0 0.0
        %1689 = vmatpush.msra.mxu0 0.0
        %1690 = vmatpush.msra.mxu0 0.0
        %1691 = vmatpush.msra.mxu0 %v1674
        %1692 = vmatmul.f32.gmra.mxu0 %v666
        %v1693 = vpop.f32.mrf.mxu0
        %v1694 = vadd.f32 0.0, %v1693
        %1695 = vdwg.mxu0
        %1696 = vmatpush.msra.mxu0 0.0
        %1697 = vmatpush.msra.mxu0 0.0
        %1698 = vmatpush.msra.mxu0 0.0
        %1699 = vmatpush.msra.mxu0 0.0
        %1700 = vmatpush.msra.mxu0 0.0
        %1701 = vmatpush.msra.mxu0 0.0
        %1702 = vmatpush.msra.mxu0 0.0
        %1703 = vmatpush.msra.mxu0 0.0
        %1704 = vmatpush.msra.mxu0 0.0
        %1705 = vmatpush.msra.mxu0 0.0
        %1706 = vmatpush.msra.mxu0 0.0
        %1707 = vmatpush.msra.mxu0 0.0
        %1708 = vmatpush.msra.mxu0 0.0
        %1709 = vmatpush.msra.mxu0 0.0
        %1710 = vmatpush.msra.mxu0 0.0
        %1711 = vmatpush.msra.mxu0 %v1675
        %1712 = vmatmul.f32.gmra.mxu0 %v666
        %v1713 = vpop.f32.mrf.mxu0
        %v1714 = vadd.f32 0.0, %v1713
        %1715 = vdwg.mxu0
        %v1716 = vadd.f32 %v1666, %v1694
        %v1717 = vadd.f32 %v1667, %v1714
        %1718 = vrot.lane.b32.xlu0 %v1376, 112
        %v1719 = vpop.permute.xlu0 %1718
        %1720 = vrot.lane.b32.xlu0 %v1377, 112
        %v1721 = vpop.permute.xlu0 %1720
        %v1722 = vsel %vm714, %v1719, %v1721
        %v1723 = vsel %vm714, %v1721, %v1719
        %v1724 = vmul.f32 %v1722, %v720
        %v1725 = vmul.f32 %v1723, %v721
        %1726 = vmatpush.msra.mxu0 0.0
        %1727 = vmatpush.msra.mxu0 0.0
        %1728 = vmatpush.msra.mxu0 0.0
        %1729 = vmatpush.msra.mxu0 0.0
        %1730 = vmatpush.msra.mxu0 0.0
        %1731 = vmatpush.msra.mxu0 0.0
        %1732 = vmatpush.msra.mxu0 0.0
        %1733 = vmatpush.msra.mxu0 0.0
        %1734 = vmatpush.msra.mxu0 0.0
        %1735 = vmatpush.msra.mxu0 0.0
        %1736 = vmatpush.msra.mxu0 0.0
        %1737 = vmatpush.msra.mxu0 0.0
        %1738 = vmatpush.msra.mxu0 0.0
        %1739 = vmatpush.msra.mxu0 0.0
        %1740 = vmatpush.msra.mxu0 0.0
        %1741 = vmatpush.msra.mxu0 %v1724
        %1742 = vmatmul.f32.gmra.mxu0 %v729
        %v1743 = vpop.f32.mrf.mxu0
        %v1744 = vadd.f32 0.0, %v1743
        %1745 = vdwg.mxu0
        %1746 = vmatpush.msra.mxu0 0.0
        %1747 = vmatpush.msra.mxu0 0.0
        %1748 = vmatpush.msra.mxu0 0.0
        %1749 = vmatpush.msra.mxu0 0.0
        %1750 = vmatpush.msra.mxu0 0.0
        %1751 = vmatpush.msra.mxu0 0.0
        %1752 = vmatpush.msra.mxu0 0.0
        %1753 = vmatpush.msra.mxu0 0.0
        %1754 = vmatpush.msra.mxu0 0.0
        %1755 = vmatpush.msra.mxu0 0.0
        %1756 = vmatpush.msra.mxu0 0.0
        %1757 = vmatpush.msra.mxu0 0.0
        %1758 = vmatpush.msra.mxu0 0.0
        %1759 = vmatpush.msra.mxu0 0.0
        %1760 = vmatpush.msra.mxu0 0.0
        %1761 = vmatpush.msra.mxu0 %v1725
        %1762 = vmatmul.f32.gmra.mxu0 %v729
        %v1763 = vpop.f32.mrf.mxu0
        %v1764 = vadd.f32 0.0, %v1763
        %1765 = vdwg.mxu0
        %v1766 = vadd.f32 %v1716, %v1744
        %v1767 = vadd.f32 %v1717, %v1764
        %1768 = vrot.lane.b32.xlu0 %v1376, 111
        %v1769 = vpop.permute.xlu0 %1768
        %1770 = vrot.lane.b32.xlu0 %v1377, 111
        %v1771 = vpop.permute.xlu0 %1770
        %v1772 = vsel %vm777, %v1769, %v1771
        %v1773 = vsel %vm777, %v1771, %v1769
        %v1774 = vmul.f32 %v1772, %v783
        %v1775 = vmul.f32 %v1773, %v784
        %1776 = vmatpush.msra.mxu0 0.0
        %1777 = vmatpush.msra.mxu0 0.0
        %1778 = vmatpush.msra.mxu0 0.0
        %1779 = vmatpush.msra.mxu0 0.0
        %1780 = vmatpush.msra.mxu0 0.0
        %1781 = vmatpush.msra.mxu0 0.0
        %1782 = vmatpush.msra.mxu0 0.0
        %1783 = vmatpush.msra.mxu0 0.0
        %1784 = vmatpush.msra.mxu0 0.0
        %1785 = vmatpush.msra.mxu0 0.0
        %1786 = vmatpush.msra.mxu0 0.0
        %1787 = vmatpush.msra.mxu0 0.0
        %1788 = vmatpush.msra.mxu0 0.0
        %1789 = vmatpush.msra.mxu0 0.0
        %1790 = vmatpush.msra.mxu0 0.0
        %1791 = vmatpush.msra.mxu0 %v1774
        %1792 = vmatmul.f32.gmra.mxu0 %v792
        %v1793 = vpop.f32.mrf.mxu0
        %v1794 = vadd.f32 0.0, %v1793
        %1795 = vdwg.mxu0
        %1796 = vmatpush.msra.mxu0 0.0
        %1797 = vmatpush.msra.mxu0 0.0
        %1798 = vmatpush.msra.mxu0 0.0
        %1799 = vmatpush.msra.mxu0 0.0
        %1800 = vmatpush.msra.mxu0 0.0
        %1801 = vmatpush.msra.mxu0 0.0
        %1802 = vmatpush.msra.mxu0 0.0
        %1803 = vmatpush.msra.mxu0 0.0
        %1804 = vmatpush.msra.mxu0 0.0
        %1805 = vmatpush.msra.mxu0 0.0
        %1806 = vmatpush.msra.mxu0 0.0
        %1807 = vmatpush.msra.mxu0 0.0
        %1808 = vmatpush.msra.mxu0 0.0
        %1809 = vmatpush.msra.mxu0 0.0
        %1810 = vmatpush.msra.mxu0 0.0
        %1811 = vmatpush.msra.mxu0 %v1775
        %1812 = vmatmul.f32.gmra.mxu0 %v792
        %v1813 = vpop.f32.mrf.mxu0
        %v1814 = vadd.f32 0.0, %v1813
        %1815 = vdwg.mxu0
        %v1816 = vadd.f32 %v1766, %v1794
        %v1817 = vadd.f32 %v1767, %v1814
        %v1818 = vadd.f32 %v1816, %v840
        %v1819 = vadd.f32 %v1817, %v840
        %v1820 = vmax.f32 %v1818, 0.0
        %v1821 = vmax.f32 %v1819, 0.0
        %v1822 = vmul.f32 %v850, %v1820
        %v1823 = vmul.f32 %v850, %v1821
        %v1824 = vadd.f32 %v1822, %v858
        %v1825 = vadd.f32 %v1823, %v858
        %1826 = vrot.lane.b32.xlu0 %v1824, 17
        %v1827 = vpop.permute.xlu0 %1826
        %1828 = vrot.lane.b32.xlu0 %v1825, 17
        %v1829 = vpop.permute.xlu0 %1828
        %v1830 = vsel %vm285, %v1827, %v1829
        %v1831 = vsel %vm285, %v1829, %v1827
        %v1832 = vmul.f32 %v1831, %v290
        %v1833 = vmul.f32 %v1830, %v291
        %1834 = vrot.lane.b32.xlu0 %v1824, 16
        %v1835 = vpop.permute.xlu0 %1834
        %1836 = vrot.lane.b32.xlu0 %v1825, 16
        %v1837 = vpop.permute.xlu0 %1836
        %v1838 = vsel %vm301, %v1835, %v1837
        %v1839 = vsel %vm301, %v1837, %v1835
        %v1840 = vmul.f32 %v1839, %v307
        %v1841 = vmul.f32 %v1838, %v308
        %1842 = vmatpush.msra.mxu0 0.0
        %1843 = vmatpush.msra.mxu0 0.0
        %1844 = vmatpush.msra.mxu0 0.0
        %1845 = vmatpush.msra.mxu0 0.0
        %1846 = vmatpush.msra.mxu0 0.0
        %1847 = vmatpush.msra.mxu0 0.0
        %1848 = vmatpush.msra.mxu0 0.0
        %1849 = vmatpush.msra.mxu0 0.0
        %1850 = vmatpush.msra.mxu0 0.0
        %1851 = vmatpush.msra.mxu0 0.0
        %1852 = vmatpush.msra.mxu0 0.0
        %1853 = vmatpush.msra.mxu0 0.0
        %1854 = vmatpush.msra.mxu0 0.0
        %1855 = vmatpush.msra.mxu0 0.0
        %1856 = vmatpush.msra.mxu0 0.0
        %1857 = vmatpush.msra.mxu0 %v1840
        %1858 = vmatmul.f32.gmra.mxu0 %v883
        %v1859 = vpop.f32.mrf.mxu0
        %v1860 = vadd.f32 0.0, %v1859
        %1861 = vdwg.mxu0
        %1862 = vmatpush.msra.mxu0 0.0
        %1863 = vmatpush.msra.mxu0 0.0
        %1864 = vmatpush.msra.mxu0 0.0
        %1865 = vmatpush.msra.mxu0 0.0
        %1866 = vmatpush.msra.mxu0 0.0
        %1867 = vmatpush.msra.mxu0 0.0
        %1868 = vmatpush.msra.mxu0 0.0
        %1869 = vmatpush.msra.mxu0 0.0
        %1870 = vmatpush.msra.mxu0 0.0
        %1871 = vmatpush.msra.mxu0 0.0
        %1872 = vmatpush.msra.mxu0 0.0
        %1873 = vmatpush.msra.mxu0 0.0
        %1874 = vmatpush.msra.mxu0 0.0
        %1875 = vmatpush.msra.mxu0 0.0
        %1876 = vmatpush.msra.mxu0 0.0
        %1877 = vmatpush.msra.mxu0 %v1841
        %1878 = vmatmul.f32.gmra.mxu0 %v883
        %v1879 = vpop.f32.mrf.mxu0
        %v1880 = vadd.f32 0.0, %v1879
        %1881 = vdwg.mxu0
        %1882 = vmatpush.msra.mxu0 0.0
        %1883 = vmatpush.msra.mxu0 0.0
        %1884 = vmatpush.msra.mxu0 0.0
        %1885 = vmatpush.msra.mxu0 0.0
        %1886 = vmatpush.msra.mxu0 0.0
        %1887 = vmatpush.msra.mxu0 0.0
        %1888 = vmatpush.msra.mxu0 0.0
        %1889 = vmatpush.msra.mxu0 0.0
        %1890 = vmatpush.msra.mxu0 0.0
        %1891 = vmatpush.msra.mxu0 0.0
        %1892 = vmatpush.msra.mxu0 0.0
        %1893 = vmatpush.msra.mxu0 0.0
        %1894 = vmatpush.msra.mxu0 0.0
        %1895 = vmatpush.msra.mxu0 0.0
        %1896 = vmatpush.msra.mxu0 0.0
        %1897 = vmatpush.msra.mxu0 %v1832
        %1898 = vmatmul.f32.gmra.mxu0 %v926
        %v1899 = vpop.f32.mrf.mxu0
        %v1900 = vadd.f32 %v1860, %v1899
        %1901 = vdwg.mxu0
        %1902 = vmatpush.msra.mxu0 0.0
        %1903 = vmatpush.msra.mxu0 0.0
        %1904 = vmatpush.msra.mxu0 0.0
        %1905 = vmatpush.msra.mxu0 0.0
        %1906 = vmatpush.msra.mxu0 0.0
        %1907 = vmatpush.msra.mxu0 0.0
        %1908 = vmatpush.msra.mxu0 0.0
        %1909 = vmatpush.msra.mxu0 0.0
        %1910 = vmatpush.msra.mxu0 0.0
        %1911 = vmatpush.msra.mxu0 0.0
        %1912 = vmatpush.msra.mxu0 0.0
        %1913 = vmatpush.msra.mxu0 0.0
        %1914 = vmatpush.msra.mxu0 0.0
        %1915 = vmatpush.msra.mxu0 0.0
        %1916 = vmatpush.msra.mxu0 0.0
        %1917 = vmatpush.msra.mxu0 %v1833
        %1918 = vmatmul.f32.gmra.mxu0 %v926
        %v1919 = vpop.f32.mrf.mxu0
        %v1920 = vadd.f32 %v1880, %v1919
        %1921 = vdwg.mxu0
        %1922 = vrot.lane.b32.xlu0 %v1824, 15
        %v1923 = vpop.permute.xlu0 %1922
        %1924 = vrot.lane.b32.xlu0 %v1825, 15
        %v1925 = vpop.permute.xlu0 %1924
        %v1926 = vsel %vm406, %v1923, %v1925
        %v1927 = vsel %vm406, %v1925, %v1923
        %v1928 = vmul.f32 %v1927, %v412
        %v1929 = vmul.f32 %v1926, %v413
        %1930 = vmatpush.msra.mxu0 0.0
        %1931 = vmatpush.msra.mxu0 0.0
        %1932 = vmatpush.msra.mxu0 0.0
        %1933 = vmatpush.msra.mxu0 0.0
        %1934 = vmatpush.msra.mxu0 0.0
        %1935 = vmatpush.msra.mxu0 0.0
        %1936 = vmatpush.msra.mxu0 0.0
        %1937 = vmatpush.msra.mxu0 0.0
        %1938 = vmatpush.msra.mxu0 0.0
        %1939 = vmatpush.msra.mxu0 0.0
        %1940 = vmatpush.msra.mxu0 0.0
        %1941 = vmatpush.msra.mxu0 0.0
        %1942 = vmatpush.msra.mxu0 0.0
        %1943 = vmatpush.msra.mxu0 0.0
        %1944 = vmatpush.msra.mxu0 0.0
        %1945 = vmatpush.msra.mxu0 %v1928
        %1946 = vmatmul.f32.gmra.mxu0 %v979
        %v1947 = vpop.f32.mrf.mxu0
        %v1948 = vadd.f32 0.0, %v1947
        %1949 = vdwg.mxu0
        %1950 = vmatpush.msra.mxu0 0.0
        %1951 = vmatpush.msra.mxu0 0.0
        %1952 = vmatpush.msra.mxu0 0.0
        %1953 = vmatpush.msra.mxu0 0.0
        %1954 = vmatpush.msra.mxu0 0.0
        %1955 = vmatpush.msra.mxu0 0.0
        %1956 = vmatpush.msra.mxu0 0.0
        %1957 = vmatpush.msra.mxu0 0.0
        %1958 = vmatpush.msra.mxu0 0.0
        %1959 = vmatpush.msra.mxu0 0.0
        %1960 = vmatpush.msra.mxu0 0.0
        %1961 = vmatpush.msra.mxu0 0.0
        %1962 = vmatpush.msra.mxu0 0.0
        %1963 = vmatpush.msra.mxu0 0.0
        %1964 = vmatpush.msra.mxu0 0.0
        %1965 = vmatpush.msra.mxu0 %v1929
        %1966 = vmatmul.f32.gmra.mxu0 %v979
        %v1967 = vpop.f32.mrf.mxu0
        %v1968 = vadd.f32 0.0, %v1967
        %1969 = vdwg.mxu0
        %v1970 = vadd.f32 %v1900, %v1948
        %v1971 = vadd.f32 %v1920, %v1968
        %1972 = vrot.lane.b32.xlu0 %v1824, 1
        %v1973 = vpop.permute.xlu0 %1972
        %1974 = vrot.lane.b32.xlu0 %v1825, 1
        %v1975 = vpop.permute.xlu0 %1974
        %v1976 = vsel %vm469, %v1973, %v1975
        %v1977 = vsel %vm469, %v1975, %v1973
        %v1978 = vmul.f32 %v1977, %v475
        %v1979 = vmul.f32 %v1976, %v476
        %1980 = vmatpush.msra.mxu0 0.0
        %1981 = vmatpush.msra.mxu0 0.0
        %1982 = vmatpush.msra.mxu0 0.0
        %1983 = vmatpush.msra.mxu0 0.0
        %1984 = vmatpush.msra.mxu0 0.0
        %1985 = vmatpush.msra.mxu0 0.0
        %1986 = vmatpush.msra.mxu0 0.0
        %1987 = vmatpush.msra.mxu0 0.0
        %1988 = vmatpush.msra.mxu0 0.0
        %1989 = vmatpush.msra.mxu0 0.0
        %1990 = vmatpush.msra.mxu0 0.0
        %1991 = vmatpush.msra.mxu0 0.0
        %1992 = vmatpush.msra.mxu0 0.0
        %1993 = vmatpush.msra.mxu0 0.0
        %1994 = vmatpush.msra.mxu0 0.0
        %1995 = vmatpush.msra.mxu0 %v1978
        %1996 = vmatmul.f32.gmra.mxu0 %v1034
        %v1997 = vpop.f32.mrf.mxu0
        %v1998 = vadd.f32 0.0, %v1997
        %1999 = vdwg.mxu0
        %2000 = vmatpush.msra.mxu0 0.0
        %2001 = vmatpush.msra.mxu0 0.0
        %2002 = vmatpush.msra.mxu0 0.0
        %2003 = vmatpush.msra.mxu0 0.0
        %2004 = vmatpush.msra.mxu0 0.0
        %2005 = vmatpush.msra.mxu0 0.0
        %2006 = vmatpush.msra.mxu0 0.0
        %2007 = vmatpush.msra.mxu0 0.0
        %2008 = vmatpush.msra.mxu0 0.0
        %2009 = vmatpush.msra.mxu0 0.0
        %2010 = vmatpush.msra.mxu0 0.0
        %2011 = vmatpush.msra.mxu0 0.0
        %2012 = vmatpush.msra.mxu0 0.0
        %2013 = vmatpush.msra.mxu0 0.0
        %2014 = vmatpush.msra.mxu0 0.0
        %2015 = vmatpush.msra.mxu0 %v1979
        %2016 = vmatmul.f32.gmra.mxu0 %v1034
        %v2017 = vpop.f32.mrf.mxu0
        %v2018 = vadd.f32 0.0, %v2017
        %2019 = vdwg.mxu0
        %v2020 = vadd.f32 %v1970, %v1998
        %v2021 = vadd.f32 %v1971, %v2018
        %v2022 = vmul.f32 %v1824, %v531
        %v2023 = vmul.f32 %v1825, %v532
        %2024 = vmatpush.msra.mxu0 0.0
        %2025 = vmatpush.msra.mxu0 0.0
        %2026 = vmatpush.msra.mxu0 0.0
        %2027 = vmatpush.msra.mxu0 0.0
        %2028 = vmatpush.msra.mxu0 0.0
        %2029 = vmatpush.msra.mxu0 0.0
        %2030 = vmatpush.msra.mxu0 0.0
        %2031 = vmatpush.msra.mxu0 0.0
        %2032 = vmatpush.msra.mxu0 0.0
        %2033 = vmatpush.msra.mxu0 0.0
        %2034 = vmatpush.msra.mxu0 0.0
        %2035 = vmatpush.msra.mxu0 0.0
        %2036 = vmatpush.msra.mxu0 0.0
        %2037 = vmatpush.msra.mxu0 0.0
        %2038 = vmatpush.msra.mxu0 0.0
        %2039 = vmatpush.msra.mxu0 %v2022
        %2040 = vmatmul.f32.gmra.mxu0 %v1083
        %v2041 = vpop.f32.mrf.mxu0
        %v2042 = vadd.f32 0.0, %v2041
        %2043 = vdwg.mxu0
        %2044 = vmatpush.msra.mxu0 0.0
        %2045 = vmatpush.msra.mxu0 0.0
        %2046 = vmatpush.msra.mxu0 0.0
        %2047 = vmatpush.msra.mxu0 0.0
        %2048 = vmatpush.msra.mxu0 0.0
        %2049 = vmatpush.msra.mxu0 0.0
        %2050 = vmatpush.msra.mxu0 0.0
        %2051 = vmatpush.msra.mxu0 0.0
        %2052 = vmatpush.msra.mxu0 0.0
        %2053 = vmatpush.msra.mxu0 0.0
        %2054 = vmatpush.msra.mxu0 0.0
        %2055 = vmatpush.msra.mxu0 0.0
        %2056 = vmatpush.msra.mxu0 0.0
        %2057 = vmatpush.msra.mxu0 0.0
        %2058 = vmatpush.msra.mxu0 0.0
        %2059 = vmatpush.msra.mxu0 %v2023
        %2060 = vmatmul.f32.gmra.mxu0 %v1083
        %v2061 = vpop.f32.mrf.mxu0
        %v2062 = vadd.f32 0.0, %v2061
        %2063 = vdwg.mxu0
        %v2064 = vadd.f32 %v2020, %v2042
        %v2065 = vadd.f32 %v2021, %v2062
        %2066 = vrot.lane.b32.xlu0 %v1824, 127
        %v2067 = vpop.permute.xlu0 %2066
        %2068 = vrot.lane.b32.xlu0 %v1825, 127
        %v2069 = vpop.permute.xlu0 %2068
        %v2070 = vsel %vm588, %v2067, %v2069
        %v2071 = vsel %vm588, %v2069, %v2067
        %v2072 = vmul.f32 %v2070, %v594
        %v2073 = vmul.f32 %v2071, %v595
        %2074 = vmatpush.msra.mxu0 0.0
        %2075 = vmatpush.msra.mxu0 0.0
        %2076 = vmatpush.msra.mxu0 0.0
        %2077 = vmatpush.msra.mxu0 0.0
        %2078 = vmatpush.msra.mxu0 0.0
        %2079 = vmatpush.msra.mxu0 0.0
        %2080 = vmatpush.msra.mxu0 0.0
        %2081 = vmatpush.msra.mxu0 0.0
        %2082 = vmatpush.msra.mxu0 0.0
        %2083 = vmatpush.msra.mxu0 0.0
        %2084 = vmatpush.msra.mxu0 0.0
        %2085 = vmatpush.msra.mxu0 0.0
        %2086 = vmatpush.msra.mxu0 0.0
        %2087 = vmatpush.msra.mxu0 0.0
        %2088 = vmatpush.msra.mxu0 0.0
        %2089 = vmatpush.msra.mxu0 %v2072
        %2090 = vmatmul.f32.gmra.mxu0 %v1138
        %v2091 = vpop.f32.mrf.mxu0
        %v2092 = vadd.f32 0.0, %v2091
        %2093 = vdwg.mxu0
        %2094 = vmatpush.msra.mxu0 0.0
        %2095 = vmatpush.msra.mxu0 0.0
        %2096 = vmatpush.msra.mxu0 0.0
        %2097 = vmatpush.msra.mxu0 0.0
        %2098 = vmatpush.msra.mxu0 0.0
        %2099 = vmatpush.msra.mxu0 0.0
        %2100 = vmatpush.msra.mxu0 0.0
        %2101 = vmatpush.msra.mxu0 0.0
        %2102 = vmatpush.msra.mxu0 0.0
        %2103 = vmatpush.msra.mxu0 0.0
        %2104 = vmatpush.msra.mxu0 0.0
        %2105 = vmatpush.msra.mxu0 0.0
        %2106 = vmatpush.msra.mxu0 0.0
        %2107 = vmatpush.msra.mxu0 0.0
        %2108 = vmatpush.msra.mxu0 0.0
        %2109 = vmatpush.msra.mxu0 %v2073
        %2110 = vmatmul.f32.gmra.mxu0 %v1138
        %v2111 = vpop.f32.mrf.mxu0
        %v2112 = vadd.f32 0.0, %v2111
        %2113 = vdwg.mxu0
        %v2114 = vadd.f32 %v2064, %v2092
        %v2115 = vadd.f32 %v2065, %v2112
        %2116 = vrot.lane.b32.xlu0 %v1824, 113
        %v2117 = vpop.permute.xlu0 %2116
        %2118 = vrot.lane.b32.xlu0 %v1825, 113
        %v2119 = vpop.permute.xlu0 %2118
        %v2120 = vsel %vm651, %v2117, %v2119
        %v2121 = vsel %vm651, %v2119, %v2117
        %v2122 = vmul.f32 %v2120, %v657
        %v2123 = vmul.f32 %v2121, %v658
        %2124 = vmatpush.msra.mxu0 0.0
        %2125 = vmatpush.msra.mxu0 0.0
        %2126 = vmatpush.msra.mxu0 0.0
        %2127 = vmatpush.msra.mxu0 0.0
        %2128 = vmatpush.msra.mxu0 0.0
        %2129 = vmatpush.msra.mxu0 0.0
        %2130 = vmatpush.msra.mxu0 0.0
        %2131 = vmatpush.msra.mxu0 0.0
        %2132 = vmatpush.msra.mxu0 0.0
        %2133 = vmatpush.msra.mxu0 0.0
        %2134 = vmatpush.msra.mxu0 0.0
        %2135 = vmatpush.msra.mxu0 0.0
        %2136 = vmatpush.msra.mxu0 0.0
        %2137 = vmatpush.msra.mxu0 0.0
        %2138 = vmatpush.msra.mxu0 0.0
        %2139 = vmatpush.msra.mxu0 %v2122
        %2140 = vmatmul.f32.gmra.mxu0 %v1193
        %v2141 = vpop.f32.mrf.mxu0
        %v2142 = vadd.f32 0.0, %v2141
        %2143 = vdwg.mxu0
        %2144 = vmatpush.msra.mxu0 0.0
        %2145 = vmatpush.msra.mxu0 0.0
        %2146 = vmatpush.msra.mxu0 0.0
        %2147 = vmatpush.msra.mxu0 0.0
        %2148 = vmatpush.msra.mxu0 0.0
        %2149 = vmatpush.msra.mxu0 0.0
        %2150 = vmatpush.msra.mxu0 0.0
        %2151 = vmatpush.msra.mxu0 0.0
        %2152 = vmatpush.msra.mxu0 0.0
        %2153 = vmatpush.msra.mxu0 0.0
        %2154 = vmatpush.msra.mxu0 0.0
        %2155 = vmatpush.msra.mxu0 0.0
        %2156 = vmatpush.msra.mxu0 0.0
        %2157 = vmatpush.msra.mxu0 0.0
        %2158 = vmatpush.msra.mxu0 0.0
        %2159 = vmatpush.msra.mxu0 %v2123
        %2160 = vmatmul.f32.gmra.mxu0 %v1193
        %v2161 = vpop.f32.mrf.mxu0
        %v2162 = vadd.f32 0.0, %v2161
        %2163 = vdwg.mxu0
        %v2164 = vadd.f32 %v2114, %v2142
        %v2165 = vadd.f32 %v2115, %v2162
        %2166 = vrot.lane.b32.xlu0 %v1824, 112
        %v2167 = vpop.permute.xlu0 %2166
        %2168 = vrot.lane.b32.xlu0 %v1825, 112
        %v2169 = vpop.permute.xlu0 %2168
        %v2170 = vsel %vm714, %v2167, %v2169
        %v2171 = vsel %vm714, %v2169, %v2167
        %v2172 = vmul.f32 %v2170, %v720
        %v2173 = vmul.f32 %v2171, %v721
        %2174 = vmatpush.msra.mxu0 0.0
        %2175 = vmatpush.msra.mxu0 0.0
        %2176 = vmatpush.msra.mxu0 0.0
        %2177 = vmatpush.msra.mxu0 0.0
        %2178 = vmatpush.msra.mxu0 0.0
        %2179 = vmatpush.msra.mxu0 0.0
        %2180 = vmatpush.msra.mxu0 0.0
        %2181 = vmatpush.msra.mxu0 0.0
        %2182 = vmatpush.msra.mxu0 0.0
        %2183 = vmatpush.msra.mxu0 0.0
        %2184 = vmatpush.msra.mxu0 0.0
        %2185 = vmatpush.msra.mxu0 0.0
        %2186 = vmatpush.msra.mxu0 0.0
        %2187 = vmatpush.msra.mxu0 0.0
        %2188 = vmatpush.msra.mxu0 0.0
        %2189 = vmatpush.msra.mxu0 %v2172
        %2190 = vmatmul.f32.gmra.mxu0 %v1248
        %v2191 = vpop.f32.mrf.mxu0
        %v2192 = vadd.f32 0.0, %v2191
        %2193 = vdwg.mxu0
        %2194 = vmatpush.msra.mxu0 0.0
        %2195 = vmatpush.msra.mxu0 0.0
        %2196 = vmatpush.msra.mxu0 0.0
        %2197 = vmatpush.msra.mxu0 0.0
        %2198 = vmatpush.msra.mxu0 0.0
        %2199 = vmatpush.msra.mxu0 0.0
        %2200 = vmatpush.msra.mxu0 0.0
        %2201 = vmatpush.msra.mxu0 0.0
        %2202 = vmatpush.msra.mxu0 0.0
        %2203 = vmatpush.msra.mxu0 0.0
        %2204 = vmatpush.msra.mxu0 0.0
        %2205 = vmatpush.msra.mxu0 0.0
        %2206 = vmatpush.msra.mxu0 0.0
        %2207 = vmatpush.msra.mxu0 0.0
        %2208 = vmatpush.msra.mxu0 0.0
        %2209 = vmatpush.msra.mxu0 %v2173
        %2210 = vmatmul.f32.gmra.mxu0 %v1248
        %v2211 = vpop.f32.mrf.mxu0
        %v2212 = vadd.f32 0.0, %v2211
        %2213 = vdwg.mxu0
        %v2214 = vadd.f32 %v2164, %v2192
        %v2215 = vadd.f32 %v2165, %v2212
        %2216 = vrot.lane.b32.xlu0 %v1824, 111
        %v2217 = vpop.permute.xlu0 %2216
        %2218 = vrot.lane.b32.xlu0 %v1825, 111
        %v2219 = vpop.permute.xlu0 %2218
        %v2220 = vsel %vm777, %v2217, %v2219
        %v2221 = vsel %vm777, %v2219, %v2217
        %v2222 = vmul.f32 %v2220, %v783
        %v2223 = vmul.f32 %v2221, %v784
        %2224 = vmatpush.msra.mxu0 0.0
        %2225 = vmatpush.msra.mxu0 0.0
        %2226 = vmatpush.msra.mxu0 0.0
        %2227 = vmatpush.msra.mxu0 0.0
        %2228 = vmatpush.msra.mxu0 0.0
        %2229 = vmatpush.msra.mxu0 0.0
        %2230 = vmatpush.msra.mxu0 0.0
        %2231 = vmatpush.msra.mxu0 0.0
        %2232 = vmatpush.msra.mxu0 0.0
        %2233 = vmatpush.msra.mxu0 0.0
        %2234 = vmatpush.msra.mxu0 0.0
        %2235 = vmatpush.msra.mxu0 0.0
        %2236 = vmatpush.msra.mxu0 0.0
        %2237 = vmatpush.msra.mxu0 0.0
        %2238 = vmatpush.msra.mxu0 0.0
        %2239 = vmatpush.msra.mxu0 %v2222
        %2240 = vmatmul.f32.gmra.mxu0 %v1303
        %v2241 = vpop.f32.mrf.mxu0
        %v2242 = vadd.f32 0.0, %v2241
        %2243 = vdwg.mxu0
        %2244 = vmatpush.msra.mxu0 0.0
        %2245 = vmatpush.msra.mxu0 0.0
        %2246 = vmatpush.msra.mxu0 0.0
        %2247 = vmatpush.msra.mxu0 0.0
        %2248 = vmatpush.msra.mxu0 0.0
        %2249 = vmatpush.msra.mxu0 0.0
        %2250 = vmatpush.msra.mxu0 0.0
        %2251 = vmatpush.msra.mxu0 0.0
        %2252 = vmatpush.msra.mxu0 0.0
        %2253 = vmatpush.msra.mxu0 0.0
        %2254 = vmatpush.msra.mxu0 0.0
        %2255 = vmatpush.msra.mxu0 0.0
        %2256 = vmatpush.msra.mxu0 0.0
        %2257 = vmatpush.msra.mxu0 0.0
        %2258 = vmatpush.msra.mxu0 0.0
        %2259 = vmatpush.msra.mxu0 %v2223
        %2260 = vmatmul.f32.gmra.mxu0 %v1303
        %v2261 = vpop.f32.mrf.mxu0
        %v2262 = vadd.f32 0.0, %v2261
        %2263 = vdwg.mxu0
        %v2264 = vadd.f32 %v2214, %v2242
        %v2265 = vadd.f32 %v2215, %v2262
        %v2266 = vadd.f32 %v2264, %v1352
        %v2267 = vadd.f32 %v2265, %v1352
        %v2268 = vmax.f32 %v2266, 0.0
        %v2269 = vmax.f32 %v2267, 0.0
        %v2270 = vmul.f32 %v1363, %v2268
        %v2271 = vmul.f32 %v1363, %v2269
        %v2272 = vadd.f32 %v2270, %v1372
        %v2273 = vadd.f32 %v2271, %v1372
        %v2274 = vadd.f32 %v2272, %v277
        %v2275 = vadd.f32 %v2273, %v278
        %2276 = vrot.lane.b32.xlu0 %v2274, 17
        %v2277 = vpop.permute.xlu0 %2276
        %2278 = vrot.lane.b32.xlu0 %v2275, 17
        %v2279 = vpop.permute.xlu0 %2278
        %v2280 = vsel %vm285, %v2277, %v2279
        %v2281 = vsel %vm285, %v2279, %v2277
        %v2282 = vmul.f32 %v2281, %v290
        %v2283 = vmul.f32 %v2280, %v291
        %s2284 = scalar_lea.vmem %s1, 144
        %v2285 = vld [vmem:[%s2284] sm:$0xff]
        %2286 = vrot.lane.b32.xlu0 %v2274, 16
        %v2287 = vpop.permute.xlu0 %2286
        %2288 = vrot.lane.b32.xlu0 %v2275, 16
        %v2289 = vpop.permute.xlu0 %2288
        %v2290 = vsel %vm301, %v2287, %v2289
        %v2291 = vsel %vm301, %v2289, %v2287
        %v2292 = vmul.f32 %v2291, %v307
        %v2293 = vmul.f32 %v2290, %v308
        %s2294 = scalar_lea.vmem %s1, 152
        %v2295 = vld [vmem:[%s2294] sm:$0xff]
        %v2297 = vsel %vm315, %v2295, 0
        %2299 = vmatpush.msra.mxu0 0.0
        %2300 = vmatpush.msra.mxu0 0.0
        %2301 = vmatpush.msra.mxu0 0.0
        %2302 = vmatpush.msra.mxu0 0.0
        %2303 = vmatpush.msra.mxu0 0.0
        %2304 = vmatpush.msra.mxu0 0.0
        %2305 = vmatpush.msra.mxu0 0.0
        %2306 = vmatpush.msra.mxu0 0.0
        %2307 = vmatpush.msra.mxu0 0.0
        %2308 = vmatpush.msra.mxu0 0.0
        %2309 = vmatpush.msra.mxu0 0.0
        %2310 = vmatpush.msra.mxu0 0.0
        %2311 = vmatpush.msra.mxu0 0.0
        %2312 = vmatpush.msra.mxu0 0.0
        %2313 = vmatpush.msra.mxu0 0.0
        %2314 = vmatpush.msra.mxu0 %v2292
        %2315 = vmatmul.f32.gmra.mxu0 %v2297
        %v2316 = vpop.f32.mrf.mxu0
        %v2317 = vadd.f32 0.0, %v2316
        %2318 = vdwg.mxu0
        %2319 = vmatpush.msra.mxu0 0.0
        %2320 = vmatpush.msra.mxu0 0.0
        %2321 = vmatpush.msra.mxu0 0.0
        %2322 = vmatpush.msra.mxu0 0.0
        %2323 = vmatpush.msra.mxu0 0.0
        %2324 = vmatpush.msra.mxu0 0.0
        %2325 = vmatpush.msra.mxu0 0.0
        %2326 = vmatpush.msra.mxu0 0.0
        %2327 = vmatpush.msra.mxu0 0.0
        %2328 = vmatpush.msra.mxu0 0.0
        %2329 = vmatpush.msra.mxu0 0.0
        %2330 = vmatpush.msra.mxu0 0.0
        %2331 = vmatpush.msra.mxu0 0.0
        %2332 = vmatpush.msra.mxu0 0.0
        %2333 = vmatpush.msra.mxu0 0.0
        %2334 = vmatpush.msra.mxu0 %v2293
        %2335 = vmatmul.f32.gmra.mxu0 %v2297
        %v2336 = vpop.f32.mrf.mxu0
        %v2337 = vadd.f32 0.0, %v2336
        %2338 = vdwg.mxu0
        %v2340 = vsel %vm315, %v2285, 0
        %2342 = vmatpush.msra.mxu0 0.0
        %2343 = vmatpush.msra.mxu0 0.0
        %2344 = vmatpush.msra.mxu0 0.0
        %2345 = vmatpush.msra.mxu0 0.0
        %2346 = vmatpush.msra.mxu0 0.0
        %2347 = vmatpush.msra.mxu0 0.0
        %2348 = vmatpush.msra.mxu0 0.0
        %2349 = vmatpush.msra.mxu0 0.0
        %2350 = vmatpush.msra.mxu0 0.0
        %2351 = vmatpush.msra.mxu0 0.0
        %2352 = vmatpush.msra.mxu0 0.0
        %2353 = vmatpush.msra.mxu0 0.0
        %2354 = vmatpush.msra.mxu0 0.0
        %2355 = vmatpush.msra.mxu0 0.0
        %2356 = vmatpush.msra.mxu0 0.0
        %2357 = vmatpush.msra.mxu0 %v2282
        %2358 = vmatmul.f32.gmra.mxu0 %v2340
        %v2359 = vpop.f32.mrf.mxu0
        %v2360 = vadd.f32 %v2317, %v2359
        %2361 = vdwg.mxu0
        %2362 = vmatpush.msra.mxu0 0.0
        %2363 = vmatpush.msra.mxu0 0.0
        %2364 = vmatpush.msra.mxu0 0.0
        %2365 = vmatpush.msra.mxu0 0.0
        %2366 = vmatpush.msra.mxu0 0.0
        %2367 = vmatpush.msra.mxu0 0.0
        %2368 = vmatpush.msra.mxu0 0.0
        %2369 = vmatpush.msra.mxu0 0.0
        %2370 = vmatpush.msra.mxu0 0.0
        %2371 = vmatpush.msra.mxu0 0.0
        %2372 = vmatpush.msra.mxu0 0.0
        %2373 = vmatpush.msra.mxu0 0.0
        %2374 = vmatpush.msra.mxu0 0.0
        %2375 = vmatpush.msra.mxu0 0.0
        %2376 = vmatpush.msra.mxu0 0.0
        %2377 = vmatpush.msra.mxu0 %v2283
        %2378 = vmatmul.f32.gmra.mxu0 %v2340
        %v2379 = vpop.f32.mrf.mxu0
        %v2380 = vadd.f32 %v2337, %v2379
        %2381 = vdwg.mxu0
        %2382 = vrot.lane.b32.xlu0 %v2274, 15
        %v2383 = vpop.permute.xlu0 %2382
        %2384 = vrot.lane.b32.xlu0 %v2275, 15
        %v2385 = vpop.permute.xlu0 %2384
        %v2386 = vsel %vm406, %v2383, %v2385
        %v2387 = vsel %vm406, %v2385, %v2383
        %v2388 = vmul.f32 %v2387, %v412
        %v2389 = vmul.f32 %v2386, %v413
        %s2390 = scalar_lea.vmem %s1, 160
        %v2391 = vld [vmem:[%s2390] sm:$0xff]
        %v2393 = vsel %vm315, %v2391, 0
        %2395 = vmatpush.msra.mxu0 0.0
        %2396 = vmatpush.msra.mxu0 0.0
        %2397 = vmatpush.msra.mxu0 0.0
        %2398 = vmatpush.msra.mxu0 0.0
        %2399 = vmatpush.msra.mxu0 0.0
        %2400 = vmatpush.msra.mxu0 0.0
        %2401 = vmatpush.msra.mxu0 0.0
        %2402 = vmatpush.msra.mxu0 0.0
        %2403 = vmatpush.msra.mxu0 0.0
        %2404 = vmatpush.msra.mxu0 0.0
        %2405 = vmatpush.msra.mxu0 0.0
        %2406 = vmatpush.msra.mxu0 0.0
        %2407 = vmatpush.msra.mxu0 0.0
        %2408 = vmatpush.msra.mxu0 0.0
        %2409 = vmatpush.msra.mxu0 0.0
        %2410 = vmatpush.msra.mxu0 %v2388
        %2411 = vmatmul.f32.gmra.mxu0 %v2393
        %v2412 = vpop.f32.mrf.mxu0
        %v2413 = vadd.f32 0.0, %v2412
        %2414 = vdwg.mxu0
        %2415 = vmatpush.msra.mxu0 0.0
        %2416 = vmatpush.msra.mxu0 0.0
        %2417 = vmatpush.msra.mxu0 0.0
        %2418 = vmatpush.msra.mxu0 0.0
        %2419 = vmatpush.msra.mxu0 0.0
        %2420 = vmatpush.msra.mxu0 0.0
        %2421 = vmatpush.msra.mxu0 0.0
        %2422 = vmatpush.msra.mxu0 0.0
        %2423 = vmatpush.msra.mxu0 0.0
        %2424 = vmatpush.msra.mxu0 0.0
        %2425 = vmatpush.msra.mxu0 0.0
        %2426 = vmatpush.msra.mxu0 0.0
        %2427 = vmatpush.msra.mxu0 0.0
        %2428 = vmatpush.msra.mxu0 0.0
        %2429 = vmatpush.msra.mxu0 0.0
        %2430 = vmatpush.msra.mxu0 %v2389
        %2431 = vmatmul.f32.gmra.mxu0 %v2393
        %v2432 = vpop.f32.mrf.mxu0
        %v2433 = vadd.f32 0.0, %v2432
        %2434 = vdwg.mxu0
        %v2435 = vadd.f32 %v2360, %v2413
        %v2436 = vadd.f32 %v2380, %v2433
        %2437 = vrot.lane.b32.xlu0 %v2274, 1
        %v2438 = vpop.permute.xlu0 %2437
        %2439 = vrot.lane.b32.xlu0 %v2275, 1
        %v2440 = vpop.permute.xlu0 %2439
        %v2441 = vsel %vm469, %v2438, %v2440
        %v2442 = vsel %vm469, %v2440, %v2438
        %v2443 = vmul.f32 %v2442, %v475
        %v2444 = vmul.f32 %v2441, %v476
        %s2445 = scalar_lea.vmem %s1, 168
        %v2446 = vld [vmem:[%s2445] sm:$0xff]
        %v2448 = vsel %vm315, %v2446, 0
        %2450 = vmatpush.msra.mxu0 0.0
        %2451 = vmatpush.msra.mxu0 0.0
        %2452 = vmatpush.msra.mxu0 0.0
        %2453 = vmatpush.msra.mxu0 0.0
        %2454 = vmatpush.msra.mxu0 0.0
        %2455 = vmatpush.msra.mxu0 0.0
        %2456 = vmatpush.msra.mxu0 0.0
        %2457 = vmatpush.msra.mxu0 0.0
        %2458 = vmatpush.msra.mxu0 0.0
        %2459 = vmatpush.msra.mxu0 0.0
        %2460 = vmatpush.msra.mxu0 0.0
        %2461 = vmatpush.msra.mxu0 0.0
        %2462 = vmatpush.msra.mxu0 0.0
        %2463 = vmatpush.msra.mxu0 0.0
        %2464 = vmatpush.msra.mxu0 0.0
        %2465 = vmatpush.msra.mxu0 %v2443
        %2466 = vmatmul.f32.gmra.mxu0 %v2448
        %v2467 = vpop.f32.mrf.mxu0
        %v2468 = vadd.f32 0.0, %v2467
        %2469 = vdwg.mxu0
        %2470 = vmatpush.msra.mxu0 0.0
        %2471 = vmatpush.msra.mxu0 0.0
        %2472 = vmatpush.msra.mxu0 0.0
        %2473 = vmatpush.msra.mxu0 0.0
        %2474 = vmatpush.msra.mxu0 0.0
        %2475 = vmatpush.msra.mxu0 0.0
        %2476 = vmatpush.msra.mxu0 0.0
        %2477 = vmatpush.msra.mxu0 0.0
        %2478 = vmatpush.msra.mxu0 0.0
        %2479 = vmatpush.msra.mxu0 0.0
        %2480 = vmatpush.msra.mxu0 0.0
        %2481 = vmatpush.msra.mxu0 0.0
        %2482 = vmatpush.msra.mxu0 0.0
        %2483 = vmatpush.msra.mxu0 0.0
        %2484 = vmatpush.msra.mxu0 0.0
        %2485 = vmatpush.msra.mxu0 %v2444
        %2486 = vmatmul.f32.gmra.mxu0 %v2448
        %v2487 = vpop.f32.mrf.mxu0
        %v2488 = vadd.f32 0.0, %v2487
        %2489 = vdwg.mxu0
        %v2490 = vadd.f32 %v2435, %v2468
        %v2491 = vadd.f32 %v2436, %v2488
        %v2492 = vmul.f32 %v2274, %v531
        %v2493 = vmul.f32 %v2275, %v532
        %s2494 = scalar_lea.vmem %s1, 176
        %v2495 = vld [vmem:[%s2494] sm:$0xff]
        %v2497 = vsel %vm315, %v2495, 0
        %2499 = vmatpush.msra.mxu0 0.0
        %2500 = vmatpush.msra.mxu0 0.0
        %2501 = vmatpush.msra.mxu0 0.0
        %2502 = vmatpush.msra.mxu0 0.0
        %2503 = vmatpush.msra.mxu0 0.0
        %2504 = vmatpush.msra.mxu0 0.0
        %2505 = vmatpush.msra.mxu0 0.0
        %2506 = vmatpush.msra.mxu0 0.0
        %2507 = vmatpush.msra.mxu0 0.0
        %2508 = vmatpush.msra.mxu0 0.0
        %2509 = vmatpush.msra.mxu0 0.0
        %2510 = vmatpush.msra.mxu0 0.0
        %2511 = vmatpush.msra.mxu0 0.0
        %2512 = vmatpush.msra.mxu0 0.0
        %2513 = vmatpush.msra.mxu0 0.0
        %2514 = vmatpush.msra.mxu0 %v2492
        %2515 = vmatmul.f32.gmra.mxu0 %v2497
        %v2516 = vpop.f32.mrf.mxu0
        %v2517 = vadd.f32 0.0, %v2516
        %2518 = vdwg.mxu0
        %2519 = vmatpush.msra.mxu0 0.0
        %2520 = vmatpush.msra.mxu0 0.0
        %2521 = vmatpush.msra.mxu0 0.0
        %2522 = vmatpush.msra.mxu0 0.0
        %2523 = vmatpush.msra.mxu0 0.0
        %2524 = vmatpush.msra.mxu0 0.0
        %2525 = vmatpush.msra.mxu0 0.0
        %2526 = vmatpush.msra.mxu0 0.0
        %2527 = vmatpush.msra.mxu0 0.0
        %2528 = vmatpush.msra.mxu0 0.0
        %2529 = vmatpush.msra.mxu0 0.0
        %2530 = vmatpush.msra.mxu0 0.0
        %2531 = vmatpush.msra.mxu0 0.0
        %2532 = vmatpush.msra.mxu0 0.0
        %2533 = vmatpush.msra.mxu0 0.0
        %2534 = vmatpush.msra.mxu0 %v2493
        %2535 = vmatmul.f32.gmra.mxu0 %v2497
        %v2536 = vpop.f32.mrf.mxu0
        %v2537 = vadd.f32 0.0, %v2536
        %2538 = vdwg.mxu0
        %v2539 = vadd.f32 %v2490, %v2517
        %v2540 = vadd.f32 %v2491, %v2537
        %2541 = vrot.lane.b32.xlu0 %v2274, 127
        %v2542 = vpop.permute.xlu0 %2541
        %2543 = vrot.lane.b32.xlu0 %v2275, 127
        %v2544 = vpop.permute.xlu0 %2543
        %v2545 = vsel %vm588, %v2542, %v2544
        %v2546 = vsel %vm588, %v2544, %v2542
        %v2547 = vmul.f32 %v2545, %v594
        %v2548 = vmul.f32 %v2546, %v595
        %s2549 = scalar_lea.vmem %s1, 184
        %v2550 = vld [vmem:[%s2549] sm:$0xff]
        %v2552 = vsel %vm315, %v2550, 0
        %2554 = vmatpush.msra.mxu0 0.0
        %2555 = vmatpush.msra.mxu0 0.0
        %2556 = vmatpush.msra.mxu0 0.0
        %2557 = vmatpush.msra.mxu0 0.0
        %2558 = vmatpush.msra.mxu0 0.0
        %2559 = vmatpush.msra.mxu0 0.0
        %2560 = vmatpush.msra.mxu0 0.0
        %2561 = vmatpush.msra.mxu0 0.0
        %2562 = vmatpush.msra.mxu0 0.0
        %2563 = vmatpush.msra.mxu0 0.0
        %2564 = vmatpush.msra.mxu0 0.0
        %2565 = vmatpush.msra.mxu0 0.0
        %2566 = vmatpush.msra.mxu0 0.0
        %2567 = vmatpush.msra.mxu0 0.0
        %2568 = vmatpush.msra.mxu0 0.0
        %2569 = vmatpush.msra.mxu0 %v2547
        %2570 = vmatmul.f32.gmra.mxu0 %v2552
        %v2571 = vpop.f32.mrf.mxu0
        %v2572 = vadd.f32 0.0, %v2571
        %2573 = vdwg.mxu0
        %2574 = vmatpush.msra.mxu0 0.0
        %2575 = vmatpush.msra.mxu0 0.0
        %2576 = vmatpush.msra.mxu0 0.0
        %2577 = vmatpush.msra.mxu0 0.0
        %2578 = vmatpush.msra.mxu0 0.0
        %2579 = vmatpush.msra.mxu0 0.0
        %2580 = vmatpush.msra.mxu0 0.0
        %2581 = vmatpush.msra.mxu0 0.0
        %2582 = vmatpush.msra.mxu0 0.0
        %2583 = vmatpush.msra.mxu0 0.0
        %2584 = vmatpush.msra.mxu0 0.0
        %2585 = vmatpush.msra.mxu0 0.0
        %2586 = vmatpush.msra.mxu0 0.0
        %2587 = vmatpush.msra.mxu0 0.0
        %2588 = vmatpush.msra.mxu0 0.0
        %2589 = vmatpush.msra.mxu0 %v2548
        %2590 = vmatmul.f32.gmra.mxu0 %v2552
        %v2591 = vpop.f32.mrf.mxu0
        %v2592 = vadd.f32 0.0, %v2591
        %2593 = vdwg.mxu0
        %v2594 = vadd.f32 %v2539, %v2572
        %v2595 = vadd.f32 %v2540, %v2592
        %2596 = vrot.lane.b32.xlu0 %v2274, 113
        %v2597 = vpop.permute.xlu0 %2596
        %2598 = vrot.lane.b32.xlu0 %v2275, 113
        %v2599 = vpop.permute.xlu0 %2598
        %v2600 = vsel %vm651, %v2597, %v2599
        %v2601 = vsel %vm651, %v2599, %v2597
        %v2602 = vmul.f32 %v2600, %v657
        %v2603 = vmul.f32 %v2601, %v658
        %s2604 = scalar_lea.vmem %s1, 192
        %v2605 = vld [vmem:[%s2604] sm:$0xff]
        %v2607 = vsel %vm315, %v2605, 0
        %2609 = vmatpush.msra.mxu0 0.0
        %2610 = vmatpush.msra.mxu0 0.0
        %2611 = vmatpush.msra.mxu0 0.0
        %2612 = vmatpush.msra.mxu0 0.0
        %2613 = vmatpush.msra.mxu0 0.0
        %2614 = vmatpush.msra.mxu0 0.0
        %2615 = vmatpush.msra.mxu0 0.0
        %2616 = vmatpush.msra.mxu0 0.0
        %2617 = vmatpush.msra.mxu0 0.0
        %2618 = vmatpush.msra.mxu0 0.0
        %2619 = vmatpush.msra.mxu0 0.0
        %2620 = vmatpush.msra.mxu0 0.0
        %2621 = vmatpush.msra.mxu0 0.0
        %2622 = vmatpush.msra.mxu0 0.0
        %2623 = vmatpush.msra.mxu0 0.0
        %2624 = vmatpush.msra.mxu0 %v2602
        %2625 = vmatmul.f32.gmra.mxu0 %v2607
        %v2626 = vpop.f32.mrf.mxu0
        %v2627 = vadd.f32 0.0, %v2626
        %2628 = vdwg.mxu0
        %2629 = vmatpush.msra.mxu0 0.0
        %2630 = vmatpush.msra.mxu0 0.0
        %2631 = vmatpush.msra.mxu0 0.0
        %2632 = vmatpush.msra.mxu0 0.0
        %2633 = vmatpush.msra.mxu0 0.0
        %2634 = vmatpush.msra.mxu0 0.0
        %2635 = vmatpush.msra.mxu0 0.0
        %2636 = vmatpush.msra.mxu0 0.0
        %2637 = vmatpush.msra.mxu0 0.0
        %2638 = vmatpush.msra.mxu0 0.0
        %2639 = vmatpush.msra.mxu0 0.0
        %2640 = vmatpush.msra.mxu0 0.0
        %2641 = vmatpush.msra.mxu0 0.0
        %2642 = vmatpush.msra.mxu0 0.0
        %2643 = vmatpush.msra.mxu0 0.0
        %2644 = vmatpush.msra.mxu0 %v2603
        %2645 = vmatmul.f32.gmra.mxu0 %v2607
        %v2646 = vpop.f32.mrf.mxu0
        %v2647 = vadd.f32 0.0, %v2646
        %2648 = vdwg.mxu0
        %v2649 = vadd.f32 %v2594, %v2627
        %v2650 = vadd.f32 %v2595, %v2647
        %2651 = vrot.lane.b32.xlu0 %v2274, 112
        %v2652 = vpop.permute.xlu0 %2651
        %2653 = vrot.lane.b32.xlu0 %v2275, 112
        %v2654 = vpop.permute.xlu0 %2653
        %v2655 = vsel %vm714, %v2652, %v2654
        %v2656 = vsel %vm714, %v2654, %v2652
        %v2657 = vmul.f32 %v2655, %v720
        %v2658 = vmul.f32 %v2656, %v721
        %s2659 = scalar_lea.vmem %s1, 200
        %v2660 = vld [vmem:[%s2659] sm:$0xff]
        %v2662 = vsel %vm315, %v2660, 0
        %2664 = vmatpush.msra.mxu0 0.0
        %2665 = vmatpush.msra.mxu0 0.0
        %2666 = vmatpush.msra.mxu0 0.0
        %2667 = vmatpush.msra.mxu0 0.0
        %2668 = vmatpush.msra.mxu0 0.0
        %2669 = vmatpush.msra.mxu0 0.0
        %2670 = vmatpush.msra.mxu0 0.0
        %2671 = vmatpush.msra.mxu0 0.0
        %2672 = vmatpush.msra.mxu0 0.0
        %2673 = vmatpush.msra.mxu0 0.0
        %2674 = vmatpush.msra.mxu0 0.0
        %2675 = vmatpush.msra.mxu0 0.0
        %2676 = vmatpush.msra.mxu0 0.0
        %2677 = vmatpush.msra.mxu0 0.0
        %2678 = vmatpush.msra.mxu0 0.0
        %2679 = vmatpush.msra.mxu0 %v2657
        %2680 = vmatmul.f32.gmra.mxu0 %v2662
        %v2681 = vpop.f32.mrf.mxu0
        %v2682 = vadd.f32 0.0, %v2681
        %2683 = vdwg.mxu0
        %2684 = vmatpush.msra.mxu0 0.0
        %2685 = vmatpush.msra.mxu0 0.0
        %2686 = vmatpush.msra.mxu0 0.0
        %2687 = vmatpush.msra.mxu0 0.0
        %2688 = vmatpush.msra.mxu0 0.0
        %2689 = vmatpush.msra.mxu0 0.0
        %2690 = vmatpush.msra.mxu0 0.0
        %2691 = vmatpush.msra.mxu0 0.0
        %2692 = vmatpush.msra.mxu0 0.0
        %2693 = vmatpush.msra.mxu0 0.0
        %2694 = vmatpush.msra.mxu0 0.0
        %2695 = vmatpush.msra.mxu0 0.0
        %2696 = vmatpush.msra.mxu0 0.0
        %2697 = vmatpush.msra.mxu0 0.0
        %2698 = vmatpush.msra.mxu0 0.0
        %2699 = vmatpush.msra.mxu0 %v2658
        %2700 = vmatmul.f32.gmra.mxu0 %v2662
        %v2701 = vpop.f32.mrf.mxu0
        %v2702 = vadd.f32 0.0, %v2701
        %2703 = vdwg.mxu0
        %v2704 = vadd.f32 %v2649, %v2682
        %v2705 = vadd.f32 %v2650, %v2702
        %2706 = vrot.lane.b32.xlu0 %v2274, 111
        %v2707 = vpop.permute.xlu0 %2706
        %2708 = vrot.lane.b32.xlu0 %v2275, 111
        %v2709 = vpop.permute.xlu0 %2708
        %v2710 = vsel %vm777, %v2707, %v2709
        %v2711 = vsel %vm777, %v2709, %v2707
        %v2712 = vmul.f32 %v2710, %v783
        %v2713 = vmul.f32 %v2711, %v784
        %s2714 = scalar_lea.vmem %s1, 208
        %v2715 = vld [vmem:[%s2714] sm:$0xff]
        %v2717 = vsel %vm315, %v2715, 0
        %2719 = vmatpush.msra.mxu0 0.0
        %2720 = vmatpush.msra.mxu0 0.0
        %2721 = vmatpush.msra.mxu0 0.0
        %2722 = vmatpush.msra.mxu0 0.0
        %2723 = vmatpush.msra.mxu0 0.0
        %2724 = vmatpush.msra.mxu0 0.0
        %2725 = vmatpush.msra.mxu0 0.0
        %2726 = vmatpush.msra.mxu0 0.0
        %2727 = vmatpush.msra.mxu0 0.0
        %2728 = vmatpush.msra.mxu0 0.0
        %2729 = vmatpush.msra.mxu0 0.0
        %2730 = vmatpush.msra.mxu0 0.0
        %2731 = vmatpush.msra.mxu0 0.0
        %2732 = vmatpush.msra.mxu0 0.0
        %2733 = vmatpush.msra.mxu0 0.0
        %2734 = vmatpush.msra.mxu0 %v2712
        %2735 = vmatmul.f32.gmra.mxu0 %v2717
        %v2736 = vpop.f32.mrf.mxu0
        %v2737 = vadd.f32 0.0, %v2736
        %2738 = vdwg.mxu0
        %2739 = vmatpush.msra.mxu0 0.0
        %2740 = vmatpush.msra.mxu0 0.0
        %2741 = vmatpush.msra.mxu0 0.0
        %2742 = vmatpush.msra.mxu0 0.0
        %2743 = vmatpush.msra.mxu0 0.0
        %2744 = vmatpush.msra.mxu0 0.0
        %2745 = vmatpush.msra.mxu0 0.0
        %2746 = vmatpush.msra.mxu0 0.0
        %2747 = vmatpush.msra.mxu0 0.0
        %2748 = vmatpush.msra.mxu0 0.0
        %2749 = vmatpush.msra.mxu0 0.0
        %2750 = vmatpush.msra.mxu0 0.0
        %2751 = vmatpush.msra.mxu0 0.0
        %2752 = vmatpush.msra.mxu0 0.0
        %2753 = vmatpush.msra.mxu0 0.0
        %2754 = vmatpush.msra.mxu0 %v2713
        %2755 = vmatmul.f32.gmra.mxu0 %v2717
        %v2756 = vpop.f32.mrf.mxu0
        %v2757 = vadd.f32 0.0, %v2756
        %2758 = vdwg.mxu0
        %v2759 = vadd.f32 %v2704, %v2737
        %v2760 = vadd.f32 %v2705, %v2757
        %s2761 = scalar_lea.vmem %s2, 16
        %v2762 = vld [vmem:[%s2761] sm:$0xff]
        %2764 = vset.pattern.permute.xlu0 0
        %2765 = vperm.xlu0 %2764, %v2762
        %v2766 = vpop.permute.xlu0 %2765
        %v2768 = vadd.f32 %v2759, %v2766
        %v2769 = vadd.f32 %v2760, %v2766
        %v2770 = vmax.f32 %v2768, 0.0
        %v2771 = vmax.f32 %v2769, 0.0
        %s2772 = scalar_lea.vmem %s3, 16
        %v2773 = vld [vmem:[%s2772] sm:$0xff]
        %2775 = vset.pattern.permute.xlu0 0
        %2776 = vperm.xlu0 %2775, %v2773
        %v2777 = vpop.permute.xlu0 %2776
        %v2779 = vmul.f32 %v2777, %v2770
        %v2780 = vmul.f32 %v2777, %v2771
        %s2781 = scalar_lea.vmem %s4, 16
        %v2782 = vld [vmem:[%s2781] sm:$0xff]
        %2784 = vset.pattern.permute.xlu0 0
        %2785 = vperm.xlu0 %2784, %v2782
        %v2786 = vpop.permute.xlu0 %2785
        %v2788 = vadd.f32 %v2779, %v2786
        %v2789 = vadd.f32 %v2780, %v2786
        %2790 = vrot.lane.b32.xlu0 %v2788, 17
        %v2791 = vpop.permute.xlu0 %2790
        %2792 = vrot.lane.b32.xlu0 %v2789, 17
        %v2793 = vpop.permute.xlu0 %2792
        %v2794 = vsel %vm285, %v2791, %v2793
        %v2795 = vsel %vm285, %v2793, %v2791
        %v2796 = vmul.f32 %v2795, %v290
        %v2797 = vmul.f32 %v2794, %v291
        %s2798 = scalar_lea.vmem %s1, 216
        %v2799 = vld [vmem:[%s2798] sm:$0xff]
        %2800 = vrot.lane.b32.xlu0 %v2788, 16
        %v2801 = vpop.permute.xlu0 %2800
        %2802 = vrot.lane.b32.xlu0 %v2789, 16
        %v2803 = vpop.permute.xlu0 %2802
        %v2804 = vsel %vm301, %v2801, %v2803
        %v2805 = vsel %vm301, %v2803, %v2801
        %v2806 = vmul.f32 %v2805, %v307
        %v2807 = vmul.f32 %v2804, %v308
        %s2808 = scalar_lea.vmem %s1, 224
        %v2809 = vld [vmem:[%s2808] sm:$0xff]
        %v2811 = vsel %vm315, %v2809, 0
        %2813 = vmatpush.msra.mxu0 0.0
        %2814 = vmatpush.msra.mxu0 0.0
        %2815 = vmatpush.msra.mxu0 0.0
        %2816 = vmatpush.msra.mxu0 0.0
        %2817 = vmatpush.msra.mxu0 0.0
        %2818 = vmatpush.msra.mxu0 0.0
        %2819 = vmatpush.msra.mxu0 0.0
        %2820 = vmatpush.msra.mxu0 0.0
        %2821 = vmatpush.msra.mxu0 0.0
        %2822 = vmatpush.msra.mxu0 0.0
        %2823 = vmatpush.msra.mxu0 0.0
        %2824 = vmatpush.msra.mxu0 0.0
        %2825 = vmatpush.msra.mxu0 0.0
        %2826 = vmatpush.msra.mxu0 0.0
        %2827 = vmatpush.msra.mxu0 0.0
        %2828 = vmatpush.msra.mxu0 %v2806
        %2829 = vmatmul.f32.gmra.mxu0 %v2811
        %v2830 = vpop.f32.mrf.mxu0
        %v2831 = vadd.f32 0.0, %v2830
        %2832 = vdwg.mxu0
        %2833 = vmatpush.msra.mxu0 0.0
        %2834 = vmatpush.msra.mxu0 0.0
        %2835 = vmatpush.msra.mxu0 0.0
        %2836 = vmatpush.msra.mxu0 0.0
        %2837 = vmatpush.msra.mxu0 0.0
        %2838 = vmatpush.msra.mxu0 0.0
        %2839 = vmatpush.msra.mxu0 0.0
        %2840 = vmatpush.msra.mxu0 0.0
        %2841 = vmatpush.msra.mxu0 0.0
        %2842 = vmatpush.msra.mxu0 0.0
        %2843 = vmatpush.msra.mxu0 0.0
        %2844 = vmatpush.msra.mxu0 0.0
        %2845 = vmatpush.msra.mxu0 0.0
        %2846 = vmatpush.msra.mxu0 0.0
        %2847 = vmatpush.msra.mxu0 0.0
        %2848 = vmatpush.msra.mxu0 %v2807
        %2849 = vmatmul.f32.gmra.mxu0 %v2811
        %v2850 = vpop.f32.mrf.mxu0
        %v2851 = vadd.f32 0.0, %v2850
        %2852 = vdwg.mxu0
        %v2854 = vsel %vm315, %v2799, 0
        %2856 = vmatpush.msra.mxu0 0.0
        %2857 = vmatpush.msra.mxu0 0.0
        %2858 = vmatpush.msra.mxu0 0.0
        %2859 = vmatpush.msra.mxu0 0.0
        %2860 = vmatpush.msra.mxu0 0.0
        %2861 = vmatpush.msra.mxu0 0.0
        %2862 = vmatpush.msra.mxu0 0.0
        %2863 = vmatpush.msra.mxu0 0.0
        %2864 = vmatpush.msra.mxu0 0.0
        %2865 = vmatpush.msra.mxu0 0.0
        %2866 = vmatpush.msra.mxu0 0.0
        %2867 = vmatpush.msra.mxu0 0.0
        %2868 = vmatpush.msra.mxu0 0.0
        %2869 = vmatpush.msra.mxu0 0.0
        %2870 = vmatpush.msra.mxu0 0.0
        %2871 = vmatpush.msra.mxu0 %v2796
        %2872 = vmatmul.f32.gmra.mxu0 %v2854
        %v2873 = vpop.f32.mrf.mxu0
        %v2874 = vadd.f32 %v2831, %v2873
        %2875 = vdwg.mxu0
        %2876 = vmatpush.msra.mxu0 0.0
        %2877 = vmatpush.msra.mxu0 0.0
        %2878 = vmatpush.msra.mxu0 0.0
        %2879 = vmatpush.msra.mxu0 0.0
        %2880 = vmatpush.msra.mxu0 0.0
        %2881 = vmatpush.msra.mxu0 0.0
        %2882 = vmatpush.msra.mxu0 0.0
        %2883 = vmatpush.msra.mxu0 0.0
        %2884 = vmatpush.msra.mxu0 0.0
        %2885 = vmatpush.msra.mxu0 0.0
        %2886 = vmatpush.msra.mxu0 0.0
        %2887 = vmatpush.msra.mxu0 0.0
        %2888 = vmatpush.msra.mxu0 0.0
        %2889 = vmatpush.msra.mxu0 0.0
        %2890 = vmatpush.msra.mxu0 0.0
        %2891 = vmatpush.msra.mxu0 %v2797
        %2892 = vmatmul.f32.gmra.mxu0 %v2854
        %v2893 = vpop.f32.mrf.mxu0
        %v2894 = vadd.f32 %v2851, %v2893
        %2895 = vdwg.mxu0
        %2896 = vrot.lane.b32.xlu0 %v2788, 15
        %v2897 = vpop.permute.xlu0 %2896
        %2898 = vrot.lane.b32.xlu0 %v2789, 15
        %v2899 = vpop.permute.xlu0 %2898
        %v2900 = vsel %vm406, %v2897, %v2899
        %v2901 = vsel %vm406, %v2899, %v2897
        %v2902 = vmul.f32 %v2901, %v412
        %v2903 = vmul.f32 %v2900, %v413
        %s2904 = scalar_lea.vmem %s1, 232
        %v2905 = vld [vmem:[%s2904] sm:$0xff]
        %v2907 = vsel %vm315, %v2905, 0
        %2909 = vmatpush.msra.mxu0 0.0
        %2910 = vmatpush.msra.mxu0 0.0
        %2911 = vmatpush.msra.mxu0 0.0
        %2912 = vmatpush.msra.mxu0 0.0
        %2913 = vmatpush.msra.mxu0 0.0
        %2914 = vmatpush.msra.mxu0 0.0
        %2915 = vmatpush.msra.mxu0 0.0
        %2916 = vmatpush.msra.mxu0 0.0
        %2917 = vmatpush.msra.mxu0 0.0
        %2918 = vmatpush.msra.mxu0 0.0
        %2919 = vmatpush.msra.mxu0 0.0
        %2920 = vmatpush.msra.mxu0 0.0
        %2921 = vmatpush.msra.mxu0 0.0
        %2922 = vmatpush.msra.mxu0 0.0
        %2923 = vmatpush.msra.mxu0 0.0
        %2924 = vmatpush.msra.mxu0 %v2902
        %2925 = vmatmul.f32.gmra.mxu0 %v2907
        %v2926 = vpop.f32.mrf.mxu0
        %v2927 = vadd.f32 0.0, %v2926
        %2928 = vdwg.mxu0
        %2929 = vmatpush.msra.mxu0 0.0
        %2930 = vmatpush.msra.mxu0 0.0
        %2931 = vmatpush.msra.mxu0 0.0
        %2932 = vmatpush.msra.mxu0 0.0
        %2933 = vmatpush.msra.mxu0 0.0
        %2934 = vmatpush.msra.mxu0 0.0
        %2935 = vmatpush.msra.mxu0 0.0
        %2936 = vmatpush.msra.mxu0 0.0
        %2937 = vmatpush.msra.mxu0 0.0
        %2938 = vmatpush.msra.mxu0 0.0
        %2939 = vmatpush.msra.mxu0 0.0
        %2940 = vmatpush.msra.mxu0 0.0
        %2941 = vmatpush.msra.mxu0 0.0
        %2942 = vmatpush.msra.mxu0 0.0
        %2943 = vmatpush.msra.mxu0 0.0
        %2944 = vmatpush.msra.mxu0 %v2903
        %2945 = vmatmul.f32.gmra.mxu0 %v2907
        %v2946 = vpop.f32.mrf.mxu0
        %v2947 = vadd.f32 0.0, %v2946
        %2948 = vdwg.mxu0
        %v2949 = vadd.f32 %v2874, %v2927
        %v2950 = vadd.f32 %v2894, %v2947
        %2951 = vrot.lane.b32.xlu0 %v2788, 1
        %v2952 = vpop.permute.xlu0 %2951
        %2953 = vrot.lane.b32.xlu0 %v2789, 1
        %v2954 = vpop.permute.xlu0 %2953
        %v2955 = vsel %vm469, %v2952, %v2954
        %v2956 = vsel %vm469, %v2954, %v2952
        %v2957 = vmul.f32 %v2956, %v475
        %v2958 = vmul.f32 %v2955, %v476
        %s2959 = scalar_lea.vmem %s1, 240
        %v2960 = vld [vmem:[%s2959] sm:$0xff]
        %v2962 = vsel %vm315, %v2960, 0
        %2964 = vmatpush.msra.mxu0 0.0
        %2965 = vmatpush.msra.mxu0 0.0
        %2966 = vmatpush.msra.mxu0 0.0
        %2967 = vmatpush.msra.mxu0 0.0
        %2968 = vmatpush.msra.mxu0 0.0
        %2969 = vmatpush.msra.mxu0 0.0
        %2970 = vmatpush.msra.mxu0 0.0
        %2971 = vmatpush.msra.mxu0 0.0
        %2972 = vmatpush.msra.mxu0 0.0
        %2973 = vmatpush.msra.mxu0 0.0
        %2974 = vmatpush.msra.mxu0 0.0
        %2975 = vmatpush.msra.mxu0 0.0
        %2976 = vmatpush.msra.mxu0 0.0
        %2977 = vmatpush.msra.mxu0 0.0
        %2978 = vmatpush.msra.mxu0 0.0
        %2979 = vmatpush.msra.mxu0 %v2957
        %2980 = vmatmul.f32.gmra.mxu0 %v2962
        %v2981 = vpop.f32.mrf.mxu0
        %v2982 = vadd.f32 0.0, %v2981
        %2983 = vdwg.mxu0
        %2984 = vmatpush.msra.mxu0 0.0
        %2985 = vmatpush.msra.mxu0 0.0
        %2986 = vmatpush.msra.mxu0 0.0
        %2987 = vmatpush.msra.mxu0 0.0
        %2988 = vmatpush.msra.mxu0 0.0
        %2989 = vmatpush.msra.mxu0 0.0
        %2990 = vmatpush.msra.mxu0 0.0
        %2991 = vmatpush.msra.mxu0 0.0
        %2992 = vmatpush.msra.mxu0 0.0
        %2993 = vmatpush.msra.mxu0 0.0
        %2994 = vmatpush.msra.mxu0 0.0
        %2995 = vmatpush.msra.mxu0 0.0
        %2996 = vmatpush.msra.mxu0 0.0
        %2997 = vmatpush.msra.mxu0 0.0
        %2998 = vmatpush.msra.mxu0 0.0
        %2999 = vmatpush.msra.mxu0 %v2958
        %3000 = vmatmul.f32.gmra.mxu0 %v2962
        %v3001 = vpop.f32.mrf.mxu0
        %v3002 = vadd.f32 0.0, %v3001
        %3003 = vdwg.mxu0
        %v3004 = vadd.f32 %v2949, %v2982
        %v3005 = vadd.f32 %v2950, %v3002
        %v3006 = vmul.f32 %v2788, %v531
        %v3007 = vmul.f32 %v2789, %v532
        %s3008 = scalar_lea.vmem %s1, 248
        %v3009 = vld [vmem:[%s3008] sm:$0xff]
        %v3011 = vsel %vm315, %v3009, 0
        %3013 = vmatpush.msra.mxu0 0.0
        %3014 = vmatpush.msra.mxu0 0.0
        %3015 = vmatpush.msra.mxu0 0.0
        %3016 = vmatpush.msra.mxu0 0.0
        %3017 = vmatpush.msra.mxu0 0.0
        %3018 = vmatpush.msra.mxu0 0.0
        %3019 = vmatpush.msra.mxu0 0.0
        %3020 = vmatpush.msra.mxu0 0.0
        %3021 = vmatpush.msra.mxu0 0.0
        %3022 = vmatpush.msra.mxu0 0.0
        %3023 = vmatpush.msra.mxu0 0.0
        %3024 = vmatpush.msra.mxu0 0.0
        %3025 = vmatpush.msra.mxu0 0.0
        %3026 = vmatpush.msra.mxu0 0.0
        %3027 = vmatpush.msra.mxu0 0.0
        %3028 = vmatpush.msra.mxu0 %v3006
        %3029 = vmatmul.f32.gmra.mxu0 %v3011
        %v3030 = vpop.f32.mrf.mxu0
        %v3031 = vadd.f32 0.0, %v3030
        %3032 = vdwg.mxu0
        %3033 = vmatpush.msra.mxu0 0.0
        %3034 = vmatpush.msra.mxu0 0.0
        %3035 = vmatpush.msra.mxu0 0.0
        %3036 = vmatpush.msra.mxu0 0.0
        %3037 = vmatpush.msra.mxu0 0.0
        %3038 = vmatpush.msra.mxu0 0.0
        %3039 = vmatpush.msra.mxu0 0.0
        %3040 = vmatpush.msra.mxu0 0.0
        %3041 = vmatpush.msra.mxu0 0.0
        %3042 = vmatpush.msra.mxu0 0.0
        %3043 = vmatpush.msra.mxu0 0.0
        %3044 = vmatpush.msra.mxu0 0.0
        %3045 = vmatpush.msra.mxu0 0.0
        %3046 = vmatpush.msra.mxu0 0.0
        %3047 = vmatpush.msra.mxu0 0.0
        %3048 = vmatpush.msra.mxu0 %v3007
        %3049 = vmatmul.f32.gmra.mxu0 %v3011
        %v3050 = vpop.f32.mrf.mxu0
        %v3051 = vadd.f32 0.0, %v3050
        %3052 = vdwg.mxu0
        %v3053 = vadd.f32 %v3004, %v3031
        %v3054 = vadd.f32 %v3005, %v3051
        %3055 = vrot.lane.b32.xlu0 %v2788, 127
        %v3056 = vpop.permute.xlu0 %3055
        %3057 = vrot.lane.b32.xlu0 %v2789, 127
        %v3058 = vpop.permute.xlu0 %3057
        %v3059 = vsel %vm588, %v3056, %v3058
        %v3060 = vsel %vm588, %v3058, %v3056
        %v3061 = vmul.f32 %v3059, %v594
        %v3062 = vmul.f32 %v3060, %v595
        %s3063 = scalar_lea.vmem %s1, 256
        %v3064 = vld [vmem:[%s3063] sm:$0xff]
        %v3066 = vsel %vm315, %v3064, 0
        %3068 = vmatpush.msra.mxu0 0.0
        %3069 = vmatpush.msra.mxu0 0.0
        %3070 = vmatpush.msra.mxu0 0.0
        %3071 = vmatpush.msra.mxu0 0.0
        %3072 = vmatpush.msra.mxu0 0.0
        %3073 = vmatpush.msra.mxu0 0.0
        %3074 = vmatpush.msra.mxu0 0.0
        %3075 = vmatpush.msra.mxu0 0.0
        %3076 = vmatpush.msra.mxu0 0.0
        %3077 = vmatpush.msra.mxu0 0.0
        %3078 = vmatpush.msra.mxu0 0.0
        %3079 = vmatpush.msra.mxu0 0.0
        %3080 = vmatpush.msra.mxu0 0.0
        %3081 = vmatpush.msra.mxu0 0.0
        %3082 = vmatpush.msra.mxu0 0.0
        %3083 = vmatpush.msra.mxu0 %v3061
        %3084 = vmatmul.f32.gmra.mxu0 %v3066
        %v3085 = vpop.f32.mrf.mxu0
        %v3086 = vadd.f32 0.0, %v3085
        %3087 = vdwg.mxu0
        %3088 = vmatpush.msra.mxu0 0.0
        %3089 = vmatpush.msra.mxu0 0.0
        %3090 = vmatpush.msra.mxu0 0.0
        %3091 = vmatpush.msra.mxu0 0.0
        %3092 = vmatpush.msra.mxu0 0.0
        %3093 = vmatpush.msra.mxu0 0.0
        %3094 = vmatpush.msra.mxu0 0.0
        %3095 = vmatpush.msra.mxu0 0.0
        %3096 = vmatpush.msra.mxu0 0.0
        %3097 = vmatpush.msra.mxu0 0.0
        %3098 = vmatpush.msra.mxu0 0.0
        %3099 = vmatpush.msra.mxu0 0.0
        %3100 = vmatpush.msra.mxu0 0.0
        %3101 = vmatpush.msra.mxu0 0.0
        %3102 = vmatpush.msra.mxu0 0.0
        %3103 = vmatpush.msra.mxu0 %v3062
        %3104 = vmatmul.f32.gmra.mxu0 %v3066
        %v3105 = vpop.f32.mrf.mxu0
        %v3106 = vadd.f32 0.0, %v3105
        %3107 = vdwg.mxu0
        %v3108 = vadd.f32 %v3053, %v3086
        %v3109 = vadd.f32 %v3054, %v3106
        %3110 = vrot.lane.b32.xlu0 %v2788, 113
        %v3111 = vpop.permute.xlu0 %3110
        %3112 = vrot.lane.b32.xlu0 %v2789, 113
        %v3113 = vpop.permute.xlu0 %3112
        %v3114 = vsel %vm651, %v3111, %v3113
        %v3115 = vsel %vm651, %v3113, %v3111
        %v3116 = vmul.f32 %v3114, %v657
        %v3117 = vmul.f32 %v3115, %v658
        %s3118 = scalar_lea.vmem %s1, 264
        %v3119 = vld [vmem:[%s3118] sm:$0xff]
        %v3121 = vsel %vm315, %v3119, 0
        %3123 = vmatpush.msra.mxu0 0.0
        %3124 = vmatpush.msra.mxu0 0.0
        %3125 = vmatpush.msra.mxu0 0.0
        %3126 = vmatpush.msra.mxu0 0.0
        %3127 = vmatpush.msra.mxu0 0.0
        %3128 = vmatpush.msra.mxu0 0.0
        %3129 = vmatpush.msra.mxu0 0.0
        %3130 = vmatpush.msra.mxu0 0.0
        %3131 = vmatpush.msra.mxu0 0.0
        %3132 = vmatpush.msra.mxu0 0.0
        %3133 = vmatpush.msra.mxu0 0.0
        %3134 = vmatpush.msra.mxu0 0.0
        %3135 = vmatpush.msra.mxu0 0.0
        %3136 = vmatpush.msra.mxu0 0.0
        %3137 = vmatpush.msra.mxu0 0.0
        %3138 = vmatpush.msra.mxu0 %v3116
        %3139 = vmatmul.f32.gmra.mxu0 %v3121
        %v3140 = vpop.f32.mrf.mxu0
        %v3141 = vadd.f32 0.0, %v3140
        %3142 = vdwg.mxu0
        %3143 = vmatpush.msra.mxu0 0.0
        %3144 = vmatpush.msra.mxu0 0.0
        %3145 = vmatpush.msra.mxu0 0.0
        %3146 = vmatpush.msra.mxu0 0.0
        %3147 = vmatpush.msra.mxu0 0.0
        %3148 = vmatpush.msra.mxu0 0.0
        %3149 = vmatpush.msra.mxu0 0.0
        %3150 = vmatpush.msra.mxu0 0.0
        %3151 = vmatpush.msra.mxu0 0.0
        %3152 = vmatpush.msra.mxu0 0.0
        %3153 = vmatpush.msra.mxu0 0.0
        %3154 = vmatpush.msra.mxu0 0.0
        %3155 = vmatpush.msra.mxu0 0.0
        %3156 = vmatpush.msra.mxu0 0.0
        %3157 = vmatpush.msra.mxu0 0.0
        %3158 = vmatpush.msra.mxu0 %v3117
        %3159 = vmatmul.f32.gmra.mxu0 %v3121
        %v3160 = vpop.f32.mrf.mxu0
        %v3161 = vadd.f32 0.0, %v3160
        %3162 = vdwg.mxu0
        %v3163 = vadd.f32 %v3108, %v3141
        %v3164 = vadd.f32 %v3109, %v3161
        %3165 = vrot.lane.b32.xlu0 %v2788, 112
        %v3166 = vpop.permute.xlu0 %3165
        %3167 = vrot.lane.b32.xlu0 %v2789, 112
        %v3168 = vpop.permute.xlu0 %3167
        %v3169 = vsel %vm714, %v3166, %v3168
        %v3170 = vsel %vm714, %v3168, %v3166
        %v3171 = vmul.f32 %v3169, %v720
        %v3172 = vmul.f32 %v3170, %v721
        %s3173 = scalar_lea.vmem %s1, 272
        %v3174 = vld [vmem:[%s3173] sm:$0xff]
        %v3176 = vsel %vm315, %v3174, 0
        %3178 = vmatpush.msra.mxu0 0.0
        %3179 = vmatpush.msra.mxu0 0.0
        %3180 = vmatpush.msra.mxu0 0.0
        %3181 = vmatpush.msra.mxu0 0.0
        %3182 = vmatpush.msra.mxu0 0.0
        %3183 = vmatpush.msra.mxu0 0.0
        %3184 = vmatpush.msra.mxu0 0.0
        %3185 = vmatpush.msra.mxu0 0.0
        %3186 = vmatpush.msra.mxu0 0.0
        %3187 = vmatpush.msra.mxu0 0.0
        %3188 = vmatpush.msra.mxu0 0.0
        %3189 = vmatpush.msra.mxu0 0.0
        %3190 = vmatpush.msra.mxu0 0.0
        %3191 = vmatpush.msra.mxu0 0.0
        %3192 = vmatpush.msra.mxu0 0.0
        %3193 = vmatpush.msra.mxu0 %v3171
        %3194 = vmatmul.f32.gmra.mxu0 %v3176
        %v3195 = vpop.f32.mrf.mxu0
        %v3196 = vadd.f32 0.0, %v3195
        %3197 = vdwg.mxu0
        %3198 = vmatpush.msra.mxu0 0.0
        %3199 = vmatpush.msra.mxu0 0.0
        %3200 = vmatpush.msra.mxu0 0.0
        %3201 = vmatpush.msra.mxu0 0.0
        %3202 = vmatpush.msra.mxu0 0.0
        %3203 = vmatpush.msra.mxu0 0.0
        %3204 = vmatpush.msra.mxu0 0.0
        %3205 = vmatpush.msra.mxu0 0.0
        %3206 = vmatpush.msra.mxu0 0.0
        %3207 = vmatpush.msra.mxu0 0.0
        %3208 = vmatpush.msra.mxu0 0.0
        %3209 = vmatpush.msra.mxu0 0.0
        %3210 = vmatpush.msra.mxu0 0.0
        %3211 = vmatpush.msra.mxu0 0.0
        %3212 = vmatpush.msra.mxu0 0.0
        %3213 = vmatpush.msra.mxu0 %v3172
        %3214 = vmatmul.f32.gmra.mxu0 %v3176
        %v3215 = vpop.f32.mrf.mxu0
        %v3216 = vadd.f32 0.0, %v3215
        %3217 = vdwg.mxu0
        %v3218 = vadd.f32 %v3163, %v3196
        %v3219 = vadd.f32 %v3164, %v3216
        %3220 = vrot.lane.b32.xlu0 %v2788, 111
        %v3221 = vpop.permute.xlu0 %3220
        %3222 = vrot.lane.b32.xlu0 %v2789, 111
        %v3223 = vpop.permute.xlu0 %3222
        %v3224 = vsel %vm777, %v3221, %v3223
        %v3225 = vsel %vm777, %v3223, %v3221
        %v3226 = vmul.f32 %v3224, %v783
        %v3227 = vmul.f32 %v3225, %v784
        %s3228 = scalar_lea.vmem %s1, 280
        %v3229 = vld [vmem:[%s3228] sm:$0xff]
        %v3231 = vsel %vm315, %v3229, 0
        %3233 = vmatpush.msra.mxu0 0.0
        %3234 = vmatpush.msra.mxu0 0.0
        %3235 = vmatpush.msra.mxu0 0.0
        %3236 = vmatpush.msra.mxu0 0.0
        %3237 = vmatpush.msra.mxu0 0.0
        %3238 = vmatpush.msra.mxu0 0.0
        %3239 = vmatpush.msra.mxu0 0.0
        %3240 = vmatpush.msra.mxu0 0.0
        %3241 = vmatpush.msra.mxu0 0.0
        %3242 = vmatpush.msra.mxu0 0.0
        %3243 = vmatpush.msra.mxu0 0.0
        %3244 = vmatpush.msra.mxu0 0.0
        %3245 = vmatpush.msra.mxu0 0.0
        %3246 = vmatpush.msra.mxu0 0.0
        %3247 = vmatpush.msra.mxu0 0.0
        %3248 = vmatpush.msra.mxu0 %v3226
        %3249 = vmatmul.f32.gmra.mxu0 %v3231
        %v3250 = vpop.f32.mrf.mxu0
        %v3251 = vadd.f32 0.0, %v3250
        %3252 = vdwg.mxu0
        %3253 = vmatpush.msra.mxu0 0.0
        %3254 = vmatpush.msra.mxu0 0.0
        %3255 = vmatpush.msra.mxu0 0.0
        %3256 = vmatpush.msra.mxu0 0.0
        %3257 = vmatpush.msra.mxu0 0.0
        %3258 = vmatpush.msra.mxu0 0.0
        %3259 = vmatpush.msra.mxu0 0.0
        %3260 = vmatpush.msra.mxu0 0.0
        %3261 = vmatpush.msra.mxu0 0.0
        %3262 = vmatpush.msra.mxu0 0.0
        %3263 = vmatpush.msra.mxu0 0.0
        %3264 = vmatpush.msra.mxu0 0.0
        %3265 = vmatpush.msra.mxu0 0.0
        %3266 = vmatpush.msra.mxu0 0.0
        %3267 = vmatpush.msra.mxu0 0.0
        %3268 = vmatpush.msra.mxu0 %v3227
        %3269 = vmatmul.f32.gmra.mxu0 %v3231
        %v3270 = vpop.f32.mrf.mxu0
        %v3271 = vadd.f32 0.0, %v3270
        %3272 = vdwg.mxu0
        %v3273 = vadd.f32 %v3218, %v3251
        %v3274 = vadd.f32 %v3219, %v3271
        %s3275 = scalar_lea.vmem %s2, 24
        %v3276 = vld [vmem:[%s3275] sm:$0xff]
        %3278 = vset.pattern.permute.xlu0 0
        %3279 = vperm.xlu0 %3278, %v3276
        %v3280 = vpop.permute.xlu0 %3279
        %v3282 = vadd.f32 %v3273, %v3280
        %v3283 = vadd.f32 %v3274, %v3280
        %v3284 = vmax.f32 %v3282, 0.0
        %v3285 = vmax.f32 %v3283, 0.0
        %s3286 = scalar_lea.vmem %s3, 24
        %v3287 = vld [vmem:[%s3286] sm:$0xff]
        %3289 = vset.pattern.permute.xlu0 0
        %3290 = vperm.xlu0 %3289, %v3287
        %v3291 = vpop.permute.xlu0 %3290
        %v3293 = vmul.f32 %v3291, %v3284
        %v3294 = vmul.f32 %v3291, %v3285
        %s3295 = scalar_lea.vmem %s4, 24
        %v3296 = vld [vmem:[%s3295] sm:$0xff]
        %3298 = vset.pattern.permute.xlu0 0
        %3299 = vperm.xlu0 %3298, %v3296
        %v3300 = vpop.permute.xlu0 %3299
        %v3302 = vadd.f32 %v3293, %v3300
        %v3303 = vadd.f32 %v3294, %v3300
        %v3304 = vadd.f32 %v3302, %v277
        %v3305 = vadd.f32 %v3303, %v278
        %s3306 = scalar_lea.vmem %s3, 32
        %v3307 = vld [vmem:[%s3306] sm:$0xff]
        %v3308 = vmax.f32 %v3304, 0.0
        %v3309 = vmax.f32 %v3305, 0.0
        %3311 = vset.pattern.permute.xlu0 0
        %3312 = vperm.xlu0 %3311, %v3307
        %v3313 = vpop.permute.xlu0 %3312
        %v3315 = vmul.f32 %v3313, %v3308
        %v3316 = vmul.f32 %v3313, %v3309
        %s3317 = scalar_lea.vmem %s4, 32
        %v3318 = vld [vmem:[%s3317] sm:$0xff]
        %3320 = vset.pattern.permute.xlu0 0
        %3321 = vperm.xlu0 %3320, %v3318
        %v3322 = vpop.permute.xlu0 %3321
        %v3324 = vadd.f32 %v3315, %v3322
        %v3325 = vadd.f32 %v3316, %v3322
        %3326 = vrot.lane.b32.xlu0 %v3324, 127
        %v3327 = vpop.permute.xlu0 %3326
        %3328 = vrot.lane.b32.xlu0 %v3325, 127
        %v3329 = vpop.permute.xlu0 %3328
        %v3330 = vsel %vm588, %v3327, %v3329
        %v3331 = vsel %vm588, %v3329, %v3327
        %v3332 = vmax.f32 %v3324, %v3330
        %v3333 = vmax.f32 %v3325, %v3331
        %3334 = vrot.lane.b32.xlu0 %v3324, 126
        %v3335 = vpop.permute.xlu0 %3334
        %3336 = vrot.lane.b32.xlu0 %v3325, 126
        %v3337 = vpop.permute.xlu0 %3336
        %vm3338 = vcmp.lt.s32.totalorder %v284, 126
        %v3339 = vsel %vm3338, %v3335, %v3337
        %v3340 = vsel %vm3338, %v3337, %v3335
        %v3341 = vmax.f32 %v3332, %v3339
        %v3342 = vmax.f32 %v3333, %v3340
        %3343 = vrot.lane.b32.xlu0 %v3324, 125
        %v3344 = vpop.permute.xlu0 %3343
        %3345 = vrot.lane.b32.xlu0 %v3325, 125
        %v3346 = vpop.permute.xlu0 %3345
        %vm3347 = vcmp.lt.s32.totalorder %v284, 125
        %v3348 = vsel %vm3347, %v3344, %v3346
        %v3349 = vsel %vm3347, %v3346, %v3344
        %v3350 = vmax.f32 %v3341, %v3348
        %v3351 = vmax.f32 %v3342, %v3349
        %3352 = vrot.lane.b32.xlu0 %v3350, 112
        %v3353 = vpop.permute.xlu0 %3352
        %3354 = vrot.lane.b32.xlu0 %v3351, 112
        %v3355 = vpop.permute.xlu0 %3354
        %v3356 = vsel %vm714, %v3353, %v3355
        %v3357 = vsel %vm714, %v3355, %v3353
        %v3358 = vmax.f32 %v3350, %v3356
        %v3359 = vmax.f32 %v3351, %v3357
        %3360 = vrot.lane.b32.xlu0 %v3350, 96
        %v3361 = vpop.permute.xlu0 %3360
        %3362 = vrot.lane.b32.xlu0 %v3351, 96
        %v3363 = vpop.permute.xlu0 %3362
        %vm3364 = vcmp.lt.s32.totalorder %v284, 96
        %v3365 = vsel %vm3364, %v3361, %v3363
        %v3366 = vsel %vm3364, %v3363, %v3361
        %v3367 = vmax.f32 %v3358, %v3365
        %v3368 = vmax.f32 %v3359, %v3366
        %3369 = vrot.lane.b32.xlu0 %v3350, 80
        %v3370 = vpop.permute.xlu0 %3369
        %3371 = vrot.lane.b32.xlu0 %v3351, 80
        %v3372 = vpop.permute.xlu0 %3371
        %vm3373 = vcmp.lt.s32.totalorder %v284, 80
        %v3374 = vsel %vm3373, %v3370, %v3372
        %v3375 = vsel %vm3373, %v3372, %v3370
        %v3376 = vmax.f32 %v3367, %v3374
        %v3377 = vmax.f32 %v3368, %v3375
        %v3378 = vld [vmem:[%s6] sm:$0xff]
        %v3379 = vld [vmem:[%s6 + $0x8] sm:$0xff]
        %v3380 = vld [vmem:[%s6 + $0x10] sm:$0xff]
        %v3381 = vld [vmem:[%s6 + $0x18] sm:$0xff]
        %v3382 = vld [vmem:[%s6 + $0x20] sm:$0xff]
        %v3383 = vld [vmem:[%s6 + $0x28] sm:$0xff]
        %v3384 = vld [vmem:[%s6 + $0x30] sm:$0xff]
        %v3385 = vld [vmem:[%s6 + $0x38] sm:$0xff]
        %v3386 = vld [vmem:[%s6 + $0x40] sm:$0xff]
        %v3387 = vld [vmem:[%s6 + $0x48] sm:$0xff]
        %v3388 = vld [vmem:[%s6 + $0x50] sm:$0xff]
        %v3389 = vld [vmem:[%s6 + $0x58] sm:$0xff]
        %v3390 = vld [vmem:[%s6 + $0x60] sm:$0xff]
        %v3391 = vld [vmem:[%s6 + $0x68] sm:$0xff]
        %v3392 = vld [vmem:[%s6 + $0x70] sm:$0xff]
        %v3393 = vld [vmem:[%s6 + $0x78] sm:$0xff]
        %v3394 = vld [vmem:[%s6 + $0x80] sm:$0xff]
        %v3395 = vld [vmem:[%s6 + $0x88] sm:$0xff]
        %v3396 = vld [vmem:[%s6 + $0x90] sm:$0xff]
        %v3397 = vld [vmem:[%s6 + $0x98] sm:$0xff]
        %v3398 = vld [vmem:[%s6 + $0xa0] sm:$0xff]
        %v3399 = vld [vmem:[%s6 + $0xa8] sm:$0xff]
        %v3400 = vld [vmem:[%s6 + $0xb0] sm:$0xff]
        %v3401 = vld [vmem:[%s6 + $0xb8] sm:$0xff]
        %v3402 = vld [vmem:[%s6 + $0xc0] sm:$0xff]
        %v3403 = vld [vmem:[%s6 + $0xc8] sm:$0xff]
        %v3404 = vld [vmem:[%s6 + $0xd0] sm:$0xff]
        %v3405 = vld [vmem:[%s6 + $0xd8] sm:$0xff]
        %v3406 = vld [vmem:[%s6 + $0xe0] sm:$0xff]
        %v3407 = vld [vmem:[%s6 + $0xe8] sm:$0xff]
        %v3408 = vld [vmem:[%s6 + $0xf0] sm:$0xff]
        %v3409 = vld [vmem:[%s6 + $0xf8] sm:$0xff]
        %3410 = vmatpush.msra.mxu0 %v3393
        %3411 = vmatpush.msra.mxu0 %v3392
        %3412 = vmatpush.msra.mxu0 %v3391
        %3413 = vmatpush.msra.mxu0 %v3390
        %3414 = vmatpush.msra.mxu0 %v3389
        %3415 = vmatpush.msra.mxu0 %v3388
        %3416 = vmatpush.msra.mxu0 %v3387
        %3417 = vmatpush.msra.mxu0 %v3386
        %3418 = vmatpush.msra.mxu0 %v3385
        %3419 = vmatpush.msra.mxu0 %v3384
        %3420 = vmatpush.msra.mxu0 %v3383
        %3421 = vmatpush.msra.mxu0 %v3382
        %3422 = vmatpush.msra.mxu0 %v3381
        %3423 = vmatpush.msra.mxu0 %v3380
        %3424 = vmatpush.msra.mxu0 %v3379
        %3425 = vmatpush.msra.mxu0 %v3378
        %3426 = vmatmul.f32.gmra.mxu0 %v3376
        %v3427 = vpop.f32.mrf.mxu0
        %v3428 = vadd.f32 0.0, %v3427
        %3429 = vdwg.mxu0
        %3430 = vmatpush.msra.mxu0 %v3409
        %3431 = vmatpush.msra.mxu0 %v3408
        %3432 = vmatpush.msra.mxu0 %v3407
        %3433 = vmatpush.msra.mxu0 %v3406
        %3434 = vmatpush.msra.mxu0 %v3405
        %3435 = vmatpush.msra.mxu0 %v3404
        %3436 = vmatpush.msra.mxu0 %v3403
        %3437 = vmatpush.msra.mxu0 %v3402
        %3438 = vmatpush.msra.mxu0 %v3401
        %3439 = vmatpush.msra.mxu0 %v3400
        %3440 = vmatpush.msra.mxu0 %v3399
        %3441 = vmatpush.msra.mxu0 %v3398
        %3442 = vmatpush.msra.mxu0 %v3397
        %3443 = vmatpush.msra.mxu0 %v3396
        %3444 = vmatpush.msra.mxu0 %v3395
        %3445 = vmatpush.msra.mxu0 %v3394
        %3446 = vmatmul.f32.gmra.mxu0 %v3377
        %v3447 = vpop.f32.mrf.mxu0
        %v3448 = vadd.f32 %v3428, %v3447
        %3449 = vdwg.mxu0
        %3450 = vst [vmem:[%s271] sm:$0xff] %v3448
        %s3451 = sand.u32 %s181, 1
        %s3452 = scalar_lea.sflag [#allocation3], %s3451
        %s3453 = sand.u32 %s181, 1
        %s3454 = smul.addr %s3453, 8
        %s3455 = scalar_lea.vmem [#allocation2], %s3454
        // Predicated region
        $region49: #{tpu_custom_call.1} parent=47 // pred_check
          %p3456 = pneg %p191
        $region50: #{tpu_custom_call.1} parent=47 // pred_check_branch
          %3458 = sbr.rel (%p3456) target = $region52
        $region51: #{tpu_custom_call.1} parent=47 // pred_region
          %3460 = vsyncadd %s3452, 0
          %s3461 = smul.addr %s21, 8
          %s3462 = scalar_lea.hbm %s7, %s3461
          %s3464 = sshll.u32 %s3455, 4
          %s3465 = int_to_ptr.vmem [resolvable:$true] %s3464
          %s3466 = sshll.u32 %s3462, 4
          %s3467 = int_to_ptr.hbm [resolvable:$true] %s3466
          %3469 = dma.vmem_to_hbm [thread:$0]  %s3465, 128, %s3467, %s3452
        $region52: #{tpu_custom_call.1} parent=47 // pred_fallthru
          _
      $region48: #{tpu_custom_call.1} parent=5 // pred_fallthru
        _
      %p3470 = scmp.le.s32.totalorder 2, %s16
      // Predicated region
      $region53: #{tpu_custom_call.1} parent=5 // pred_check
        %p3471 = pneg %p3470
      $region54: #{tpu_custom_call.1} parent=5 // pred_check_branch
        %3473 = sbr.rel (%p3471) target = $region56
      $region55: #{tpu_custom_call.1} parent=5 // pred_region
        %s3474 = ssub.s32 %s16, 2
        // Predicated region
        $region57: #{tpu_custom_call.1} parent=55 // pred_check
          %p3475 = pneg %p197
        $region58: #{tpu_custom_call.1} parent=55 // pred_check_branch
          %3477 = sbr.rel (%p3475) target = $region60
        $region59: #{tpu_custom_call.1} parent=55 // pred_region
          %s3478 = sand.u32 %s182, 1
          %s3479 = scalar_lea.sflag [#allocation3], %s3478
          %s3480 = sand.u32 %s182, 1
          %s3481 = smul.addr %s3480, 8
          %s3482 = scalar_lea.vmem [#allocation2], %s3481
          %3484 = dma.done %s3479, 128
        $region60: #{tpu_custom_call.1} parent=55 // pred_fallthru
          _
      $region56: #{tpu_custom_call.1} parent=5 // pred_fallthru
        _
    $region6: #{tpu_custom_call.1} parent=1 // loop_footer
      %s20 = sadd.s32 1, %s16
    $region7: #{tpu_custom_call.1} parent=1 // loop_footer_branch
      %15 = sbr.rel target = $region3
    $region8: #{tpu_custom_call.1} parent=1 // loop_exit
      _
    %3485 = vsyncpa [#allocation3], 1
    %s3486 = scalar_lea.sflag [#allocation3], 1
    %3487 = vsyncpa %s3486, 1

</llo_original>
